<compile_context>
chip_gen: v7x
topology: tpu7x:2x2x1
jax: 0.10.0
libtpu: 0.0.40
codegen_flags: <defaults>
</compile_context>

<pallas_src>
import functools

import jax
import jax.numpy as jnp
from jax.experimental import pallas as pl
from jax.experimental.pallas import tpu as pltpu

# 32 MiB scoped VMEM: safe headroom on v7x (64 MiB physical per TC) while far
# above the ~10 MiB double-buffered footprint of the chosen tiles.
_VMEM_LIMIT = 32 * 1024 * 1024
_KW = 4          # conv kernel size (fixed by the module)
_EPS = 1e-5      # BatchNorm2d default
_SLOPE = 0.2     # LeakyReLU slope


def _round_up(x, m):
    return (x + m - 1) // m * m


def _tiles(dim, target, align):
    """Return (tile, padded_dim): tile is align-aligned (or == padded_dim),
    padded_dim is a multiple of tile.  `target` must be a multiple of align."""
    if dim <= target:
        t = _round_up(dim, align)
        return t, t
    return target, _round_up(dim, target)


# ----------------------------------------------------------------------------
# Pallas kernels
# ----------------------------------------------------------------------------
def _conv_bias_act_kernel(x_ref, w_ref, b_ref, o_ref, acc_ref, *, negative_slope):
    """One (TM, TC) tile of leaky_relu(x @ w + b), accumulated over the K axis."""
    k = pl.program_id(2)

    @pl.when(k == 0)
    def _():
        acc_ref[...] = jnp.zeros_like(acc_ref)

    acc_ref[...] += jnp.dot(x_ref[...], w_ref[...],
                            preferred_element_type=jnp.float32)

    @pl.when(k == pl.num_programs(2) - 1)
    def _():
        out = acc_ref[...] + b_ref[...]          # f32 epilogue
        if negative_slope is not None:
            out = jnp.where(out >= 0.0, out, negative_slope * out)
        o_ref[...] = out.astype(o_ref.dtype)


def _conv_bn_stats_kernel(x_ref, w_ref, o_ref, sum_ref, sq_ref, acc_ref):
    """Conv GEMM tile + fused per-(M-tile, channel) partial batch statistics.

    Grid is (Cout tiles, M tiles, K tiles).  The (1, 1, TC) partial stats
    outputs map to a distinct block per (i, j) and are written exactly once at
    the K-flush step, so the M axis carries no cross-iteration state and can be
    marked "parallel" (megacore / v7x two-TC sharding).  The tiny per-tile
    partials are combined into mean/var in the JAX epilogue.
    """
    k = pl.program_id(2)

    @pl.when(k == 0)
    def _():
        acc_ref[...] = jnp.zeros_like(acc_ref)

    acc_ref[...] += jnp.dot(x_ref[...], w_ref[...],
                            preferred_element_type=jnp.float32)

    @pl.when(k == pl.num_programs(2) - 1)
    def _():
        y = acc_ref[...]
        o_ref[...] = y.astype(o_ref.dtype)
        sum_ref[...] = jnp.sum(y, axis=0, keepdims=True)[None, :, :]
        sq_ref[...] = jnp.sum(y * y, axis=0, keepdims=True)[None, :, :]


# ----------------------------------------------------------------------------
# pallas_call wrappers
# ----------------------------------------------------------------------------
def conv_bias_act(patches, w2d, bias, *, tm, tk, tc, negative_slope, out_dtype):
    mp, kp = patches.shape
    _, cp = w2d.shape
    kern = functools.partial(_conv_bias_act_kernel, negative_slope=negative_slope)
    return pl.pallas_call(
        kern,
        out_shape=jax.ShapeDtypeStruct((mp, cp), out_dtype),
        grid=(cp // tc, mp // tm, kp // tk),
        in_specs=[
            pl.BlockSpec((tm, tk), lambda j, i, k: (i, k)),
            pl.BlockSpec((tk, tc), lambda j, i, k: (k, j)),
            pl.BlockSpec((1, tc), lambda j, i, k: (0, j)),   # bias: resident per j
        ],
        out_specs=pl.BlockSpec((tm, tc), lambda j, i, k: (i, j)),
        scratch_shapes=[pltpu.VMEM((tm, tc), jnp.float32)],
        compiler_params=pltpu.CompilerParams(
            dimension_semantics=("parallel", "parallel", "arbitrary"),
            vmem_limit_bytes=_VMEM_LIMIT),
    )(patches, w2d, bias)


def conv_bn_stats(patches, w2d, *, tm, tk, tc, out_dtype):
    mp, kp = patches.shape
    _, cp = w2d.shape
    mt = mp // tm
    return pl.pallas_call(
        _conv_bn_stats_kernel,
        out_shape=(jax.ShapeDtypeStruct((mp, cp), out_dtype),
                   jax.ShapeDtypeStruct((mt, 1, cp), jnp.float32),
                   jax.ShapeDtypeStruct((mt, 1, cp), jnp.float32)),
        grid=(cp // tc, mt, kp // tk),
        in_specs=[
            pl.BlockSpec((tm, tk), lambda j, i, k: (i, k)),
            pl.BlockSpec((tk, tc), lambda j, i, k: (k, j)),
        ],
        out_specs=(pl.BlockSpec((tm, tc), lambda j, i, k: (i, j)),
                   pl.BlockSpec((1, 1, tc), lambda j, i, k: (i, 0, j)),
                   pl.BlockSpec((1, 1, tc), lambda j, i, k: (i, 0, j))),
        scratch_shapes=[pltpu.VMEM((tm, tc), jnp.float32)],
        compiler_params=pltpu.CompilerParams(
            dimension_semantics=("parallel", "parallel", "arbitrary"),
            vmem_limit_bytes=_VMEM_LIMIT),
    )(patches, w2d)


# ----------------------------------------------------------------------------
# JAX glue: im2col (data movement only), parameter construction, forward pass
# ----------------------------------------------------------------------------
def im2col(x_nhwc, kh, kw, stride, pad, k_pad):
    """Extract conv patches from NHWC, zero-padded along K to `k_pad`.

    Returns ((N*OH*OW, k_pad), (N, OH, OW)).  Per-row patch ordering is
    (kh, kw, cin), matching the weight reshape in prepare_params.  The K pad is
    fused into the concat so the inflated patches buffer is written only once.
    """
    x = jnp.pad(x_nhwc, ((0, 0), (pad, pad), (pad, pad), (0, 0)))
    n, h, w, c = x.shape
    oh = (h - kh) // stride + 1
    ow = (w - kw) // stride + 1
    cols = []
    for i in range(kh):
        for j in range(kw):
            sl = jax.lax.slice(
                x,
                (0, i, j, 0),
                (n, i + stride * (oh - 1) + 1, j + stride * (ow - 1) + 1, c),
                (1, stride, stride, 1),
            )
            cols.append(sl)
    k_dim = kh * kw * c
    if k_pad > k_dim:
        cols.append(jnp.zeros((n, oh, ow, k_pad - k_dim), x.dtype))
    patches = jnp.concatenate(cols, axis=-1)          # (N, oh, ow, k_pad)
    return patches.reshape(n * oh * ow, k_pad), (n, oh, ow)


def build_layer_specs(input_nc, ndf, n_layers):
    """Mirror the layer construction in NLayerDiscriminator.__init__."""
    specs = [dict(cin=input_nc, cout=ndf, stride=2, bias=True, bn=False, act=True)]
    nf_mult = 1
    for n in range(1, n_layers):
        nf_mult_prev = nf_mult
        nf_mult = min(2 ** n, 8)
        specs.append(dict(cin=ndf * nf_mult_prev, cout=ndf * nf_mult,
                          stride=2, bias=False, bn=True, act=True))
    nf_mult_prev = nf_mult
    nf_mult = min(2 ** n_layers, 8)
    specs.append(dict(cin=ndf * nf_mult_prev, cout=ndf * nf_mult,
                      stride=1, bias=False, bn=True, act=True))
    specs.append(dict(cin=ndf * nf_mult, cout=1, stride=1, bias=True, bn=False, act=False))
    return specs


def init_params(key, input_nc=3, ndf=64, n_layers=3):
    params = []
    for s in build_layer_specs(input_nc, ndf, n_layers):
        key, k_w, k_b = jax.random.split(key, 3)
        fan_in = s["cin"] * _KW * _KW
        w = jax.random.normal(k_w, (s["cout"], s["cin"], _KW, _KW), jnp.float32) / jnp.sqrt(
            jnp.float32(fan_in))
        if s["bias"]:
            b = jax.random.normal(k_b, (s["cout"],), jnp.float32) * 0.01
        else:
            b = jnp.zeros((s["cout"],), jnp.float32)
        gamma = jnp.ones((s["cout"],), jnp.float32) if s["bn"] else None
        beta = jnp.zeros((s["cout"],), jnp.float32) if s["bn"] else None
        params.append(dict(spec=s, w=w, b=b, gamma=gamma, beta=beta))
    return params


def prepare_params(params, *, tm_target=1024, tk_target=1024, tc_target=512):
    """Hoist per-layer layout work out of the forward pass: torch weight
    (Cout,Cin,kh,kw) -> (K, Cout) bf16, zero-padded so K and Cout are multiples
    of 128 (lane-dense, MXU-friendly); bias padded to (1, Cpad); gamma/beta kept
    as (Cpad,) f32 for the jnp BN-apply epilogue."""
    prepped = []
    for p in params:
        s = p["spec"]
        k_dim = _KW * _KW * s["cin"]
        c_dim = s["cout"]
        tk, k_pad = _tiles(k_dim, tk_target, 128)
        tc, c_pad = _tiles(c_dim, tc_target, 128)
        w2d = jnp.transpose(p["w"], (2, 3, 1, 0)).reshape(k_dim, c_dim)
        w2d = jnp.pad(w2d, ((0, k_pad - k_dim), (0, c_pad - c_dim))).astype(jnp.bfloat16)
        bias = jnp.pad(p["b"], (0, c_pad - c_dim)).reshape(1, c_pad).astype(jnp.float32)
        gamma = beta = None
        if s["bn"]:
            gamma = jnp.pad(p["gamma"], (0, c_pad - c_dim)).astype(jnp.float32)
            beta = jnp.pad(p["beta"], (0, c_pad - c_dim)).astype(jnp.float32)
        prepped.append(dict(spec=s, w2d=w2d, bias=bias, gamma=gamma, beta=beta,
                            k_dim=k_dim, k_pad=k_pad, tk=tk,
                            c_dim=c_dim, c_pad=c_pad, tc=tc,
                            tm_target=tm_target))
    return prepped


def nlayer_discriminator_forward(x_nchw, prepped):
    """Forward pass. Input NCHW float32, output NCHW float32 (PatchGAN logits).

    Intermediate activations are carried as bf16 NHWC (they only feed the next
    layer's bf16 GEMM operands); all accumulation / BN / activation math is f32.
    """
    x = jnp.transpose(x_nchw, (0, 2, 3, 1)).astype(jnp.bfloat16)   # -> NHWC bf16
    n_total = len(prepped)
    for li, p in enumerate(prepped):
        s = p["spec"]
        last = (li == n_total - 1)
        patches, (n, oh, ow) = im2col(x, _KW, _KW, s["stride"], 1, p["k_pad"])
        m = n * oh * ow
        tm, m_pad = _tiles(m, p["tm_target"], 16)
        if m_pad > m:
            patches = jnp.pad(patches, ((0, m_pad - m), (0, 0)))
        if s["bn"]:
            y, psum, psq = conv_bn_stats(patches, p["w2d"],
                                         tm=tm, tk=p["tk"], tc=p["tc"],
                                         out_dtype=jnp.bfloat16)
            # Zero-padded rows contribute exactly 0 to the sums (no bias on BN
            # layers), so dividing by the true m gives PyTorch training-mode
            # (biased) batch statistics.  Tiny O(m_tiles * C) epilogue in f32.
            ysum = jnp.sum(psum[:, 0, :], axis=0)
            ysq = jnp.sum(psq[:, 0, :], axis=0)
            mean = ysum / m
            var = jnp.maximum(ysq / m - mean * mean, 0.0)
            inv = jax.lax.rsqrt(var + _EPS)
            scale = p["gamma"] * inv
            shift = p["beta"] - mean * scale
            # BN apply + LeakyReLU in plain jnp: fuses with the next layer's
            # im2col slice/concat/pad fusion (no extra pallas_call round trip).
            y = y[:m, :p["c_dim"]].astype(jnp.float32) * scale[:p["c_dim"]] + shift[:p["c_dim"]]
            y = jnp.where(y >= 0.0, y, _SLOPE * y)
            x = y.astype(jnp.bfloat16).reshape(n, oh, ow, p["c_dim"])
        else:
            slope = _SLOPE if s["act"] else None
            out_dtype = jnp.float32 if last else jnp.bfloat16
            y = conv_bias_act(patches, p["w2d"], p["bias"],
                              tm=tm, tk=p["tk"], tc=p["tc"],
                              negative_slope=slope, out_dtype=out_dtype)
            x = y[:m, :p["c_dim"]].reshape(n, oh, ow, p["c_dim"])
    return jnp.transpose(x, (0, 3, 1, 2)).astype(jnp.float32)   # -> NCHW


def reference_forward(x_nchw, params):
    """Pure-JAX f32 reference with identical semantics (for verification)."""
    x = jnp.transpose(x_nchw, (0, 2, 3, 1)).astype(jnp.float32)
    for p in params:
        s = p["spec"]
        w = jnp.transpose(p["w"], (2, 3, 1, 0))   # HWIO
        y = jax.lax.conv_general_dilated(
            x, w, window_strides=(s["stride"], s["stride"]),
            padding=((1, 1), (1, 1)),
            dimension_numbers=("NHWC", "HWIO", "NHWC"),
            preferred_element_type=jnp.float32)
        if s["bias"]:
            y = y + p["b"]
        if s["bn"]:
            mean = jnp.mean(y, axis=(0, 1, 2), keepdims=True)
            var = jnp.mean(jnp.square(y - mean), axis=(0, 1, 2), keepdims=True)
            y = (y - mean) * jax.lax.rsqrt(var + _EPS) * p["gamma"] + p["beta"]
        if s["act"]:
            y = jnp.where(y >= 0.0, y, _SLOPE * y)
        x = y
    return jnp.transpose(x, (0, 3, 1, 2))


if __name__ == "__main__":
    key = jax.random.PRNGKey(0)
    key, pkey, xkey = jax.random.split(key, 3)

    # Small shapes consistent with the module: 4x4 kernels, three stride-2-ish
    # stages need spatial >= 32 to produce a non-empty patch map.
    params = init_params(pkey, input_nc=3, ndf=16, n_layers=3)
    prepped = prepare_params(params)
    x = jax.random.normal(xkey, (2, 3, 32, 32), jnp.float32)   # NCHW, like PyTorch

    fwd = jax.jit(lambda inp: nlayer_discriminator_forward(inp, prepped))
    out = jax.block_until_ready(fwd(x))

    # 32 -> 16 -> 8 -> 4 -> 3 -> 2 spatially, 1 output channel.
    assert out.shape == (2, 1, 2, 2), out.shape
    assert bool(jnp.all(jnp.isfinite(out)))

    # Numerical check against the plain-JAX f32 reference (bf16 GEMM operands
    # and bf16 intermediate activations -> loose tolerance).
    ref = jax.block_until_ready(jax.jit(lambda inp: reference_forward(inp, params))(x))
    assert bool(jnp.allclose(out, ref, atol=1e-1, rtol=1e-1)), (
        "max abs diff vs reference: %f" % float(jnp.max(jnp.abs(out - ref))))

    print("KERNEL_OK")
</pallas_src>

<mosaic_0001>
module attributes {stable_mosaic.version = 11 : i64} {
  func.func @_conv_bias_act_kernel(%arg0: i32, %arg1: i32, %arg2: i32, %arg3: memref<512x128xbf16, #tpu.memory_space<vmem>>, %arg4: memref<128x128xbf16, #tpu.memory_space<vmem>>, %arg5: memref<1x128xf32, #tpu.memory_space<vmem>>, %arg6: memref<512x128xbf16, #tpu.memory_space<vmem>>, %arg7: memref<512x128xf32, #tpu.memory_space<vmem>>) attributes {dimension_semantics = [#tpu.dimension_semantics<parallel>, #tpu.dimension_semantics<parallel>, #tpu.dimension_semantics<arbitrary>], iteration_bounds = array<i64: 1, 1, 1>, scalar_prefetch = 0 : i64, scratch_operands = 1 : i64, tpu.core_type = #tpu.core_type<tc>, window_params = [{transform_indices = @transform_0, window_bounds = array<i64: 512, 128>}, {transform_indices = @transform_1, window_bounds = array<i64: 128, 128>}, {transform_indices = @transform_2, window_bounds = array<i64: 1, 128>}, {transform_indices = @transform_3, window_bounds = array<i64: 512, 128>}]} {
    %c0_i32 = arith.constant 0 : i32
    %0 = arith.cmpi eq, %arg2, %c0_i32 : i32
    %1 = arith.extui %0 : i1 to i32
    %c0_i32_0 = arith.constant 0 : i32
    %2 = arith.cmpi ne, %1, %c0_i32_0 : i32
    scf.if %2 {
      %cst_10 = arith.constant 0.000000e+00 : f32
      %12 = vector.broadcast %cst_10 : f32 to vector<512x128xf32>
      %c0_11 = arith.constant 0 : index
      %c0_12 = arith.constant 0 : index
      %13 = vector.load %arg7[%c0_11, %c0_12] : memref<512x128xf32, #tpu.memory_space<vmem>>, vector<512x128xf32>
      tpu.vector_store %arg7[%c0_11, %c0_12], %12 {strides = array<i32>} : memref<512x128xf32, #tpu.memory_space<vmem>>, vector<512x128xf32>,
    } else {
    }
    %c0 = arith.constant 0 : index
    %c0_1 = arith.constant 0 : index
    %3 = vector.load %arg7[%c0, %c0_1] : memref<512x128xf32, #tpu.memory_space<vmem>>, vector<512x128xf32>
    %c0_2 = arith.constant 0 : index
    %c0_3 = arith.constant 0 : index
    %4 = vector.load %arg3[%c0_2, %c0_3] : memref<512x128xbf16, #tpu.memory_space<vmem>>, vector<512x128xbf16>
    %c0_4 = arith.constant 0 : index
    %c0_5 = arith.constant 0 : index
    %5 = vector.load %arg4[%c0_4, %c0_5] : memref<128x128xbf16, #tpu.memory_space<vmem>>, vector<128x128xbf16>
    %cst = arith.constant dense<0.000000e+00> : vector<512x128xf32>
    %6 = tpu.matmul %4, %5, %cst {dimension_numbers = #tpu.dot_dimension_numbers<[1], [0], [0], [1], [0, 0, 1, 1], [], []>} : vector<512x128xbf16>, vector<128x128xbf16>, vector<512x128xf32> -> vector<512x128xf32>
    %7 = arith.addf %3, %6 : vector<512x128xf32>
    %c0_6 = arith.constant 0 : index
    %c0_7 = arith.constant 0 : index
    %8 = vector.load %arg7[%c0_6, %c0_7] : memref<512x128xf32, #tpu.memory_space<vmem>>, vector<512x128xf32>
    tpu.vector_store %arg7[%c0_6, %c0_7], %7 {strides = array<i32>} : memref<512x128xf32, #tpu.memory_space<vmem>>, vector<512x128xf32>,
    %c0_i32_8 = arith.constant 0 : i32
    %9 = arith.cmpi eq, %arg2, %c0_i32_8 : i32
    %10 = arith.extui %9 : i1 to i32
    %c0_i32_9 = arith.constant 0 : i32
    %11 = arith.cmpi ne, %10, %c0_i32_9 : i32
    scf.if %11 {
      %c0_10 = arith.constant 0 : index
      %c0_11 = arith.constant 0 : index
      %12 = vector.load %arg7[%c0_10, %c0_11] : memref<512x128xf32, #tpu.memory_space<vmem>>, vector<512x128xf32>
      %c0_12 = arith.constant 0 : index
      %c0_13 = arith.constant 0 : index
      %13 = vector.load %arg5[%c0_12, %c0_13] : memref<1x128xf32, #tpu.memory_space<vmem>>, vector<1x128xf32>
      %14 = vector.broadcast %13 : vector<1x128xf32> to vector<512x128xf32>
      %15 = arith.addf %12, %14 : vector<512x128xf32>
      %cst_14 = arith.constant 0.000000e+00 : f32
      %16 = vector.broadcast %cst_14 : f32 to vector<512x128xf32>
      %17 = arith.cmpf oge, %15, %16 : vector<512x128xf32>
      %cst_15 = arith.constant 2.000000e-01 : f32
      %18 = vector.broadcast %cst_15 : f32 to vector<512x128xf32>
      %19 = arith.mulf %18, %15 : vector<512x128xf32>
      %20 = arith.select %17, %15, %19 : vector<512x128xi1>, vector<512x128xf32>
      %21 = arith.truncf %20 : vector<512x128xf32> to vector<512x128xbf16>
      %c0_16 = arith.constant 0 : index
      %c0_17 = arith.constant 0 : index
      %22 = vector.load %arg6[%c0_16, %c0_17] : memref<512x128xbf16, #tpu.memory_space<vmem>>, vector<512x128xbf16>
      tpu.vector_store %arg6[%c0_16, %c0_17], %21 {strides = array<i32>} : memref<512x128xbf16, #tpu.memory_space<vmem>>, vector<512x128xbf16>,
    } else {
    }
    return
  }
  func.func @transform_0(%arg0: i32, %arg1: i32, %arg2: i32) -> (i32, i32) {
    %c0_i32 = arith.constant 0 : i32
    return %arg1, %arg2 : i32, i32
  }
  func.func @transform_1(%arg0: i32, %arg1: i32, %arg2: i32) -> (i32, i32) {
    %c0_i32 = arith.constant 0 : i32
    return %arg2, %arg0 : i32, i32
  }
  func.func @transform_2(%arg0: i32, %arg1: i32, %arg2: i32) -> (i32, i32) {
    %c0_i32 = arith.constant 0 : i32
    %c0_i32_0 = arith.constant 0 : i32
    return %c0_i32, %arg0 : i32, i32
  }
  func.func @transform_3(%arg0: i32, %arg1: i32, %arg2: i32) -> (i32, i32) {
    %c0_i32 = arith.constant 0 : i32
    return %arg1, %arg0 : i32, i32
  }
}

module attributes {stable_mosaic.version = 11 : i64} {
  func.func @_conv_bn_stats_kernel(%arg0: i32, %arg1: i32, %arg2: i32, %arg3: memref<128x256xbf16, #tpu.memory_space<vmem>>, %arg4: memref<256x128xbf16, #tpu.memory_space<vmem>>, %arg5: memref<128x128xbf16, #tpu.memory_space<vmem>>, %arg6: memref<1x1x128xf32, #tpu.memory_space<vmem>>, %arg7: memref<1x1x128xf32, #tpu.memory_space<vmem>>, %arg8: memref<128x128xf32, #tpu.memory_space<vmem>>) attributes {dimension_semantics = [#tpu.dimension_semantics<parallel>, #tpu.dimension_semantics<parallel>, #tpu.dimension_semantics<arbitrary>], iteration_bounds = array<i64: 1, 1, 1>, scalar_prefetch = 0 : i64, scratch_operands = 1 : i64, tpu.core_type = #tpu.core_type<tc>, window_params = [{transform_indices = @transform_0, window_bounds = array<i64: 128, 256>}, {transform_indices = @transform_1, window_bounds = array<i64: 256, 128>}, {transform_indices = @transform_2, window_bounds = array<i64: 128, 128>}, {transform_indices = @transform_3, window_bounds = array<i64: 1, 1, 128>}, {transform_indices = @transform_4, window_bounds = array<i64: 1, 1, 128>}]} {
    %c0_i32 = arith.constant 0 : i32
    %0 = arith.cmpi eq, %arg2, %c0_i32 : i32
    %1 = arith.extui %0 : i1 to i32
    %c0_i32_0 = arith.constant 0 : i32
    %2 = arith.cmpi ne, %1, %c0_i32_0 : i32
    scf.if %2 {
      %cst_10 = arith.constant 0.000000e+00 : f32
      %12 = vector.broadcast %cst_10 : f32 to vector<128x128xf32>
      %c0_11 = arith.constant 0 : index
      %c0_12 = arith.constant 0 : index
      %13 = vector.load %arg8[%c0_11, %c0_12] : memref<128x128xf32, #tpu.memory_space<vmem>>, vector<128x128xf32>
      tpu.vector_store %arg8[%c0_11, %c0_12], %12 {strides = array<i32>} : memref<128x128xf32, #tpu.memory_space<vmem>>, vector<128x128xf32>,
    } else {
    }
    %c0 = arith.constant 0 : index
    %c0_1 = arith.constant 0 : index
    %3 = vector.load %arg8[%c0, %c0_1] : memref<128x128xf32, #tpu.memory_space<vmem>>, vector<128x128xf32>
    %c0_2 = arith.constant 0 : index
    %c0_3 = arith.constant 0 : index
    %4 = vector.load %arg3[%c0_2, %c0_3] : memref<128x256xbf16, #tpu.memory_space<vmem>>, vector<128x256xbf16>
    %c0_4 = arith.constant 0 : index
    %c0_5 = arith.constant 0 : index
    %5 = vector.load %arg4[%c0_4, %c0_5] : memref<256x128xbf16, #tpu.memory_space<vmem>>, vector<256x128xbf16>
    %cst = arith.constant dense<0.000000e+00> : vector<128x128xf32>
    %6 = tpu.matmul %4, %5, %cst {dimension_numbers = #tpu.dot_dimension_numbers<[1], [0], [0], [1], [0, 0, 1, 1], [], []>} : vector<128x256xbf16>, vector<256x128xbf16>, vector<128x128xf32> -> vector<128x128xf32>
    %7 = arith.addf %3, %6 : vector<128x128xf32>
    %c0_6 = arith.constant 0 : index
    %c0_7 = arith.constant 0 : index
    %8 = vector.load %arg8[%c0_6, %c0_7] : memref<128x128xf32, #tpu.memory_space<vmem>>, vector<128x128xf32>
    tpu.vector_store %arg8[%c0_6, %c0_7], %7 {strides = array<i32>} : memref<128x128xf32, #tpu.memory_space<vmem>>, vector<128x128xf32>,
    %c0_i32_8 = arith.constant 0 : i32
    %9 = arith.cmpi eq, %arg2, %c0_i32_8 : i32
    %10 = arith.extui %9 : i1 to i32
    %c0_i32_9 = arith.constant 0 : i32
    %11 = arith.cmpi ne, %10, %c0_i32_9 : i32
    scf.if %11 {
      %c0_10 = arith.constant 0 : index
      %c0_11 = arith.constant 0 : index
      %12 = vector.load %arg8[%c0_10, %c0_11] : memref<128x128xf32, #tpu.memory_space<vmem>>, vector<128x128xf32>
      %13 = arith.truncf %12 : vector<128x128xf32> to vector<128x128xbf16>
      %c0_12 = arith.constant 0 : index
      %c0_13 = arith.constant 0 : index
      %14 = vector.load %arg5[%c0_12, %c0_13] : memref<128x128xbf16, #tpu.memory_space<vmem>>, vector<128x128xbf16>
      tpu.vector_store %arg5[%c0_12, %c0_13], %13 {strides = array<i32>} : memref<128x128xbf16, #tpu.memory_space<vmem>>, vector<128x128xbf16>,
      %cst_14 = arith.constant dense<0.000000e+00> : vector<128xf32>
      %15 = vector.multi_reduction <add>, %12, %cst_14 [0] : vector<128x128xf32> to vector<128xf32>
      %16 = vector.shape_cast %15 : vector<128xf32> to vector<1x128xf32>
      %17 = vector.shape_cast %16 : vector<1x128xf32> to vector<1x1x128xf32>
      %c0_15 = arith.constant 0 : index
      %c0_16 = arith.constant 0 : index
      %c0_17 = arith.constant 0 : index
      %18 = vector.load %arg6[%c0_15, %c0_16, %c0_17] : memref<1x1x128xf32, #tpu.memory_space<vmem>>, vector<1x1x128xf32>
      tpu.vector_store %arg6[%c0_15, %c0_16, %c0_17], %17 {strides = array<i32>} : memref<1x1x128xf32, #tpu.memory_space<vmem>>, vector<1x1x128xf32>,
      %19 = arith.mulf %12, %12 : vector<128x128xf32>
      %cst_18 = arith.constant dense<0.000000e+00> : vector<128xf32>
      %20 = vector.multi_reduction <add>, %19, %cst_18 [0] : vector<128x128xf32> to vector<128xf32>
      %21 = vector.shape_cast %20 : vector<128xf32> to vector<1x128xf32>
      %22 = vector.shape_cast %21 : vector<1x128xf32> to vector<1x1x128xf32>
      %c0_19 = arith.constant 0 : index
      %c0_20 = arith.constant 0 : index
      %c0_21 = arith.constant 0 : index
      %23 = vector.load %arg7[%c0_19, %c0_20, %c0_21] : memref<1x1x128xf32, #tpu.memory_space<vmem>>, vector<1x1x128xf32>
      tpu.vector_store %arg7[%c0_19, %c0_20, %c0_21], %22 {strides = array<i32>} : memref<1x1x128xf32, #tpu.memory_space<vmem>>, vector<1x1x128xf32>,
    } else {
    }
    return
  }
  func.func @transform_0(%arg0: i32, %arg1: i32, %arg2: i32) -> (i32, i32) {
    %c0_i32 = arith.constant 0 : i32
    return %arg1, %arg2 : i32, i32
  }
  func.func @transform_1(%arg0: i32, %arg1: i32, %arg2: i32) -> (i32, i32) {
    %c0_i32 = arith.constant 0 : i32
    return %arg2, %arg0 : i32, i32
  }
  func.func @transform_2(%arg0: i32, %arg1: i32, %arg2: i32) -> (i32, i32) {
    %c0_i32 = arith.constant 0 : i32
    return %arg1, %arg0 : i32, i32
  }
  func.func @transform_3(%arg0: i32, %arg1: i32, %arg2: i32) -> (i32, i32, i32) {
    %c0_i32 = arith.constant 0 : i32
    %c0_i32_0 = arith.constant 0 : i32
    return %arg1, %c0_i32, %arg0 : i32, i32, i32
  }
  func.func @transform_4(%arg0: i32, %arg1: i32, %arg2: i32) -> (i32, i32, i32) {
    %c0_i32 = arith.constant 0 : i32
    %c0_i32_0 = arith.constant 0 : i32
    return %arg1, %c0_i32, %arg0 : i32, i32, i32
  }
}

module attributes {stable_mosaic.version = 11 : i64} {
  func.func @_conv_bn_stats_kernel(%arg0: i32, %arg1: i32, %arg2: i32, %arg3: memref<32x512xbf16, #tpu.memory_space<vmem>>, %arg4: memref<512x128xbf16, #tpu.memory_space<vmem>>, %arg5: memref<32x128xbf16, #tpu.memory_space<vmem>>, %arg6: memref<1x1x128xf32, #tpu.memory_space<vmem>>, %arg7: memref<1x1x128xf32, #tpu.memory_space<vmem>>, %arg8: memref<32x128xf32, #tpu.memory_space<vmem>>) attributes {dimension_semantics = [#tpu.dimension_semantics<parallel>, #tpu.dimension_semantics<parallel>, #tpu.dimension_semantics<arbitrary>], iteration_bounds = array<i64: 1, 1, 1>, scalar_prefetch = 0 : i64, scratch_operands = 1 : i64, tpu.core_type = #tpu.core_type<tc>, window_params = [{transform_indices = @transform_0, window_bounds = array<i64: 32, 512>}, {transform_indices = @transform_1, window_bounds = array<i64: 512, 128>}, {transform_indices = @transform_2, window_bounds = array<i64: 32, 128>}, {transform_indices = @transform_3, window_bounds = array<i64: 1, 1, 128>}, {transform_indices = @transform_4, window_bounds = array<i64: 1, 1, 128>}]} {
    %c0_i32 = arith.constant 0 : i32
    %0 = arith.cmpi eq, %arg2, %c0_i32 : i32
    %1 = arith.extui %0 : i1 to i32
    %c0_i32_0 = arith.constant 0 : i32
    %2 = arith.cmpi ne, %1, %c0_i32_0 : i32
    scf.if %2 {
      %cst_10 = arith.constant 0.000000e+00 : f32
      %12 = vector.broadcast %cst_10 : f32 to vector<32x128xf32>
      %c0_11 = arith.constant 0 : index
      %c0_12 = arith.constant 0 : index
      %13 = vector.load %arg8[%c0_11, %c0_12] : memref<32x128xf32, #tpu.memory_space<vmem>>, vector<32x128xf32>
      tpu.vector_store %arg8[%c0_11, %c0_12], %12 {strides = array<i32>} : memref<32x128xf32, #tpu.memory_space<vmem>>, vector<32x128xf32>,
    } else {
    }
    %c0 = arith.constant 0 : index
    %c0_1 = arith.constant 0 : index
    %3 = vector.load %arg8[%c0, %c0_1] : memref<32x128xf32, #tpu.memory_space<vmem>>, vector<32x128xf32>
    %c0_2 = arith.constant 0 : index
    %c0_3 = arith.constant 0 : index
    %4 = vector.load %arg3[%c0_2, %c0_3] : memref<32x512xbf16, #tpu.memory_space<vmem>>, vector<32x512xbf16>
    %c0_4 = arith.constant 0 : index
    %c0_5 = arith.constant 0 : index
    %5 = vector.load %arg4[%c0_4, %c0_5] : memref<512x128xbf16, #tpu.memory_space<vmem>>, vector<512x128xbf16>
    %cst = arith.constant dense<0.000000e+00> : vector<32x128xf32>
    %6 = tpu.matmul %4, %5, %cst {dimension_numbers = #tpu.dot_dimension_numbers<[1], [0], [0], [1], [0, 0, 1, 1], [], []>} : vector<32x512xbf16>, vector<512x128xbf16>, vector<32x128xf32> -> vector<32x128xf32>
    %7 = arith.addf %3, %6 : vector<32x128xf32>
    %c0_6 = arith.constant 0 : index
    %c0_7 = arith.constant 0 : index
    %8 = vector.load %arg8[%c0_6, %c0_7] : memref<32x128xf32, #tpu.memory_space<vmem>>, vector<32x128xf32>
    tpu.vector_store %arg8[%c0_6, %c0_7], %7 {strides = array<i32>} : memref<32x128xf32, #tpu.memory_space<vmem>>, vector<32x128xf32>,
    %c0_i32_8 = arith.constant 0 : i32
    %9 = arith.cmpi eq, %arg2, %c0_i32_8 : i32
    %10 = arith.extui %9 : i1 to i32
    %c0_i32_9 = arith.constant 0 : i32
    %11 = arith.cmpi ne, %10, %c0_i32_9 : i32
    scf.if %11 {
      %c0_10 = arith.constant 0 : index
      %c0_11 = arith.constant 0 : index
      %12 = vector.load %arg8[%c0_10, %c0_11] : memref<32x128xf32, #tpu.memory_space<vmem>>, vector<32x128xf32>
      %13 = arith.truncf %12 : vector<32x128xf32> to vector<32x128xbf16>
      %c0_12 = arith.constant 0 : index
      %c0_13 = arith.constant 0 : index
      %14 = vector.load %arg5[%c0_12, %c0_13] : memref<32x128xbf16, #tpu.memory_space<vmem>>, vector<32x128xbf16>
      tpu.vector_store %arg5[%c0_12, %c0_13], %13 {strides = array<i32>} : memref<32x128xbf16, #tpu.memory_space<vmem>>, vector<32x128xbf16>,
      %cst_14 = arith.constant dense<0.000000e+00> : vector<128xf32>
      %15 = vector.multi_reduction <add>, %12, %cst_14 [0] : vector<32x128xf32> to vector<128xf32>
      %16 = vector.shape_cast %15 : vector<128xf32> to vector<1x128xf32>
      %17 = vector.shape_cast %16 : vector<1x128xf32> to vector<1x1x128xf32>
      %c0_15 = arith.constant 0 : index
      %c0_16 = arith.constant 0 : index
      %c0_17 = arith.constant 0 : index
      %18 = vector.load %arg6[%c0_15, %c0_16, %c0_17] : memref<1x1x128xf32, #tpu.memory_space<vmem>>, vector<1x1x128xf32>
      tpu.vector_store %arg6[%c0_15, %c0_16, %c0_17], %17 {strides = array<i32>} : memref<1x1x128xf32, #tpu.memory_space<vmem>>, vector<1x1x128xf32>,
      %19 = arith.mulf %12, %12 : vector<32x128xf32>
      %cst_18 = arith.constant dense<0.000000e+00> : vector<128xf32>
      %20 = vector.multi_reduction <add>, %19, %cst_18 [0] : vector<32x128xf32> to vector<128xf32>
      %21 = vector.shape_cast %20 : vector<128xf32> to vector<1x128xf32>
      %22 = vector.shape_cast %21 : vector<1x128xf32> to vector<1x1x128xf32>
      %c0_19 = arith.constant 0 : index
      %c0_20 = arith.constant 0 : index
      %c0_21 = arith.constant 0 : index
      %23 = vector.load %arg7[%c0_19, %c0_20, %c0_21] : memref<1x1x128xf32, #tpu.memory_space<vmem>>, vector<1x1x128xf32>
      tpu.vector_store %arg7[%c0_19, %c0_20, %c0_21], %22 {strides = array<i32>} : memref<1x1x128xf32, #tpu.memory_space<vmem>>, vector<1x1x128xf32>,
    } else {
    }
    return
  }
  func.func @transform_0(%arg0: i32, %arg1: i32, %arg2: i32) -> (i32, i32) {
    %c0_i32 = arith.constant 0 : i32
    return %arg1, %arg2 : i32, i32
  }
  func.func @transform_1(%arg0: i32, %arg1: i32, %arg2: i32) -> (i32, i32) {
    %c0_i32 = arith.constant 0 : i32
    return %arg2, %arg0 : i32, i32
  }
  func.func @transform_2(%arg0: i32, %arg1: i32, %arg2: i32) -> (i32, i32) {
    %c0_i32 = arith.constant 0 : i32
    return %arg1, %arg0 : i32, i32
  }
  func.func @transform_3(%arg0: i32, %arg1: i32, %arg2: i32) -> (i32, i32, i32) {
    %c0_i32 = arith.constant 0 : i32
    %c0_i32_0 = arith.constant 0 : i32
    return %arg1, %c0_i32, %arg0 : i32, i32, i32
  }
  func.func @transform_4(%arg0: i32, %arg1: i32, %arg2: i32) -> (i32, i32, i32) {
    %c0_i32 = arith.constant 0 : i32
    %c0_i32_0 = arith.constant 0 : i32
    return %arg1, %c0_i32, %arg0 : i32, i32, i32
  }
}

module attributes {stable_mosaic.version = 11 : i64} {
  func.func @_conv_bn_stats_kernel(%arg0: i32, %arg1: i32, %arg2: i32, %arg3: memref<32x1024xbf16, #tpu.memory_space<vmem>>, %arg4: memref<1024x128xbf16, #tpu.memory_space<vmem>>, %arg5: memref<32x128xbf16, #tpu.memory_space<vmem>>, %arg6: memref<1x1x128xf32, #tpu.memory_space<vmem>>, %arg7: memref<1x1x128xf32, #tpu.memory_space<vmem>>, %arg8: memref<32x128xf32, #tpu.memory_space<vmem>>) attributes {dimension_semantics = [#tpu.dimension_semantics<parallel>, #tpu.dimension_semantics<parallel>, #tpu.dimension_semantics<arbitrary>], iteration_bounds = array<i64: 1, 1, 1>, scalar_prefetch = 0 : i64, scratch_operands = 1 : i64, tpu.core_type = #tpu.core_type<tc>, window_params = [{transform_indices = @transform_0, window_bounds = array<i64: 32, 1024>}, {transform_indices = @transform_1, window_bounds = array<i64: 1024, 128>}, {transform_indices = @transform_2, window_bounds = array<i64: 32, 128>}, {transform_indices = @transform_3, window_bounds = array<i64: 1, 1, 128>}, {transform_indices = @transform_4, window_bounds = array<i64: 1, 1, 128>}]} {
    %c0_i32 = arith.constant 0 : i32
    %0 = arith.cmpi eq, %arg2, %c0_i32 : i32
    %1 = arith.extui %0 : i1 to i32
    %c0_i32_0 = arith.constant 0 : i32
    %2 = arith.cmpi ne, %1, %c0_i32_0 : i32
    scf.if %2 {
      %cst_10 = arith.constant 0.000000e+00 : f32
      %12 = vector.broadcast %cst_10 : f32 to vector<32x128xf32>
      %c0_11 = arith.constant 0 : index
      %c0_12 = arith.constant 0 : index
      %13 = vector.load %arg8[%c0_11, %c0_12] : memref<32x128xf32, #tpu.memory_space<vmem>>, vector<32x128xf32>
      tpu.vector_store %arg8[%c0_11, %c0_12], %12 {strides = array<i32>} : memref<32x128xf32, #tpu.memory_space<vmem>>, vector<32x128xf32>,
    } else {
    }
    %c0 = arith.constant 0 : index
    %c0_1 = arith.constant 0 : index
    %3 = vector.load %arg8[%c0, %c0_1] : memref<32x128xf32, #tpu.memory_space<vmem>>, vector<32x128xf32>
    %c0_2 = arith.constant 0 : index
    %c0_3 = arith.constant 0 : index
    %4 = vector.load %arg3[%c0_2, %c0_3] : memref<32x1024xbf16, #tpu.memory_space<vmem>>, vector<32x1024xbf16>
    %c0_4 = arith.constant 0 : index
    %c0_5 = arith.constant 0 : index
    %5 = vector.load %arg4[%c0_4, %c0_5] : memref<1024x128xbf16, #tpu.memory_space<vmem>>, vector<1024x128xbf16>
    %cst = arith.constant dense<0.000000e+00> : vector<32x128xf32>
    %6 = tpu.matmul %4, %5, %cst {dimension_numbers = #tpu.dot_dimension_numbers<[1], [0], [0], [1], [0, 0, 1, 1], [], []>} : vector<32x1024xbf16>, vector<1024x128xbf16>, vector<32x128xf32> -> vector<32x128xf32>
    %7 = arith.addf %3, %6 : vector<32x128xf32>
    %c0_6 = arith.constant 0 : index
    %c0_7 = arith.constant 0 : index
    %8 = vector.load %arg8[%c0_6, %c0_7] : memref<32x128xf32, #tpu.memory_space<vmem>>, vector<32x128xf32>
    tpu.vector_store %arg8[%c0_6, %c0_7], %7 {strides = array<i32>} : memref<32x128xf32, #tpu.memory_space<vmem>>, vector<32x128xf32>,
    %c0_i32_8 = arith.constant 0 : i32
    %9 = arith.cmpi eq, %arg2, %c0_i32_8 : i32
    %10 = arith.extui %9 : i1 to i32
    %c0_i32_9 = arith.constant 0 : i32
    %11 = arith.cmpi ne, %10, %c0_i32_9 : i32
    scf.if %11 {
      %c0_10 = arith.constant 0 : index
      %c0_11 = arith.constant 0 : index
      %12 = vector.load %arg8[%c0_10, %c0_11] : memref<32x128xf32, #tpu.memory_space<vmem>>, vector<32x128xf32>
      %13 = arith.truncf %12 : vector<32x128xf32> to vector<32x128xbf16>
      %c0_12 = arith.constant 0 : index
      %c0_13 = arith.constant 0 : index
      %14 = vector.load %arg5[%c0_12, %c0_13] : memref<32x128xbf16, #tpu.memory_space<vmem>>, vector<32x128xbf16>
      tpu.vector_store %arg5[%c0_12, %c0_13], %13 {strides = array<i32>} : memref<32x128xbf16, #tpu.memory_space<vmem>>, vector<32x128xbf16>,
      %cst_14 = arith.constant dense<0.000000e+00> : vector<128xf32>
      %15 = vector.multi_reduction <add>, %12, %cst_14 [0] : vector<32x128xf32> to vector<128xf32>
      %16 = vector.shape_cast %15 : vector<128xf32> to vector<1x128xf32>
      %17 = vector.shape_cast %16 : vector<1x128xf32> to vector<1x1x128xf32>
      %c0_15 = arith.constant 0 : index
      %c0_16 = arith.constant 0 : index
      %c0_17 = arith.constant 0 : index
      %18 = vector.load %arg6[%c0_15, %c0_16, %c0_17] : memref<1x1x128xf32, #tpu.memory_space<vmem>>, vector<1x1x128xf32>
      tpu.vector_store %arg6[%c0_15, %c0_16, %c0_17], %17 {strides = array<i32>} : memref<1x1x128xf32, #tpu.memory_space<vmem>>, vector<1x1x128xf32>,
      %19 = arith.mulf %12, %12 : vector<32x128xf32>
      %cst_18 = arith.constant dense<0.000000e+00> : vector<128xf32>
      %20 = vector.multi_reduction <add>, %19, %cst_18 [0] : vector<32x128xf32> to vector<128xf32>
      %21 = vector.shape_cast %20 : vector<128xf32> to vector<1x128xf32>
      %22 = vector.shape_cast %21 : vector<1x128xf32> to vector<1x1x128xf32>
      %c0_19 = arith.constant 0 : index
      %c0_20 = arith.constant 0 : index
      %c0_21 = arith.constant 0 : index
      %23 = vector.load %arg7[%c0_19, %c0_20, %c0_21] : memref<1x1x128xf32, #tpu.memory_space<vmem>>, vector<1x1x128xf32>
      tpu.vector_store %arg7[%c0_19, %c0_20, %c0_21], %22 {strides = array<i32>} : memref<1x1x128xf32, #tpu.memory_space<vmem>>, vector<1x1x128xf32>,
    } else {
    }
    return
  }
  func.func @transform_0(%arg0: i32, %arg1: i32, %arg2: i32) -> (i32, i32) {
    %c0_i32 = arith.constant 0 : i32
    return %arg1, %arg2 : i32, i32
  }
  func.func @transform_1(%arg0: i32, %arg1: i32, %arg2: i32) -> (i32, i32) {
    %c0_i32 = arith.constant 0 : i32
    return %arg2, %arg0 : i32, i32
  }
  func.func @transform_2(%arg0: i32, %arg1: i32, %arg2: i32) -> (i32, i32) {
    %c0_i32 = arith.constant 0 : i32
    return %arg1, %arg0 : i32, i32
  }
  func.func @transform_3(%arg0: i32, %arg1: i32, %arg2: i32) -> (i32, i32, i32) {
    %c0_i32 = arith.constant 0 : i32
    %c0_i32_0 = arith.constant 0 : i32
    return %arg1, %c0_i32, %arg0 : i32, i32, i32
  }
  func.func @transform_4(%arg0: i32, %arg1: i32, %arg2: i32) -> (i32, i32, i32) {
    %c0_i32 = arith.constant 0 : i32
    %c0_i32_0 = arith.constant 0 : i32
    return %arg1, %c0_i32, %arg0 : i32, i32, i32
  }
}

module attributes {stable_mosaic.version = 11 : i64} {
  func.func @_conv_bias_act_kernel(%arg0: i32, %arg1: i32, %arg2: i32, %arg3: memref<16x1024xbf16, #tpu.memory_space<vmem>>, %arg4: memref<1024x128xbf16, #tpu.memory_space<vmem>>, %arg5: memref<1x128xf32, #tpu.memory_space<vmem>>, %arg6: memref<16x128xf32, #tpu.memory_space<vmem>>, %arg7: memref<16x128xf32, #tpu.memory_space<vmem>>) attributes {dimension_semantics = [#tpu.dimension_semantics<parallel>, #tpu.dimension_semantics<parallel>, #tpu.dimension_semantics<arbitrary>], iteration_bounds = array<i64: 1, 1, 2>, scalar_prefetch = 0 : i64, scratch_operands = 1 : i64, tpu.core_type = #tpu.core_type<tc>, window_params = [{transform_indices = @transform_0, window_bounds = array<i64: 16, 1024>}, {transform_indices = @transform_1, window_bounds = array<i64: 1024, 128>}, {transform_indices = @transform_2, window_bounds = array<i64: 1, 128>}, {transform_indices = @transform_3, window_bounds = array<i64: 16, 128>}]} {
    %c0_i32 = arith.constant 0 : i32
    %0 = arith.cmpi eq, %arg2, %c0_i32 : i32
    %1 = arith.extui %0 : i1 to i32
    %c0_i32_0 = arith.constant 0 : i32
    %2 = arith.cmpi ne, %1, %c0_i32_0 : i32
    scf.if %2 {
      %cst_9 = arith.constant 0.000000e+00 : f32
      %12 = vector.broadcast %cst_9 : f32 to vector<16x128xf32>
      %c0_10 = arith.constant 0 : index
      %c0_11 = arith.constant 0 : index
      %13 = vector.load %arg7[%c0_10, %c0_11] : memref<16x128xf32, #tpu.memory_space<vmem>>, vector<16x128xf32>
      tpu.vector_store %arg7[%c0_10, %c0_11], %12 {strides = array<i32>} : memref<16x128xf32, #tpu.memory_space<vmem>>, vector<16x128xf32>,
    } else {
    }
    %c0 = arith.constant 0 : index
    %c0_1 = arith.constant 0 : index
    %3 = vector.load %arg7[%c0, %c0_1] : memref<16x128xf32, #tpu.memory_space<vmem>>, vector<16x128xf32>
    %c0_2 = arith.constant 0 : index
    %c0_3 = arith.constant 0 : index
    %4 = vector.load %arg3[%c0_2, %c0_3] : memref<16x1024xbf16, #tpu.memory_space<vmem>>, vector<16x1024xbf16>
    %c0_4 = arith.constant 0 : index
    %c0_5 = arith.constant 0 : index
    %5 = vector.load %arg4[%c0_4, %c0_5] : memref<1024x128xbf16, #tpu.memory_space<vmem>>, vector<1024x128xbf16>
    %cst = arith.constant dense<0.000000e+00> : vector<16x128xf32>
    %6 = tpu.matmul %4, %5, %cst {dimension_numbers = #tpu.dot_dimension_numbers<[1], [0], [0], [1], [0, 0, 1, 1], [], []>} : vector<16x1024xbf16>, vector<1024x128xbf16>, vector<16x128xf32> -> vector<16x128xf32>
    %7 = arith.addf %3, %6 : vector<16x128xf32>
    %c0_6 = arith.constant 0 : index
    %c0_7 = arith.constant 0 : index
    %8 = vector.load %arg7[%c0_6, %c0_7] : memref<16x128xf32, #tpu.memory_space<vmem>>, vector<16x128xf32>
    tpu.vector_store %arg7[%c0_6, %c0_7], %7 {strides = array<i32>} : memref<16x128xf32, #tpu.memory_space<vmem>>, vector<16x128xf32>,
    %c1_i32 = arith.constant 1 : i32
    %9 = arith.cmpi eq, %arg2, %c1_i32 : i32
    %10 = arith.extui %9 : i1 to i32
    %c0_i32_8 = arith.constant 0 : i32
    %11 = arith.cmpi ne, %10, %c0_i32_8 : i32
    scf.if %11 {
      %c0_9 = arith.constant 0 : index
      %c0_10 = arith.constant 0 : index
      %12 = vector.load %arg7[%c0_9, %c0_10] : memref<16x128xf32, #tpu.memory_space<vmem>>, vector<16x128xf32>
      %c0_11 = arith.constant 0 : index
      %c0_12 = arith.constant 0 : index
      %13 = vector.load %arg5[%c0_11, %c0_12] : memref<1x128xf32, #tpu.memory_space<vmem>>, vector<1x128xf32>
      %14 = vector.broadcast %13 : vector<1x128xf32> to vector<16x128xf32>
      %15 = arith.addf %12, %14 : vector<16x128xf32>
      %c0_13 = arith.constant 0 : index
      %c0_14 = arith.constant 0 : index
      %16 = vector.load %arg6[%c0_13, %c0_14] : memref<16x128xf32, #tpu.memory_space<vmem>>, vector<16x128xf32>
      tpu.vector_store %arg6[%c0_13, %c0_14], %15 {strides = array<i32>} : memref<16x128xf32, #tpu.memory_space<vmem>>, vector<16x128xf32>,
    } else {
    }
    return
  }
  func.func @transform_0(%arg0: i32, %arg1: i32, %arg2: i32) -> (i32, i32) {
    %c0_i32 = arith.constant 0 : i32
    return %arg1, %arg2 : i32, i32
  }
  func.func @transform_1(%arg0: i32, %arg1: i32, %arg2: i32) -> (i32, i32) {
    %c0_i32 = arith.constant 0 : i32
    return %arg2, %arg0 : i32, i32
  }
  func.func @transform_2(%arg0: i32, %arg1: i32, %arg2: i32) -> (i32, i32) {
    %c0_i32 = arith.constant 0 : i32
    %c0_i32_0 = arith.constant 0 : i32
    return %c0_i32, %arg0 : i32, i32
  }
  func.func @transform_3(%arg0: i32, %arg1: i32, %arg2: i32) -> (i32, i32) {
    %c0_i32 = arith.constant 0 : i32
    return %arg1, %arg0 : i32, i32
  }
}

</mosaic_0001>

<llo_original>
// kernel: _lambda_.5
$region0: #{_lambda_.5}
  #allocation0 [shape = 'u32[]', space=smem, size = 0x4, offset = 0x4, fixed_abs, tag = 'smem constant byte address 0x4 - core index']
  #allocation1 [shape = 'u32[144,128]{1,0:T(1,128)}', space=vmem, size = 0x12000, scoped, tag = 'internal scratch']
  #allocation2 [shape = 'f32[512,128]{1,0:T(8,128)}', space=vmem, size = 0x40000, scoped, tag = 'scratch operand']
  %s0 = inlined_call_operand.vmem [shape: bf16[512,128], index: 0, kind: input, shape index: {}]
  %s1 = inlined_call_operand.vmem [shape: bf16[128,128], index: 1, kind: input, shape index: {}]
  %s2 = inlined_call_operand.vmem [shape: f32[1,128], index: 2, kind: input, shape index: {}]
  %s3 = inlined_call_operand.vmem [shape: bf16[512,128], index: 3, kind: output, shape index: {}]
  %s4 = sld [smem:[#allocation0]]
  $region30: #{_lambda_.5} parent=0
    _
  %s6 = ssub.s32 1, %s4
  %s7 = scalar_select 0, %s6, %s4
  // Predicated region
  $region2: #{_lambda_.5} parent=0 // pred_check
    _
  $region3: #{_lambda_.5} parent=0 // pred_check_branch
    %9 = sbr.rel (0) target = $region5
  $region4: #{_lambda_.5} parent=0 // pred_region
    _
  $region5: #{_lambda_.5} parent=0 // pred_fallthru
    _
  // Predicated region
  $region6: #{_lambda_.5} parent=0 // pred_check
    _
  $region7: #{_lambda_.5} parent=0 // pred_check_branch
    %11 = sbr.rel (0) target = $region9
  $region8: #{_lambda_.5} parent=0 // pred_region
    _
  $region9: #{_lambda_.5} parent=0 // pred_fallthru
    _
  // Predicated region
  $region10: #{_lambda_.5} parent=0 // pred_check
    _
  $region11: #{_lambda_.5} parent=0 // pred_check_branch
    %13 = sbr.rel (0) target = $region13
  $region12: #{_lambda_.5} parent=0 // pred_region
    _
  $region13: #{_lambda_.5} parent=0 // pred_fallthru
    _
  %p15 = scmp.eq.s32.totalorder 0, 0
  // Predicated region
  $region14: #{_lambda_.5} parent=0 // pred_check
    %p16 = pneg %p15
  $region15: #{_lambda_.5} parent=0 // pred_check_branch
    %18 = sbr.rel (%p16) target = $region17
  $region16: #{_lambda_.5} parent=0 // pred_region
    %19 = vst [vmem:[#allocation2] sm:$0xff] 0.0
    %20 = vst [vmem:[#allocation2 + $0x8] sm:$0xff] 0.0
    %21 = vst [vmem:[#allocation2 + $0x10] sm:$0xff] 0.0
    %22 = vst [vmem:[#allocation2 + $0x18] sm:$0xff] 0.0
    %23 = vst [vmem:[#allocation2 + $0x20] sm:$0xff] 0.0
    %24 = vst [vmem:[#allocation2 + $0x28] sm:$0xff] 0.0
    %25 = vst [vmem:[#allocation2 + $0x30] sm:$0xff] 0.0
    %26 = vst [vmem:[#allocation2 + $0x38] sm:$0xff] 0.0
    %27 = vst [vmem:[#allocation2 + $0x40] sm:$0xff] 0.0
    %28 = vst [vmem:[#allocation2 + $0x48] sm:$0xff] 0.0
    %29 = vst [vmem:[#allocation2 + $0x50] sm:$0xff] 0.0
    %30 = vst [vmem:[#allocation2 + $0x58] sm:$0xff] 0.0
    %31 = vst [vmem:[#allocation2 + $0x60] sm:$0xff] 0.0
    %32 = vst [vmem:[#allocation2 + $0x68] sm:$0xff] 0.0
    %33 = vst [vmem:[#allocation2 + $0x70] sm:$0xff] 0.0
    %34 = vst [vmem:[#allocation2 + $0x78] sm:$0xff] 0.0
    %35 = vst [vmem:[#allocation2 + $0x80] sm:$0xff] 0.0
    %36 = vst [vmem:[#allocation2 + $0x88] sm:$0xff] 0.0
    %37 = vst [vmem:[#allocation2 + $0x90] sm:$0xff] 0.0
    %38 = vst [vmem:[#allocation2 + $0x98] sm:$0xff] 0.0
    %39 = vst [vmem:[#allocation2 + $0xa0] sm:$0xff] 0.0
    %40 = vst [vmem:[#allocation2 + $0xa8] sm:$0xff] 0.0
    %41 = vst [vmem:[#allocation2 + $0xb0] sm:$0xff] 0.0
    %42 = vst [vmem:[#allocation2 + $0xb8] sm:$0xff] 0.0
    %43 = vst [vmem:[#allocation2 + $0xc0] sm:$0xff] 0.0
    %44 = vst [vmem:[#allocation2 + $0xc8] sm:$0xff] 0.0
    %45 = vst [vmem:[#allocation2 + $0xd0] sm:$0xff] 0.0
    %46 = vst [vmem:[#allocation2 + $0xd8] sm:$0xff] 0.0
    %47 = vst [vmem:[#allocation2 + $0xe0] sm:$0xff] 0.0
    %48 = vst [vmem:[#allocation2 + $0xe8] sm:$0xff] 0.0
    %49 = vst [vmem:[#allocation2 + $0xf0] sm:$0xff] 0.0
    %50 = vst [vmem:[#allocation2 + $0xf8] sm:$0xff] 0.0
    %51 = vst [vmem:[#allocation2 + $0x100] sm:$0xff] 0.0
    %52 = vst [vmem:[#allocation2 + $0x108] sm:$0xff] 0.0
    %53 = vst [vmem:[#allocation2 + $0x110] sm:$0xff] 0.0
    %54 = vst [vmem:[#allocation2 + $0x118] sm:$0xff] 0.0
    %55 = vst [vmem:[#allocation2 + $0x120] sm:$0xff] 0.0
    %56 = vst [vmem:[#allocation2 + $0x128] sm:$0xff] 0.0
    %57 = vst [vmem:[#allocation2 + $0x130] sm:$0xff] 0.0
    %58 = vst [vmem:[#allocation2 + $0x138] sm:$0xff] 0.0
    %59 = vst [vmem:[#allocation2 + $0x140] sm:$0xff] 0.0
    %60 = vst [vmem:[#allocation2 + $0x148] sm:$0xff] 0.0
    %61 = vst [vmem:[#allocation2 + $0x150] sm:$0xff] 0.0
    %62 = vst [vmem:[#allocation2 + $0x158] sm:$0xff] 0.0
    %63 = vst [vmem:[#allocation2 + $0x160] sm:$0xff] 0.0
    %64 = vst [vmem:[#allocation2 + $0x168] sm:$0xff] 0.0
    %65 = vst [vmem:[#allocation2 + $0x170] sm:$0xff] 0.0
    %66 = vst [vmem:[#allocation2 + $0x178] sm:$0xff] 0.0
    %67 = vst [vmem:[#allocation2 + $0x180] sm:$0xff] 0.0
    %68 = vst [vmem:[#allocation2 + $0x188] sm:$0xff] 0.0
    %69 = vst [vmem:[#allocation2 + $0x190] sm:$0xff] 0.0
    %70 = vst [vmem:[#allocation2 + $0x198] sm:$0xff] 0.0
    %71 = vst [vmem:[#allocation2 + $0x1a0] sm:$0xff] 0.0
    %72 = vst [vmem:[#allocation2 + $0x1a8] sm:$0xff] 0.0
    %73 = vst [vmem:[#allocation2 + $0x1b0] sm:$0xff] 0.0
    %74 = vst [vmem:[#allocation2 + $0x1b8] sm:$0xff] 0.0
    %75 = vst [vmem:[#allocation2 + $0x1c0] sm:$0xff] 0.0
    %76 = vst [vmem:[#allocation2 + $0x1c8] sm:$0xff] 0.0
    %77 = vst [vmem:[#allocation2 + $0x1d0] sm:$0xff] 0.0
    %78 = vst [vmem:[#allocation2 + $0x1d8] sm:$0xff] 0.0
    %79 = vst [vmem:[#allocation2 + $0x1e0] sm:$0xff] 0.0
    %80 = vst [vmem:[#allocation2 + $0x1e8] sm:$0xff] 0.0
    %81 = vst [vmem:[#allocation2 + $0x1f0] sm:$0xff] 0.0
    %82 = vst [vmem:[#allocation2 + $0x1f8] sm:$0xff] 0.0
  $region17: #{_lambda_.5} parent=0 // pred_fallthru
    _
  %v83 = vld [vmem:[#allocation2] sm:$0xff]
  %v84 = vld [vmem:[#allocation2 + $0x8] sm:$0xff]
  %v85 = vld [vmem:[#allocation2 + $0x10] sm:$0xff]
  %v86 = vld [vmem:[#allocation2 + $0x18] sm:$0xff]
  %v87 = vld [vmem:[#allocation2 + $0x20] sm:$0xff]
  %v88 = vld [vmem:[#allocation2 + $0x28] sm:$0xff]
  %v89 = vld [vmem:[#allocation2 + $0x30] sm:$0xff]
  %v90 = vld [vmem:[#allocation2 + $0x38] sm:$0xff]
  %v91 = vld [vmem:[#allocation2 + $0x40] sm:$0xff]
  %v92 = vld [vmem:[#allocation2 + $0x48] sm:$0xff]
  %v93 = vld [vmem:[#allocation2 + $0x50] sm:$0xff]
  %v94 = vld [vmem:[#allocation2 + $0x58] sm:$0xff]
  %v95 = vld [vmem:[#allocation2 + $0x60] sm:$0xff]
  %v96 = vld [vmem:[#allocation2 + $0x68] sm:$0xff]
  %v97 = vld [vmem:[#allocation2 + $0x70] sm:$0xff]
  %v98 = vld [vmem:[#allocation2 + $0x78] sm:$0xff]
  %v99 = vld [vmem:[#allocation2 + $0x80] sm:$0xff]
  %v100 = vld [vmem:[#allocation2 + $0x88] sm:$0xff]
  %v101 = vld [vmem:[#allocation2 + $0x90] sm:$0xff]
  %v102 = vld [vmem:[#allocation2 + $0x98] sm:$0xff]
  %v103 = vld [vmem:[#allocation2 + $0xa0] sm:$0xff]
  %v104 = vld [vmem:[#allocation2 + $0xa8] sm:$0xff]
  %v105 = vld [vmem:[#allocation2 + $0xb0] sm:$0xff]
  %v106 = vld [vmem:[#allocation2 + $0xb8] sm:$0xff]
  %v107 = vld [vmem:[#allocation2 + $0xc0] sm:$0xff]
  %v108 = vld [vmem:[#allocation2 + $0xc8] sm:$0xff]
  %v109 = vld [vmem:[#allocation2 + $0xd0] sm:$0xff]
  %v110 = vld [vmem:[#allocation2 + $0xd8] sm:$0xff]
  %v111 = vld [vmem:[#allocation2 + $0xe0] sm:$0xff]
  %v112 = vld [vmem:[#allocation2 + $0xe8] sm:$0xff]
  %v113 = vld [vmem:[#allocation2 + $0xf0] sm:$0xff]
  %v114 = vld [vmem:[#allocation2 + $0xf8] sm:$0xff]
  %v115 = vld [vmem:[#allocation2 + $0x100] sm:$0xff]
  %v116 = vld [vmem:[#allocation2 + $0x108] sm:$0xff]
  %v117 = vld [vmem:[#allocation2 + $0x110] sm:$0xff]
  %v118 = vld [vmem:[#allocation2 + $0x118] sm:$0xff]
  %v119 = vld [vmem:[#allocation2 + $0x120] sm:$0xff]
  %v120 = vld [vmem:[#allocation2 + $0x128] sm:$0xff]
  %v121 = vld [vmem:[#allocation2 + $0x130] sm:$0xff]
  %v122 = vld [vmem:[#allocation2 + $0x138] sm:$0xff]
  %v123 = vld [vmem:[#allocation2 + $0x140] sm:$0xff]
  %v124 = vld [vmem:[#allocation2 + $0x148] sm:$0xff]
  %v125 = vld [vmem:[#allocation2 + $0x150] sm:$0xff]
  %v126 = vld [vmem:[#allocation2 + $0x158] sm:$0xff]
  %v127 = vld [vmem:[#allocation2 + $0x160] sm:$0xff]
  %v128 = vld [vmem:[#allocation2 + $0x168] sm:$0xff]
  %v129 = vld [vmem:[#allocation2 + $0x170] sm:$0xff]
  %v130 = vld [vmem:[#allocation2 + $0x178] sm:$0xff]
  %v131 = vld [vmem:[#allocation2 + $0x180] sm:$0xff]
  %v132 = vld [vmem:[#allocation2 + $0x188] sm:$0xff]
  %v133 = vld [vmem:[#allocation2 + $0x190] sm:$0xff]
  %v134 = vld [vmem:[#allocation2 + $0x198] sm:$0xff]
  %v135 = vld [vmem:[#allocation2 + $0x1a0] sm:$0xff]
  %v136 = vld [vmem:[#allocation2 + $0x1a8] sm:$0xff]
  %v137 = vld [vmem:[#allocation2 + $0x1b0] sm:$0xff]
  %v138 = vld [vmem:[#allocation2 + $0x1b8] sm:$0xff]
  %v139 = vld [vmem:[#allocation2 + $0x1c0] sm:$0xff]
  %v140 = vld [vmem:[#allocation2 + $0x1c8] sm:$0xff]
  %v141 = vld [vmem:[#allocation2 + $0x1d0] sm:$0xff]
  %v142 = vld [vmem:[#allocation2 + $0x1d8] sm:$0xff]
  %v143 = vld [vmem:[#allocation2 + $0x1e0] sm:$0xff]
  %v144 = vld [vmem:[#allocation2 + $0x1e8] sm:$0xff]
  %v145 = vld [vmem:[#allocation2 + $0x1f0] sm:$0xff]
  %v146 = vld [vmem:[#allocation2 + $0x1f8] sm:$0xff]
  %v147 = vld [vmem:[%s0] sm:$0xf]
  %v148 = vld [vmem:[%s0 + $0x4] sm:$0xf]
  %v149 = vld [vmem:[%s0 + $0x8] sm:$0xf]
  %v150 = vld [vmem:[%s0 + $0xc] sm:$0xf]
  %v151 = vld [vmem:[%s0 + $0x10] sm:$0xf]
  %v152 = vld [vmem:[%s0 + $0x14] sm:$0xf]
  %v153 = vld [vmem:[%s0 + $0x18] sm:$0xf]
  %v154 = vld [vmem:[%s0 + $0x1c] sm:$0xf]
  %v155 = vld [vmem:[%s0 + $0x20] sm:$0xf]
  %v156 = vld [vmem:[%s0 + $0x24] sm:$0xf]
  %v157 = vld [vmem:[%s0 + $0x28] sm:$0xf]
  %v158 = vld [vmem:[%s0 + $0x2c] sm:$0xf]
  %v159 = vld [vmem:[%s0 + $0x30] sm:$0xf]
  %v160 = vld [vmem:[%s0 + $0x34] sm:$0xf]
  %v161 = vld [vmem:[%s0 + $0x38] sm:$0xf]
  %v162 = vld [vmem:[%s0 + $0x3c] sm:$0xf]
  %v163 = vld [vmem:[%s0 + $0x40] sm:$0xf]
  %v164 = vld [vmem:[%s0 + $0x44] sm:$0xf]
  %v165 = vld [vmem:[%s0 + $0x48] sm:$0xf]
  %v166 = vld [vmem:[%s0 + $0x4c] sm:$0xf]
  %v167 = vld [vmem:[%s0 + $0x50] sm:$0xf]
  %v168 = vld [vmem:[%s0 + $0x54] sm:$0xf]
  %v169 = vld [vmem:[%s0 + $0x58] sm:$0xf]
  %v170 = vld [vmem:[%s0 + $0x5c] sm:$0xf]
  %v171 = vld [vmem:[%s0 + $0x60] sm:$0xf]
  %v172 = vld [vmem:[%s0 + $0x64] sm:$0xf]
  %v173 = vld [vmem:[%s0 + $0x68] sm:$0xf]
  %v174 = vld [vmem:[%s0 + $0x6c] sm:$0xf]
  %v175 = vld [vmem:[%s0 + $0x70] sm:$0xf]
  %v176 = vld [vmem:[%s0 + $0x74] sm:$0xf]
  %v177 = vld [vmem:[%s0 + $0x78] sm:$0xf]
  %v178 = vld [vmem:[%s0 + $0x7c] sm:$0xf]
  %v179 = vld [vmem:[%s0 + $0x80] sm:$0xf]
  %v180 = vld [vmem:[%s0 + $0x84] sm:$0xf]
  %v181 = vld [vmem:[%s0 + $0x88] sm:$0xf]
  %v182 = vld [vmem:[%s0 + $0x8c] sm:$0xf]
  %v183 = vld [vmem:[%s0 + $0x90] sm:$0xf]
  %v184 = vld [vmem:[%s0 + $0x94] sm:$0xf]
  %v185 = vld [vmem:[%s0 + $0x98] sm:$0xf]
  %v186 = vld [vmem:[%s0 + $0x9c] sm:$0xf]
  %v187 = vld [vmem:[%s0 + $0xa0] sm:$0xf]
  %v188 = vld [vmem:[%s0 + $0xa4] sm:$0xf]
  %v189 = vld [vmem:[%s0 + $0xa8] sm:$0xf]
  %v190 = vld [vmem:[%s0 + $0xac] sm:$0xf]
  %v191 = vld [vmem:[%s0 + $0xb0] sm:$0xf]
  %v192 = vld [vmem:[%s0 + $0xb4] sm:$0xf]
  %v193 = vld [vmem:[%s0 + $0xb8] sm:$0xf]
  %v194 = vld [vmem:[%s0 + $0xbc] sm:$0xf]
  %v195 = vld [vmem:[%s0 + $0xc0] sm:$0xf]
  %v196 = vld [vmem:[%s0 + $0xc4] sm:$0xf]
  %v197 = vld [vmem:[%s0 + $0xc8] sm:$0xf]
  %v198 = vld [vmem:[%s0 + $0xcc] sm:$0xf]
  %v199 = vld [vmem:[%s0 + $0xd0] sm:$0xf]
  %v200 = vld [vmem:[%s0 + $0xd4] sm:$0xf]
  %v201 = vld [vmem:[%s0 + $0xd8] sm:$0xf]
  %v202 = vld [vmem:[%s0 + $0xdc] sm:$0xf]
  %v203 = vld [vmem:[%s0 + $0xe0] sm:$0xf]
  %v204 = vld [vmem:[%s0 + $0xe4] sm:$0xf]
  %v205 = vld [vmem:[%s0 + $0xe8] sm:$0xf]
  %v206 = vld [vmem:[%s0 + $0xec] sm:$0xf]
  %v207 = vld [vmem:[%s0 + $0xf0] sm:$0xf]
  %v208 = vld [vmem:[%s0 + $0xf4] sm:$0xf]
  %v209 = vld [vmem:[%s0 + $0xf8] sm:$0xf]
  %v210 = vld [vmem:[%s0 + $0xfc] sm:$0xf]
  %v211 = vld [vmem:[%s1] sm:$0xf]
  %v212 = vld [vmem:[%s1 + $0x4] sm:$0xf]
  %v213 = vld [vmem:[%s1 + $0x8] sm:$0xf]
  %v214 = vld [vmem:[%s1 + $0xc] sm:$0xf]
  %v215 = vld [vmem:[%s1 + $0x10] sm:$0xf]
  %v216 = vld [vmem:[%s1 + $0x14] sm:$0xf]
  %v217 = vld [vmem:[%s1 + $0x18] sm:$0xf]
  %v218 = vld [vmem:[%s1 + $0x1c] sm:$0xf]
  %v219 = vld [vmem:[%s1 + $0x20] sm:$0xf]
  %v220 = vld [vmem:[%s1 + $0x24] sm:$0xf]
  %v221 = vld [vmem:[%s1 + $0x28] sm:$0xf]
  %v222 = vld [vmem:[%s1 + $0x2c] sm:$0xf]
  %v223 = vld [vmem:[%s1 + $0x30] sm:$0xf]
  %v224 = vld [vmem:[%s1 + $0x34] sm:$0xf]
  %v225 = vld [vmem:[%s1 + $0x38] sm:$0xf]
  %v226 = vld [vmem:[%s1 + $0x3c] sm:$0xf]
  %v291 = vunpack.c.l.b16 %v147
  %v292 = vunpack.c.l.b16 %v148
  %v293 = vunpack.c.l.b16 %v149
  %v294 = vunpack.c.l.b16 %v150
  %v295 = vunpack.c.l.b16 %v151
  %v296 = vunpack.c.l.b16 %v152
  %v297 = vunpack.c.l.b16 %v153
  %v298 = vunpack.c.l.b16 %v154
  %v299 = vunpack.c.l.b16 %v155
  %v300 = vunpack.c.l.b16 %v156
  %v301 = vunpack.c.l.b16 %v157
  %v302 = vunpack.c.l.b16 %v158
  %v303 = vunpack.c.l.b16 %v159
  %v304 = vunpack.c.l.b16 %v160
  %v305 = vunpack.c.l.b16 %v161
  %v306 = vunpack.c.l.b16 %v162
  %v307 = vunpack.c.l.b16 %v163
  %v308 = vunpack.c.l.b16 %v164
  %v309 = vunpack.c.l.b16 %v165
  %v310 = vunpack.c.l.b16 %v166
  %v311 = vunpack.c.l.b16 %v167
  %v312 = vunpack.c.l.b16 %v168
  %v313 = vunpack.c.l.b16 %v169
  %v314 = vunpack.c.l.b16 %v170
  %v315 = vunpack.c.l.b16 %v171
  %v316 = vunpack.c.l.b16 %v172
  %v317 = vunpack.c.l.b16 %v173
  %v318 = vunpack.c.l.b16 %v174
  %v319 = vunpack.c.l.b16 %v175
  %v320 = vunpack.c.l.b16 %v176
  %v321 = vunpack.c.l.b16 %v177
  %v322 = vunpack.c.l.b16 %v178
  %v323 = vunpack.c.l.b16 %v179
  %v324 = vunpack.c.l.b16 %v180
  %v325 = vunpack.c.l.b16 %v181
  %v326 = vunpack.c.l.b16 %v182
  %v327 = vunpack.c.l.b16 %v183
  %v328 = vunpack.c.l.b16 %v184
  %v329 = vunpack.c.l.b16 %v185
  %v330 = vunpack.c.l.b16 %v186
  %v331 = vunpack.c.l.b16 %v187
  %v332 = vunpack.c.l.b16 %v188
  %v333 = vunpack.c.l.b16 %v189
  %v334 = vunpack.c.l.b16 %v190
  %v335 = vunpack.c.l.b16 %v191
  %v336 = vunpack.c.l.b16 %v192
  %v337 = vunpack.c.l.b16 %v193
  %v338 = vunpack.c.l.b16 %v194
  %v339 = vunpack.c.l.b16 %v195
  %v340 = vunpack.c.l.b16 %v196
  %v341 = vunpack.c.l.b16 %v197
  %v342 = vunpack.c.l.b16 %v198
  %v343 = vunpack.c.l.b16 %v199
  %v344 = vunpack.c.l.b16 %v200
  %v345 = vunpack.c.l.b16 %v201
  %v346 = vunpack.c.l.b16 %v202
  %v347 = vunpack.c.l.b16 %v203
  %v348 = vunpack.c.l.b16 %v204
  %v349 = vunpack.c.l.b16 %v205
  %v350 = vunpack.c.l.b16 %v206
  %v351 = vunpack.c.l.b16 %v207
  %v352 = vunpack.c.l.b16 %v208
  %v353 = vunpack.c.l.b16 %v209
  %v354 = vunpack.c.l.b16 %v210
  %v355 = vpack.c.b16 %v292, %v291
  %v356 = vpack.c.b16 %v294, %v293
  %v357 = vpack.c.b16 %v296, %v295
  %v358 = vpack.c.b16 %v298, %v297
  %v359 = vpack.c.b16 %v300, %v299
  %v360 = vpack.c.b16 %v302, %v301
  %v361 = vpack.c.b16 %v304, %v303
  %v362 = vpack.c.b16 %v306, %v305
  %v363 = vpack.c.b16 %v308, %v307
  %v364 = vpack.c.b16 %v310, %v309
  %v365 = vpack.c.b16 %v312, %v311
  %v366 = vpack.c.b16 %v314, %v313
  %v367 = vpack.c.b16 %v316, %v315
  %v368 = vpack.c.b16 %v318, %v317
  %v369 = vpack.c.b16 %v320, %v319
  %v370 = vpack.c.b16 %v322, %v321
  %v371 = vpack.c.b16 %v324, %v323
  %v372 = vpack.c.b16 %v326, %v325
  %v373 = vpack.c.b16 %v328, %v327
  %v374 = vpack.c.b16 %v330, %v329
  %v375 = vpack.c.b16 %v332, %v331
  %v376 = vpack.c.b16 %v334, %v333
  %v377 = vpack.c.b16 %v336, %v335
  %v378 = vpack.c.b16 %v338, %v337
  %v379 = vpack.c.b16 %v340, %v339
  %v380 = vpack.c.b16 %v342, %v341
  %v381 = vpack.c.b16 %v344, %v343
  %v382 = vpack.c.b16 %v346, %v345
  %v383 = vpack.c.b16 %v348, %v347
  %v384 = vpack.c.b16 %v350, %v349
  %v385 = vpack.c.b16 %v352, %v351
  %v386 = vpack.c.b16 %v354, %v353
  %v435 = vunpack.c.l.b16 %v211
  %v436 = vunpack.c.l.b16 %v212
  %v437 = vunpack.c.l.b16 %v213
  %v438 = vunpack.c.l.b16 %v214
  %v439 = vunpack.c.l.b16 %v215
  %v440 = vunpack.c.l.b16 %v216
  %v441 = vunpack.c.l.b16 %v217
  %v442 = vunpack.c.l.b16 %v218
  %v443 = vunpack.c.l.b16 %v219
  %v444 = vunpack.c.l.b16 %v220
  %v445 = vunpack.c.l.b16 %v221
  %v446 = vunpack.c.l.b16 %v222
  %v447 = vunpack.c.l.b16 %v223
  %v448 = vunpack.c.l.b16 %v224
  %v449 = vunpack.c.l.b16 %v225
  %v450 = vunpack.c.l.b16 %v226
  %v451 = vpack.c.b16 %v436, %v435
  %v452 = vpack.c.b16 %v438, %v437
  %v453 = vpack.c.b16 %v440, %v439
  %v454 = vpack.c.b16 %v442, %v441
  %v455 = vpack.c.b16 %v444, %v443
  %v456 = vpack.c.b16 %v446, %v445
  %v457 = vpack.c.b16 %v448, %v447
  %v458 = vpack.c.b16 %v450, %v449
  %467 = vmatprep.subr.bf16.mxu0 0
  %468 = vmatpush1.bf16.msra.mxu0 %v451
  %469 = vmatprep.subr.bf16.mxu0 0
  %470 = vmatpush1.bf16.msra.mxu0 %v452
  %471 = vmatprep.subr.bf16.mxu0 0
  %472 = vmatpush1.bf16.msra.mxu0 %v453
  %473 = vmatprep.subr.bf16.mxu0 0
  %474 = vmatpush1.bf16.msra.mxu0 %v454
  %475 = vmatprep.subr.bf16.mxu0 0
  %476 = vmatpush1.bf16.msra.mxu0 %v455
  %477 = vmatprep.subr.bf16.mxu0 0
  %478 = vmatpush1.bf16.msra.mxu0 %v456
  %479 = vmatprep.subr.bf16.mxu0 0
  %480 = vmatpush1.bf16.msra.mxu0 %v457
  %481 = vmatprep.subr.bf16.mxu0 0
  %482 = vmatpush1.bf16.msra.mxu0 %v458
  %483 = vmatprep.subr.bf16.mxu0 0
  %484 = vmatpush1.bf16.msra.mxu0 0
  %485 = vmatprep.subr.bf16.mxu0 0
  %486 = vmatpush1.bf16.msra.mxu0 0
  %487 = vmatprep.subr.bf16.mxu0 0
  %488 = vmatpush1.bf16.msra.mxu0 0
  %489 = vmatprep.subr.bf16.mxu0 0
  %490 = vmatpush1.bf16.msra.mxu0 0
  %491 = vmatprep.subr.bf16.mxu0 0
  %492 = vmatpush1.bf16.msra.mxu0 0
  %493 = vmatprep.subr.bf16.mxu0 0
  %494 = vmatpush1.bf16.msra.mxu0 0
  %495 = vmatprep.subr.bf16.mxu0 0
  %496 = vmatpush1.bf16.msra.mxu0 0
  %497 = vmatprep.subr.bf16.mxu0 0
  %498 = vmatpush1.bf16.msra.mxu0 0
  %499 = vmatprep.mubr.bf16.mxu0 0
  %500 = vmatmul.mubr.bf16.gmra.mrb[0].mxu0 %v355
  %v501 = vpop.f32.mrb[0].mxu0
  %v502 = vadd.f32 0.0, %v501
  %v503 = vpop.f32.mrb[0].mxu0
  %v504 = vpop.f32.mrb[0].mxu0
  %v505 = vadd.f32 0.0, %v504
  %v506 = vpop.f32.mrb[0].mxu0
  %507 = vmatprep.mubr.bf16.mxu0 0
  %508 = vmatmul.mubr.bf16.gmra.mrb[0].mxu0 %v356
  %v509 = vpop.f32.mrb[0].mxu0
  %v510 = vadd.f32 0.0, %v509
  %v511 = vpop.f32.mrb[0].mxu0
  %v512 = vpop.f32.mrb[0].mxu0
  %v513 = vadd.f32 0.0, %v512
  %v514 = vpop.f32.mrb[0].mxu0
  %515 = vmatprep.mubr.bf16.mxu0 0
  %516 = vmatmul.mubr.bf16.gmra.mrb[0].mxu0 %v357
  %v517 = vpop.f32.mrb[0].mxu0
  %v518 = vadd.f32 0.0, %v517
  %v519 = vpop.f32.mrb[0].mxu0
  %v520 = vpop.f32.mrb[0].mxu0
  %v521 = vadd.f32 0.0, %v520
  %v522 = vpop.f32.mrb[0].mxu0
  %523 = vmatprep.mubr.bf16.mxu0 0
  %524 = vmatmul.mubr.bf16.gmra.mrb[0].mxu0 %v358
  %v525 = vpop.f32.mrb[0].mxu0
  %v526 = vadd.f32 0.0, %v525
  %v527 = vpop.f32.mrb[0].mxu0
  %v528 = vpop.f32.mrb[0].mxu0
  %v529 = vadd.f32 0.0, %v528
  %v530 = vpop.f32.mrb[0].mxu0
  %531 = vmatprep.mubr.bf16.mxu0 0
  %532 = vmatmul.mubr.bf16.gmra.mrb[0].mxu0 %v359
  %v533 = vpop.f32.mrb[0].mxu0
  %v534 = vadd.f32 0.0, %v533
  %v535 = vpop.f32.mrb[0].mxu0
  %v536 = vpop.f32.mrb[0].mxu0
  %v537 = vadd.f32 0.0, %v536
  %v538 = vpop.f32.mrb[0].mxu0
  %539 = vmatprep.mubr.bf16.mxu0 0
  %540 = vmatmul.mubr.bf16.gmra.mrb[0].mxu0 %v360
  %v541 = vpop.f32.mrb[0].mxu0
  %v542 = vadd.f32 0.0, %v541
  %v543 = vpop.f32.mrb[0].mxu0
  %v544 = vpop.f32.mrb[0].mxu0
  %v545 = vadd.f32 0.0, %v544
  %v546 = vpop.f32.mrb[0].mxu0
  %547 = vmatprep.mubr.bf16.mxu0 0
  %548 = vmatmul.mubr.bf16.gmra.mrb[0].mxu0 %v361
  %v549 = vpop.f32.mrb[0].mxu0
  %v550 = vadd.f32 0.0, %v549
  %v551 = vpop.f32.mrb[0].mxu0
  %v552 = vpop.f32.mrb[0].mxu0
  %v553 = vadd.f32 0.0, %v552
  %v554 = vpop.f32.mrb[0].mxu0
  %555 = vmatprep.mubr.bf16.mxu0 0
  %556 = vmatmul.mubr.bf16.gmra.mrb[0].mxu0 %v362
  %v557 = vpop.f32.mrb[0].mxu0
  %v558 = vadd.f32 0.0, %v557
  %v559 = vpop.f32.mrb[0].mxu0
  %v560 = vpop.f32.mrb[0].mxu0
  %v561 = vadd.f32 0.0, %v560
  %v562 = vpop.f32.mrb[0].mxu0
  %563 = vmatprep.mubr.bf16.mxu0 0
  %564 = vmatmul.mubr.bf16.gmra.mrb[0].mxu0 %v363
  %v565 = vpop.f32.mrb[0].mxu0
  %v566 = vadd.f32 0.0, %v565
  %v567 = vpop.f32.mrb[0].mxu0
  %v568 = vpop.f32.mrb[0].mxu0
  %v569 = vadd.f32 0.0, %v568
  %v570 = vpop.f32.mrb[0].mxu0
  %571 = vmatprep.mubr.bf16.mxu0 0
  %572 = vmatmul.mubr.bf16.gmra.mrb[0].mxu0 %v364
  %v573 = vpop.f32.mrb[0].mxu0
  %v574 = vadd.f32 0.0, %v573
  %v575 = vpop.f32.mrb[0].mxu0
  %v576 = vpop.f32.mrb[0].mxu0
  %v577 = vadd.f32 0.0, %v576
  %v578 = vpop.f32.mrb[0].mxu0
  %579 = vmatprep.mubr.bf16.mxu0 0
  %580 = vmatmul.mubr.bf16.gmra.mrb[0].mxu0 %v365
  %v581 = vpop.f32.mrb[0].mxu0
  %v582 = vadd.f32 0.0, %v581
  %v583 = vpop.f32.mrb[0].mxu0
  %v584 = vpop.f32.mrb[0].mxu0
  %v585 = vadd.f32 0.0, %v584
  %v586 = vpop.f32.mrb[0].mxu0
  %587 = vmatprep.mubr.bf16.mxu0 0
  %588 = vmatmul.mubr.bf16.gmra.mrb[0].mxu0 %v366
  %v589 = vpop.f32.mrb[0].mxu0
  %v590 = vadd.f32 0.0, %v589
  %v591 = vpop.f32.mrb[0].mxu0
  %v592 = vpop.f32.mrb[0].mxu0
  %v593 = vadd.f32 0.0, %v592
  %v594 = vpop.f32.mrb[0].mxu0
  %595 = vmatprep.mubr.bf16.mxu0 0
  %596 = vmatmul.mubr.bf16.gmra.mrb[0].mxu0 %v367
  %v597 = vpop.f32.mrb[0].mxu0
  %v598 = vadd.f32 0.0, %v597
  %v599 = vpop.f32.mrb[0].mxu0
  %v600 = vpop.f32.mrb[0].mxu0
  %v601 = vadd.f32 0.0, %v600
  %v602 = vpop.f32.mrb[0].mxu0
  %603 = vmatprep.mubr.bf16.mxu0 0
  %604 = vmatmul.mubr.bf16.gmra.mrb[0].mxu0 %v368
  %v605 = vpop.f32.mrb[0].mxu0
  %v606 = vadd.f32 0.0, %v605
  %v607 = vpop.f32.mrb[0].mxu0
  %v608 = vpop.f32.mrb[0].mxu0
  %v609 = vadd.f32 0.0, %v608
  %v610 = vpop.f32.mrb[0].mxu0
  %611 = vmatprep.mubr.bf16.mxu0 0
  %612 = vmatmul.mubr.bf16.gmra.mrb[0].mxu0 %v369
  %v613 = vpop.f32.mrb[0].mxu0
  %v614 = vadd.f32 0.0, %v613
  %v615 = vpop.f32.mrb[0].mxu0
  %v616 = vpop.f32.mrb[0].mxu0
  %v617 = vadd.f32 0.0, %v616
  %v618 = vpop.f32.mrb[0].mxu0
  %619 = vmatprep.mubr.bf16.mxu0 0
  %620 = vmatmul.mubr.bf16.gmra.mrb[0].mxu0 %v370
  %v621 = vpop.f32.mrb[0].mxu0
  %v622 = vadd.f32 0.0, %v621
  %v623 = vpop.f32.mrb[0].mxu0
  %v624 = vpop.f32.mrb[0].mxu0
  %v625 = vadd.f32 0.0, %v624
  %v626 = vpop.f32.mrb[0].mxu0
  %627 = vmatprep.mubr.bf16.mxu0 0
  %628 = vmatmul.mubr.bf16.gmra.mrb[0].mxu0 %v371
  %v629 = vpop.f32.mrb[0].mxu0
  %v630 = vadd.f32 0.0, %v629
  %v631 = vpop.f32.mrb[0].mxu0
  %v632 = vpop.f32.mrb[0].mxu0
  %v633 = vadd.f32 0.0, %v632
  %v634 = vpop.f32.mrb[0].mxu0
  %635 = vmatprep.mubr.bf16.mxu0 0
  %636 = vmatmul.mubr.bf16.gmra.mrb[0].mxu0 %v372
  %v637 = vpop.f32.mrb[0].mxu0
  %v638 = vadd.f32 0.0, %v637
  %v639 = vpop.f32.mrb[0].mxu0
  %v640 = vpop.f32.mrb[0].mxu0
  %v641 = vadd.f32 0.0, %v640
  %v642 = vpop.f32.mrb[0].mxu0
  %643 = vmatprep.mubr.bf16.mxu0 0
  %644 = vmatmul.mubr.bf16.gmra.mrb[0].mxu0 %v373
  %v645 = vpop.f32.mrb[0].mxu0
  %v646 = vadd.f32 0.0, %v645
  %v647 = vpop.f32.mrb[0].mxu0
  %v648 = vpop.f32.mrb[0].mxu0
  %v649 = vadd.f32 0.0, %v648
  %v650 = vpop.f32.mrb[0].mxu0
  %651 = vmatprep.mubr.bf16.mxu0 0
  %652 = vmatmul.mubr.bf16.gmra.mrb[0].mxu0 %v374
  %v653 = vpop.f32.mrb[0].mxu0
  %v654 = vadd.f32 0.0, %v653
  %v655 = vpop.f32.mrb[0].mxu0
  %v656 = vpop.f32.mrb[0].mxu0
  %v657 = vadd.f32 0.0, %v656
  %v658 = vpop.f32.mrb[0].mxu0
  %659 = vmatprep.mubr.bf16.mxu0 0
  %660 = vmatmul.mubr.bf16.gmra.mrb[0].mxu0 %v375
  %v661 = vpop.f32.mrb[0].mxu0
  %v662 = vadd.f32 0.0, %v661
  %v663 = vpop.f32.mrb[0].mxu0
  %v664 = vpop.f32.mrb[0].mxu0
  %v665 = vadd.f32 0.0, %v664
  %v666 = vpop.f32.mrb[0].mxu0
  %667 = vmatprep.mubr.bf16.mxu0 0
  %668 = vmatmul.mubr.bf16.gmra.mrb[0].mxu0 %v376
  %v669 = vpop.f32.mrb[0].mxu0
  %v670 = vadd.f32 0.0, %v669
  %v671 = vpop.f32.mrb[0].mxu0
  %v672 = vpop.f32.mrb[0].mxu0
  %v673 = vadd.f32 0.0, %v672
  %v674 = vpop.f32.mrb[0].mxu0
  %675 = vmatprep.mubr.bf16.mxu0 0
  %676 = vmatmul.mubr.bf16.gmra.mrb[0].mxu0 %v377
  %v677 = vpop.f32.mrb[0].mxu0
  %v678 = vadd.f32 0.0, %v677
  %v679 = vpop.f32.mrb[0].mxu0
  %v680 = vpop.f32.mrb[0].mxu0
  %v681 = vadd.f32 0.0, %v680
  %v682 = vpop.f32.mrb[0].mxu0
  %683 = vmatprep.mubr.bf16.mxu0 0
  %684 = vmatmul.mubr.bf16.gmra.mrb[0].mxu0 %v378
  %v685 = vpop.f32.mrb[0].mxu0
  %v686 = vadd.f32 0.0, %v685
  %v687 = vpop.f32.mrb[0].mxu0
  %v688 = vpop.f32.mrb[0].mxu0
  %v689 = vadd.f32 0.0, %v688
  %v690 = vpop.f32.mrb[0].mxu0
  %691 = vmatprep.mubr.bf16.mxu0 0
  %692 = vmatmul.mubr.bf16.gmra.mrb[0].mxu0 %v379
  %v693 = vpop.f32.mrb[0].mxu0
  %v694 = vadd.f32 0.0, %v693
  %v695 = vpop.f32.mrb[0].mxu0
  %v696 = vpop.f32.mrb[0].mxu0
  %v697 = vadd.f32 0.0, %v696
  %v698 = vpop.f32.mrb[0].mxu0
  %699 = vmatprep.mubr.bf16.mxu0 0
  %700 = vmatmul.mubr.bf16.gmra.mrb[0].mxu0 %v380
  %v701 = vpop.f32.mrb[0].mxu0
  %v702 = vadd.f32 0.0, %v701
  %v703 = vpop.f32.mrb[0].mxu0
  %v704 = vpop.f32.mrb[0].mxu0
  %v705 = vadd.f32 0.0, %v704
  %v706 = vpop.f32.mrb[0].mxu0
  %707 = vmatprep.mubr.bf16.mxu0 0
  %708 = vmatmul.mubr.bf16.gmra.mrb[0].mxu0 %v381
  %v709 = vpop.f32.mrb[0].mxu0
  %v710 = vadd.f32 0.0, %v709
  %v711 = vpop.f32.mrb[0].mxu0
  %v712 = vpop.f32.mrb[0].mxu0
  %v713 = vadd.f32 0.0, %v712
  %v714 = vpop.f32.mrb[0].mxu0
  %715 = vmatprep.mubr.bf16.mxu0 0
  %716 = vmatmul.mubr.bf16.gmra.mrb[0].mxu0 %v382
  %v717 = vpop.f32.mrb[0].mxu0
  %v718 = vadd.f32 0.0, %v717
  %v719 = vpop.f32.mrb[0].mxu0
  %v720 = vpop.f32.mrb[0].mxu0
  %v721 = vadd.f32 0.0, %v720
  %v722 = vpop.f32.mrb[0].mxu0
  %723 = vmatprep.mubr.bf16.mxu0 0
  %724 = vmatmul.mubr.bf16.gmra.mrb[0].mxu0 %v383
  %v725 = vpop.f32.mrb[0].mxu0
  %v726 = vadd.f32 0.0, %v725
  %v727 = vpop.f32.mrb[0].mxu0
  %v728 = vpop.f32.mrb[0].mxu0
  %v729 = vadd.f32 0.0, %v728
  %v730 = vpop.f32.mrb[0].mxu0
  %731 = vmatprep.mubr.bf16.mxu0 0
  %732 = vmatmul.mubr.bf16.gmra.mrb[0].mxu0 %v384
  %v733 = vpop.f32.mrb[0].mxu0
  %v734 = vadd.f32 0.0, %v733
  %v735 = vpop.f32.mrb[0].mxu0
  %v736 = vpop.f32.mrb[0].mxu0
  %v737 = vadd.f32 0.0, %v736
  %v738 = vpop.f32.mrb[0].mxu0
  %739 = vmatprep.mubr.bf16.mxu0 0
  %740 = vmatmul.mubr.bf16.gmra.mrb[0].mxu0 %v385
  %v741 = vpop.f32.mrb[0].mxu0
  %v742 = vadd.f32 0.0, %v741
  %v743 = vpop.f32.mrb[0].mxu0
  %v744 = vpop.f32.mrb[0].mxu0
  %v745 = vadd.f32 0.0, %v744
  %v746 = vpop.f32.mrb[0].mxu0
  %747 = vmatprep.mubr.bf16.mxu0 0
  %748 = vmatmul.mubr.bf16.gmra.mrb[0].mxu0 %v386
  %v749 = vpop.f32.mrb[0].mxu0
  %v750 = vadd.f32 0.0, %v749
  %v751 = vpop.f32.mrb[0].mxu0
  %v752 = vpop.f32.mrb[0].mxu0
  %v753 = vadd.f32 0.0, %v752
  %v754 = vpop.f32.mrb[0].mxu0
  %755 = vdwg.mxu0
  %v756 = vadd.f32 %v83, %v502
  %v757 = vadd.f32 %v84, %v505
  %v758 = vadd.f32 %v85, %v510
  %v759 = vadd.f32 %v86, %v513
  %v760 = vadd.f32 %v87, %v518
  %v761 = vadd.f32 %v88, %v521
  %v762 = vadd.f32 %v89, %v526
  %v763 = vadd.f32 %v90, %v529
  %v764 = vadd.f32 %v91, %v534
  %v765 = vadd.f32 %v92, %v537
  %v766 = vadd.f32 %v93, %v542
  %v767 = vadd.f32 %v94, %v545
  %v768 = vadd.f32 %v95, %v550
  %v769 = vadd.f32 %v96, %v553
  %v770 = vadd.f32 %v97, %v558
  %v771 = vadd.f32 %v98, %v561
  %v772 = vadd.f32 %v99, %v566
  %v773 = vadd.f32 %v100, %v569
  %v774 = vadd.f32 %v101, %v574
  %v775 = vadd.f32 %v102, %v577
  %v776 = vadd.f32 %v103, %v582
  %v777 = vadd.f32 %v104, %v585
  %v778 = vadd.f32 %v105, %v590
  %v779 = vadd.f32 %v106, %v593
  %v780 = vadd.f32 %v107, %v598
  %v781 = vadd.f32 %v108, %v601
  %v782 = vadd.f32 %v109, %v606
  %v783 = vadd.f32 %v110, %v609
  %v784 = vadd.f32 %v111, %v614
  %v785 = vadd.f32 %v112, %v617
  %v786 = vadd.f32 %v113, %v622
  %v787 = vadd.f32 %v114, %v625
  %v788 = vadd.f32 %v115, %v630
  %v789 = vadd.f32 %v116, %v633
  %v790 = vadd.f32 %v117, %v638
  %v791 = vadd.f32 %v118, %v641
  %v792 = vadd.f32 %v119, %v646
  %v793 = vadd.f32 %v120, %v649
  %v794 = vadd.f32 %v121, %v654
  %v795 = vadd.f32 %v122, %v657
  %v796 = vadd.f32 %v123, %v662
  %v797 = vadd.f32 %v124, %v665
  %v798 = vadd.f32 %v125, %v670
  %v799 = vadd.f32 %v126, %v673
  %v800 = vadd.f32 %v127, %v678
  %v801 = vadd.f32 %v128, %v681
  %v802 = vadd.f32 %v129, %v686
  %v803 = vadd.f32 %v130, %v689
  %v804 = vadd.f32 %v131, %v694
  %v805 = vadd.f32 %v132, %v697
  %v806 = vadd.f32 %v133, %v702
  %v807 = vadd.f32 %v134, %v705
  %v808 = vadd.f32 %v135, %v710
  %v809 = vadd.f32 %v136, %v713
  %v810 = vadd.f32 %v137, %v718
  %v811 = vadd.f32 %v138, %v721
  %v812 = vadd.f32 %v139, %v726
  %v813 = vadd.f32 %v140, %v729
  %v814 = vadd.f32 %v141, %v734
  %v815 = vadd.f32 %v142, %v737
  %v816 = vadd.f32 %v143, %v742
  %v817 = vadd.f32 %v144, %v745
  %v818 = vadd.f32 %v145, %v750
  %v819 = vadd.f32 %v146, %v753
  %820 = vst [vmem:[#allocation2] sm:$0xff] %v756
  %821 = vst [vmem:[#allocation2 + $0x8] sm:$0xff] %v757
  %822 = vst [vmem:[#allocation2 + $0x10] sm:$0xff] %v758
  %823 = vst [vmem:[#allocation2 + $0x18] sm:$0xff] %v759
  %824 = vst [vmem:[#allocation2 + $0x20] sm:$0xff] %v760
  %825 = vst [vmem:[#allocation2 + $0x28] sm:$0xff] %v761
  %826 = vst [vmem:[#allocation2 + $0x30] sm:$0xff] %v762
  %827 = vst [vmem:[#allocation2 + $0x38] sm:$0xff] %v763
  %828 = vst [vmem:[#allocation2 + $0x40] sm:$0xff] %v764
  %829 = vst [vmem:[#allocation2 + $0x48] sm:$0xff] %v765
  %830 = vst [vmem:[#allocation2 + $0x50] sm:$0xff] %v766
  %831 = vst [vmem:[#allocation2 + $0x58] sm:$0xff] %v767
  %832 = vst [vmem:[#allocation2 + $0x60] sm:$0xff] %v768
  %833 = vst [vmem:[#allocation2 + $0x68] sm:$0xff] %v769
  %834 = vst [vmem:[#allocation2 + $0x70] sm:$0xff] %v770
  %835 = vst [vmem:[#allocation2 + $0x78] sm:$0xff] %v771
  %836 = vst [vmem:[#allocation2 + $0x80] sm:$0xff] %v772
  %837 = vst [vmem:[#allocation2 + $0x88] sm:$0xff] %v773
  %838 = vst [vmem:[#allocation2 + $0x90] sm:$0xff] %v774
  %839 = vst [vmem:[#allocation2 + $0x98] sm:$0xff] %v775
  %840 = vst [vmem:[#allocation2 + $0xa0] sm:$0xff] %v776
  %841 = vst [vmem:[#allocation2 + $0xa8] sm:$0xff] %v777
  %842 = vst [vmem:[#allocation2 + $0xb0] sm:$0xff] %v778
  %843 = vst [vmem:[#allocation2 + $0xb8] sm:$0xff] %v779
  %844 = vst [vmem:[#allocation2 + $0xc0] sm:$0xff] %v780
  %845 = vst [vmem:[#allocation2 + $0xc8] sm:$0xff] %v781
  %846 = vst [vmem:[#allocation2 + $0xd0] sm:$0xff] %v782
  %847 = vst [vmem:[#allocation2 + $0xd8] sm:$0xff] %v783
  %848 = vst [vmem:[#allocation2 + $0xe0] sm:$0xff] %v784
  %849 = vst [vmem:[#allocation2 + $0xe8] sm:$0xff] %v785
  %850 = vst [vmem:[#allocation2 + $0xf0] sm:$0xff] %v786
  %851 = vst [vmem:[#allocation2 + $0xf8] sm:$0xff] %v787
  %852 = vst [vmem:[#allocation2 + $0x100] sm:$0xff] %v788
  %853 = vst [vmem:[#allocation2 + $0x108] sm:$0xff] %v789
  %854 = vst [vmem:[#allocation2 + $0x110] sm:$0xff] %v790
  %855 = vst [vmem:[#allocation2 + $0x118] sm:$0xff] %v791
  %856 = vst [vmem:[#allocation2 + $0x120] sm:$0xff] %v792
  %857 = vst [vmem:[#allocation2 + $0x128] sm:$0xff] %v793
  %858 = vst [vmem:[#allocation2 + $0x130] sm:$0xff] %v794
  %859 = vst [vmem:[#allocation2 + $0x138] sm:$0xff] %v795
  %860 = vst [vmem:[#allocation2 + $0x140] sm:$0xff] %v796
  %861 = vst [vmem:[#allocation2 + $0x148] sm:$0xff] %v797
  %862 = vst [vmem:[#allocation2 + $0x150] sm:$0xff] %v798
  %863 = vst [vmem:[#allocation2 + $0x158] sm:$0xff] %v799
  %864 = vst [vmem:[#allocation2 + $0x160] sm:$0xff] %v800
  %865 = vst [vmem:[#allocation2 + $0x168] sm:$0xff] %v801
  %866 = vst [vmem:[#allocation2 + $0x170] sm:$0xff] %v802
  %867 = vst [vmem:[#allocation2 + $0x178] sm:$0xff] %v803
  %868 = vst [vmem:[#allocation2 + $0x180] sm:$0xff] %v804
  %869 = vst [vmem:[#allocation2 + $0x188] sm:$0xff] %v805
  %870 = vst [vmem:[#allocation2 + $0x190] sm:$0xff] %v806
  %871 = vst [vmem:[#allocation2 + $0x198] sm:$0xff] %v807
  %872 = vst [vmem:[#allocation2 + $0x1a0] sm:$0xff] %v808
  %873 = vst [vmem:[#allocation2 + $0x1a8] sm:$0xff] %v809
  %874 = vst [vmem:[#allocation2 + $0x1b0] sm:$0xff] %v810
  %875 = vst [vmem:[#allocation2 + $0x1b8] sm:$0xff] %v811
  %876 = vst [vmem:[#allocation2 + $0x1c0] sm:$0xff] %v812
  %877 = vst [vmem:[#allocation2 + $0x1c8] sm:$0xff] %v813
  %878 = vst [vmem:[#allocation2 + $0x1d0] sm:$0xff] %v814
  %879 = vst [vmem:[#allocation2 + $0x1d8] sm:$0xff] %v815
  %880 = vst [vmem:[#allocation2 + $0x1e0] sm:$0xff] %v816
  %881 = vst [vmem:[#allocation2 + $0x1e8] sm:$0xff] %v817
  %882 = vst [vmem:[#allocation2 + $0x1f0] sm:$0xff] %v818
  %883 = vst [vmem:[#allocation2 + $0x1f8] sm:$0xff] %v819
  // Predicated region
  $region18: #{_lambda_.5} parent=0 // pred_check
    %p884 = pneg %p15
  $region19: #{_lambda_.5} parent=0 // pred_check_branch
    %886 = sbr.rel (%p884) target = $region21
  $region20: #{_lambda_.5} parent=0 // pred_region
    %v887 = vld [vmem:[#allocation2] sm:$0xff]
    %v888 = vld [vmem:[#allocation2 + $0x8] sm:$0xff]
    %v889 = vld [vmem:[#allocation2 + $0x10] sm:$0xff]
    %v890 = vld [vmem:[#allocation2 + $0x18] sm:$0xff]
    %v891 = vld [vmem:[#allocation2 + $0x20] sm:$0xff]
    %v892 = vld [vmem:[#allocation2 + $0x28] sm:$0xff]
    %v893 = vld [vmem:[#allocation2 + $0x30] sm:$0xff]
    %v894 = vld [vmem:[#allocation2 + $0x38] sm:$0xff]
    %v895 = vld [vmem:[#allocation2 + $0x40] sm:$0xff]
    %v896 = vld [vmem:[#allocation2 + $0x48] sm:$0xff]
    %v897 = vld [vmem:[#allocation2 + $0x50] sm:$0xff]
    %v898 = vld [vmem:[#allocation2 + $0x58] sm:$0xff]
    %v899 = vld [vmem:[#allocation2 + $0x60] sm:$0xff]
    %v900 = vld [vmem:[#allocation2 + $0x68] sm:$0xff]
    %v901 = vld [vmem:[#allocation2 + $0x70] sm:$0xff]
    %v902 = vld [vmem:[#allocation2 + $0x78] sm:$0xff]
    %v903 = vld [vmem:[#allocation2 + $0x80] sm:$0xff]
    %v904 = vld [vmem:[#allocation2 + $0x88] sm:$0xff]
    %v905 = vld [vmem:[#allocation2 + $0x90] sm:$0xff]
    %v906 = vld [vmem:[#allocation2 + $0x98] sm:$0xff]
    %v907 = vld [vmem:[#allocation2 + $0xa0] sm:$0xff]
    %v908 = vld [vmem:[#allocation2 + $0xa8] sm:$0xff]
    %v909 = vld [vmem:[#allocation2 + $0xb0] sm:$0xff]
    %v910 = vld [vmem:[#allocation2 + $0xb8] sm:$0xff]
    %v911 = vld [vmem:[#allocation2 + $0xc0] sm:$0xff]
    %v912 = vld [vmem:[#allocation2 + $0xc8] sm:$0xff]
    %v913 = vld [vmem:[#allocation2 + $0xd0] sm:$0xff]
    %v914 = vld [vmem:[#allocation2 + $0xd8] sm:$0xff]
    %v915 = vld [vmem:[#allocation2 + $0xe0] sm:$0xff]
    %v916 = vld [vmem:[#allocation2 + $0xe8] sm:$0xff]
    %v917 = vld [vmem:[#allocation2 + $0xf0] sm:$0xff]
    %v918 = vld [vmem:[#allocation2 + $0xf8] sm:$0xff]
    %v919 = vld [vmem:[#allocation2 + $0x100] sm:$0xff]
    %v920 = vld [vmem:[#allocation2 + $0x108] sm:$0xff]
    %v921 = vld [vmem:[#allocation2 + $0x110] sm:$0xff]
    %v922 = vld [vmem:[#allocation2 + $0x118] sm:$0xff]
    %v923 = vld [vmem:[#allocation2 + $0x120] sm:$0xff]
    %v924 = vld [vmem:[#allocation2 + $0x128] sm:$0xff]
    %v925 = vld [vmem:[#allocation2 + $0x130] sm:$0xff]
    %v926 = vld [vmem:[#allocation2 + $0x138] sm:$0xff]
    %v927 = vld [vmem:[#allocation2 + $0x140] sm:$0xff]
    %v928 = vld [vmem:[#allocation2 + $0x148] sm:$0xff]
    %v929 = vld [vmem:[#allocation2 + $0x150] sm:$0xff]
    %v930 = vld [vmem:[#allocation2 + $0x158] sm:$0xff]
    %v931 = vld [vmem:[#allocation2 + $0x160] sm:$0xff]
    %v932 = vld [vmem:[#allocation2 + $0x168] sm:$0xff]
    %v933 = vld [vmem:[#allocation2 + $0x170] sm:$0xff]
    %v934 = vld [vmem:[#allocation2 + $0x178] sm:$0xff]
    %v935 = vld [vmem:[#allocation2 + $0x180] sm:$0xff]
    %v936 = vld [vmem:[#allocation2 + $0x188] sm:$0xff]
    %v937 = vld [vmem:[#allocation2 + $0x190] sm:$0xff]
    %v938 = vld [vmem:[#allocation2 + $0x198] sm:$0xff]
    %v939 = vld [vmem:[#allocation2 + $0x1a0] sm:$0xff]
    %v940 = vld [vmem:[#allocation2 + $0x1a8] sm:$0xff]
    %v941 = vld [vmem:[#allocation2 + $0x1b0] sm:$0xff]
    %v942 = vld [vmem:[#allocation2 + $0x1b8] sm:$0xff]
    %v943 = vld [vmem:[#allocation2 + $0x1c0] sm:$0xff]
    %v944 = vld [vmem:[#allocation2 + $0x1c8] sm:$0xff]
    %v945 = vld [vmem:[#allocation2 + $0x1d0] sm:$0xff]
    %v946 = vld [vmem:[#allocation2 + $0x1d8] sm:$0xff]
    %v947 = vld [vmem:[#allocation2 + $0x1e0] sm:$0xff]
    %v948 = vld [vmem:[#allocation2 + $0x1e8] sm:$0xff]
    %v949 = vld [vmem:[#allocation2 + $0x1f0] sm:$0xff]
    %v950 = vld [vmem:[#allocation2 + $0x1f8] sm:$0xff]
    %v951 = vld [vmem:[%s2] sm:$0x1]
    %v953 = vlaneseq
    %v954 = vshrl.u32 %v953, 7
    %v955 = vsub.s32 0, %v954
    %v956 = vrot.slane %v951, %v955
    %v958 = vadd.f32 %v887, %v956
    %v959 = vadd.f32 %v888, %v956
    %v960 = vadd.f32 %v889, %v956
    %v961 = vadd.f32 %v890, %v956
    %v962 = vadd.f32 %v891, %v956
    %v963 = vadd.f32 %v892, %v956
    %v964 = vadd.f32 %v893, %v956
    %v965 = vadd.f32 %v894, %v956
    %v966 = vadd.f32 %v895, %v956
    %v967 = vadd.f32 %v896, %v956
    %v968 = vadd.f32 %v897, %v956
    %v969 = vadd.f32 %v898, %v956
    %v970 = vadd.f32 %v899, %v956
    %v971 = vadd.f32 %v900, %v956
    %v972 = vadd.f32 %v901, %v956
    %v973 = vadd.f32 %v902, %v956
    %v974 = vadd.f32 %v903, %v956
    %v975 = vadd.f32 %v904, %v956
    %v976 = vadd.f32 %v905, %v956
    %v977 = vadd.f32 %v906, %v956
    %v978 = vadd.f32 %v907, %v956
    %v979 = vadd.f32 %v908, %v956
    %v980 = vadd.f32 %v909, %v956
    %v981 = vadd.f32 %v910, %v956
    %v982 = vadd.f32 %v911, %v956
    %v983 = vadd.f32 %v912, %v956
    %v984 = vadd.f32 %v913, %v956
    %v985 = vadd.f32 %v914, %v956
    %v986 = vadd.f32 %v915, %v956
    %v987 = vadd.f32 %v916, %v956
    %v988 = vadd.f32 %v917, %v956
    %v989 = vadd.f32 %v918, %v956
    %v990 = vadd.f32 %v919, %v956
    %v991 = vadd.f32 %v920, %v956
    %v992 = vadd.f32 %v921, %v956
    %v993 = vadd.f32 %v922, %v956
    %v994 = vadd.f32 %v923, %v956
    %v995 = vadd.f32 %v924, %v956
    %v996 = vadd.f32 %v925, %v956
    %v997 = vadd.f32 %v926, %v956
    %v998 = vadd.f32 %v927, %v956
    %v999 = vadd.f32 %v928, %v956
    %v1000 = vadd.f32 %v929, %v956
    %v1001 = vadd.f32 %v930, %v956
    %v1002 = vadd.f32 %v931, %v956
    %v1003 = vadd.f32 %v932, %v956
    %v1004 = vadd.f32 %v933, %v956
    %v1005 = vadd.f32 %v934, %v956
    %v1006 = vadd.f32 %v935, %v956
    %v1007 = vadd.f32 %v936, %v956
    %v1008 = vadd.f32 %v937, %v956
    %v1009 = vadd.f32 %v938, %v956
    %v1010 = vadd.f32 %v939, %v956
    %v1011 = vadd.f32 %v940, %v956
    %v1012 = vadd.f32 %v941, %v956
    %v1013 = vadd.f32 %v942, %v956
    %v1014 = vadd.f32 %v943, %v956
    %v1015 = vadd.f32 %v944, %v956
    %v1016 = vadd.f32 %v945, %v956
    %v1017 = vadd.f32 %v946, %v956
    %v1018 = vadd.f32 %v947, %v956
    %v1019 = vadd.f32 %v948, %v956
    %v1020 = vadd.f32 %v949, %v956
    %v1021 = vadd.f32 %v950, %v956
    %vm1022 = vcmp.ge.f32.partialorder %v958, 0.0
    %vm1023 = vcmp.ge.f32.partialorder %v959, 0.0
    %vm1024 = vcmp.ge.f32.partialorder %v960, 0.0
    %vm1025 = vcmp.ge.f32.partialorder %v961, 0.0
    %vm1026 = vcmp.ge.f32.partialorder %v962, 0.0
    %vm1027 = vcmp.ge.f32.partialorder %v963, 0.0
    %vm1028 = vcmp.ge.f32.partialorder %v964, 0.0
    %vm1029 = vcmp.ge.f32.partialorder %v965, 0.0
    %vm1030 = vcmp.ge.f32.partialorder %v966, 0.0
    %vm1031 = vcmp.ge.f32.partialorder %v967, 0.0
    %vm1032 = vcmp.ge.f32.partialorder %v968, 0.0
    %vm1033 = vcmp.ge.f32.partialorder %v969, 0.0
    %vm1034 = vcmp.ge.f32.partialorder %v970, 0.0
    %vm1035 = vcmp.ge.f32.partialorder %v971, 0.0
    %vm1036 = vcmp.ge.f32.partialorder %v972, 0.0
    %vm1037 = vcmp.ge.f32.partialorder %v973, 0.0
    %vm1038 = vcmp.ge.f32.partialorder %v974, 0.0
    %vm1039 = vcmp.ge.f32.partialorder %v975, 0.0
    %vm1040 = vcmp.ge.f32.partialorder %v976, 0.0
    %vm1041 = vcmp.ge.f32.partialorder %v977, 0.0
    %vm1042 = vcmp.ge.f32.partialorder %v978, 0.0
    %vm1043 = vcmp.ge.f32.partialorder %v979, 0.0
    %vm1044 = vcmp.ge.f32.partialorder %v980, 0.0
    %vm1045 = vcmp.ge.f32.partialorder %v981, 0.0
    %vm1046 = vcmp.ge.f32.partialorder %v982, 0.0
    %vm1047 = vcmp.ge.f32.partialorder %v983, 0.0
    %vm1048 = vcmp.ge.f32.partialorder %v984, 0.0
    %vm1049 = vcmp.ge.f32.partialorder %v985, 0.0
    %vm1050 = vcmp.ge.f32.partialorder %v986, 0.0
    %vm1051 = vcmp.ge.f32.partialorder %v987, 0.0
    %vm1052 = vcmp.ge.f32.partialorder %v988, 0.0
    %vm1053 = vcmp.ge.f32.partialorder %v989, 0.0
    %vm1054 = vcmp.ge.f32.partialorder %v990, 0.0
    %vm1055 = vcmp.ge.f32.partialorder %v991, 0.0
    %vm1056 = vcmp.ge.f32.partialorder %v992, 0.0
    %vm1057 = vcmp.ge.f32.partialorder %v993, 0.0
    %vm1058 = vcmp.ge.f32.partialorder %v994, 0.0
    %vm1059 = vcmp.ge.f32.partialorder %v995, 0.0
    %vm1060 = vcmp.ge.f32.partialorder %v996, 0.0
    %vm1061 = vcmp.ge.f32.partialorder %v997, 0.0
    %vm1062 = vcmp.ge.f32.partialorder %v998, 0.0
    %vm1063 = vcmp.ge.f32.partialorder %v999, 0.0
    %vm1064 = vcmp.ge.f32.partialorder %v1000, 0.0
    %vm1065 = vcmp.ge.f32.partialorder %v1001, 0.0
    %vm1066 = vcmp.ge.f32.partialorder %v1002, 0.0
    %vm1067 = vcmp.ge.f32.partialorder %v1003, 0.0
    %vm1068 = vcmp.ge.f32.partialorder %v1004, 0.0
    %vm1069 = vcmp.ge.f32.partialorder %v1005, 0.0
    %vm1070 = vcmp.ge.f32.partialorder %v1006, 0.0
    %vm1071 = vcmp.ge.f32.partialorder %v1007, 0.0
    %vm1072 = vcmp.ge.f32.partialorder %v1008, 0.0
    %vm1073 = vcmp.ge.f32.partialorder %v1009, 0.0
    %vm1074 = vcmp.ge.f32.partialorder %v1010, 0.0
    %vm1075 = vcmp.ge.f32.partialorder %v1011, 0.0
    %vm1076 = vcmp.ge.f32.partialorder %v1012, 0.0
    %vm1077 = vcmp.ge.f32.partialorder %v1013, 0.0
    %vm1078 = vcmp.ge.f32.partialorder %v1014, 0.0
    %vm1079 = vcmp.ge.f32.partialorder %v1015, 0.0
    %vm1080 = vcmp.ge.f32.partialorder %v1016, 0.0
    %vm1081 = vcmp.ge.f32.partialorder %v1017, 0.0
    %vm1082 = vcmp.ge.f32.partialorder %v1018, 0.0
    %vm1083 = vcmp.ge.f32.partialorder %v1019, 0.0
    %vm1084 = vcmp.ge.f32.partialorder %v1020, 0.0
    %vm1085 = vcmp.ge.f32.partialorder %v1021, 0.0
    %v1086 = vmul.f32 %v958, 0.2
    %v1087 = vmul.f32 %v959, 0.2
    %v1088 = vmul.f32 %v960, 0.2
    %v1089 = vmul.f32 %v961, 0.2
    %v1090 = vmul.f32 %v962, 0.2
    %v1091 = vmul.f32 %v963, 0.2
    %v1092 = vmul.f32 %v964, 0.2
    %v1093 = vmul.f32 %v965, 0.2
    %v1094 = vmul.f32 %v966, 0.2
    %v1095 = vmul.f32 %v967, 0.2
    %v1096 = vmul.f32 %v968, 0.2
    %v1097 = vmul.f32 %v969, 0.2
    %v1098 = vmul.f32 %v970, 0.2
    %v1099 = vmul.f32 %v971, 0.2
    %v1100 = vmul.f32 %v972, 0.2
    %v1101 = vmul.f32 %v973, 0.2
    %v1102 = vmul.f32 %v974, 0.2
    %v1103 = vmul.f32 %v975, 0.2
    %v1104 = vmul.f32 %v976, 0.2
    %v1105 = vmul.f32 %v977, 0.2
    %v1106 = vmul.f32 %v978, 0.2
    %v1107 = vmul.f32 %v979, 0.2
    %v1108 = vmul.f32 %v980, 0.2
    %v1109 = vmul.f32 %v981, 0.2
    %v1110 = vmul.f32 %v982, 0.2
    %v1111 = vmul.f32 %v983, 0.2
    %v1112 = vmul.f32 %v984, 0.2
    %v1113 = vmul.f32 %v985, 0.2
    %v1114 = vmul.f32 %v986, 0.2
    %v1115 = vmul.f32 %v987, 0.2
    %v1116 = vmul.f32 %v988, 0.2
    %v1117 = vmul.f32 %v989, 0.2
    %v1118 = vmul.f32 %v990, 0.2
    %v1119 = vmul.f32 %v991, 0.2
    %v1120 = vmul.f32 %v992, 0.2
    %v1121 = vmul.f32 %v993, 0.2
    %v1122 = vmul.f32 %v994, 0.2
    %v1123 = vmul.f32 %v995, 0.2
    %v1124 = vmul.f32 %v996, 0.2
    %v1125 = vmul.f32 %v997, 0.2
    %v1126 = vmul.f32 %v998, 0.2
    %v1127 = vmul.f32 %v999, 0.2
    %v1128 = vmul.f32 %v1000, 0.2
    %v1129 = vmul.f32 %v1001, 0.2
    %v1130 = vmul.f32 %v1002, 0.2
    %v1131 = vmul.f32 %v1003, 0.2
    %v1132 = vmul.f32 %v1004, 0.2
    %v1133 = vmul.f32 %v1005, 0.2
    %v1134 = vmul.f32 %v1006, 0.2
    %v1135 = vmul.f32 %v1007, 0.2
    %v1136 = vmul.f32 %v1008, 0.2
    %v1137 = vmul.f32 %v1009, 0.2
    %v1138 = vmul.f32 %v1010, 0.2
    %v1139 = vmul.f32 %v1011, 0.2
    %v1140 = vmul.f32 %v1012, 0.2
    %v1141 = vmul.f32 %v1013, 0.2
    %v1142 = vmul.f32 %v1014, 0.2
    %v1143 = vmul.f32 %v1015, 0.2
    %v1144 = vmul.f32 %v1016, 0.2
    %v1145 = vmul.f32 %v1017, 0.2
    %v1146 = vmul.f32 %v1018, 0.2
    %v1147 = vmul.f32 %v1019, 0.2
    %v1148 = vmul.f32 %v1020, 0.2
    %v1149 = vmul.f32 %v1021, 0.2
    %v1150 = vsel %vm1022, %v958, %v1086
    %v1151 = vsel %vm1023, %v959, %v1087
    %v1152 = vsel %vm1024, %v960, %v1088
    %v1153 = vsel %vm1025, %v961, %v1089
    %v1154 = vsel %vm1026, %v962, %v1090
    %v1155 = vsel %vm1027, %v963, %v1091
    %v1156 = vsel %vm1028, %v964, %v1092
    %v1157 = vsel %vm1029, %v965, %v1093
    %v1158 = vsel %vm1030, %v966, %v1094
    %v1159 = vsel %vm1031, %v967, %v1095
    %v1160 = vsel %vm1032, %v968, %v1096
    %v1161 = vsel %vm1033, %v969, %v1097
    %v1162 = vsel %vm1034, %v970, %v1098
    %v1163 = vsel %vm1035, %v971, %v1099
    %v1164 = vsel %vm1036, %v972, %v1100
    %v1165 = vsel %vm1037, %v973, %v1101
    %v1166 = vsel %vm1038, %v974, %v1102
    %v1167 = vsel %vm1039, %v975, %v1103
    %v1168 = vsel %vm1040, %v976, %v1104
    %v1169 = vsel %vm1041, %v977, %v1105
    %v1170 = vsel %vm1042, %v978, %v1106
    %v1171 = vsel %vm1043, %v979, %v1107
    %v1172 = vsel %vm1044, %v980, %v1108
    %v1173 = vsel %vm1045, %v981, %v1109
    %v1174 = vsel %vm1046, %v982, %v1110
    %v1175 = vsel %vm1047, %v983, %v1111
    %v1176 = vsel %vm1048, %v984, %v1112
    %v1177 = vsel %vm1049, %v985, %v1113
    %v1178 = vsel %vm1050, %v986, %v1114
    %v1179 = vsel %vm1051, %v987, %v1115
    %v1180 = vsel %vm1052, %v988, %v1116
    %v1181 = vsel %vm1053, %v989, %v1117
    %v1182 = vsel %vm1054, %v990, %v1118
    %v1183 = vsel %vm1055, %v991, %v1119
    %v1184 = vsel %vm1056, %v992, %v1120
    %v1185 = vsel %vm1057, %v993, %v1121
    %v1186 = vsel %vm1058, %v994, %v1122
    %v1187 = vsel %vm1059, %v995, %v1123
    %v1188 = vsel %vm1060, %v996, %v1124
    %v1189 = vsel %vm1061, %v997, %v1125
    %v1190 = vsel %vm1062, %v998, %v1126
    %v1191 = vsel %vm1063, %v999, %v1127
    %v1192 = vsel %vm1064, %v1000, %v1128
    %v1193 = vsel %vm1065, %v1001, %v1129
    %v1194 = vsel %vm1066, %v1002, %v1130
    %v1195 = vsel %vm1067, %v1003, %v1131
    %v1196 = vsel %vm1068, %v1004, %v1132
    %v1197 = vsel %vm1069, %v1005, %v1133
    %v1198 = vsel %vm1070, %v1006, %v1134
    %v1199 = vsel %vm1071, %v1007, %v1135
    %v1200 = vsel %vm1072, %v1008, %v1136
    %v1201 = vsel %vm1073, %v1009, %v1137
    %v1202 = vsel %vm1074, %v1010, %v1138
    %v1203 = vsel %vm1075, %v1011, %v1139
    %v1204 = vsel %vm1076, %v1012, %v1140
    %v1205 = vsel %vm1077, %v1013, %v1141
    %v1206 = vsel %vm1078, %v1014, %v1142
    %v1207 = vsel %vm1079, %v1015, %v1143
    %v1208 = vsel %vm1080, %v1016, %v1144
    %v1209 = vsel %vm1081, %v1017, %v1145
    %v1210 = vsel %vm1082, %v1018, %v1146
    %v1211 = vsel %vm1083, %v1019, %v1147
    %v1212 = vsel %vm1084, %v1020, %v1148
    %v1213 = vsel %vm1085, %v1021, %v1149
    %v1214 = vpack.c.bf16 %v1151, %v1150
    %v1215 = vpack.c.bf16 %v1153, %v1152
    %v1216 = vpack.c.bf16 %v1155, %v1154
    %v1217 = vpack.c.bf16 %v1157, %v1156
    %v1218 = vpack.c.bf16 %v1159, %v1158
    %v1219 = vpack.c.bf16 %v1161, %v1160
    %v1220 = vpack.c.bf16 %v1163, %v1162
    %v1221 = vpack.c.bf16 %v1165, %v1164
    %v1222 = vpack.c.bf16 %v1167, %v1166
    %v1223 = vpack.c.bf16 %v1169, %v1168
    %v1224 = vpack.c.bf16 %v1171, %v1170
    %v1225 = vpack.c.bf16 %v1173, %v1172
    %v1226 = vpack.c.bf16 %v1175, %v1174
    %v1227 = vpack.c.bf16 %v1177, %v1176
    %v1228 = vpack.c.bf16 %v1179, %v1178
    %v1229 = vpack.c.bf16 %v1181, %v1180
    %v1230 = vpack.c.bf16 %v1183, %v1182
    %v1231 = vpack.c.bf16 %v1185, %v1184
    %v1232 = vpack.c.bf16 %v1187, %v1186
    %v1233 = vpack.c.bf16 %v1189, %v1188
    %v1234 = vpack.c.bf16 %v1191, %v1190
    %v1235 = vpack.c.bf16 %v1193, %v1192
    %v1236 = vpack.c.bf16 %v1195, %v1194
    %v1237 = vpack.c.bf16 %v1197, %v1196
    %v1238 = vpack.c.bf16 %v1199, %v1198
    %v1239 = vpack.c.bf16 %v1201, %v1200
    %v1240 = vpack.c.bf16 %v1203, %v1202
    %v1241 = vpack.c.bf16 %v1205, %v1204
    %v1242 = vpack.c.bf16 %v1207, %v1206
    %v1243 = vpack.c.bf16 %v1209, %v1208
    %v1244 = vpack.c.bf16 %v1211, %v1210
    %v1245 = vpack.c.bf16 %v1213, %v1212
    %v1278 = vunpack.c.l.b16 %v1214
    %v1279 = vunpack.c.h.b16 %v1214
    %v1280 = vunpack.c.l.b16 %v1215
    %v1281 = vunpack.c.h.b16 %v1215
    %v1282 = vunpack.c.l.b16 %v1216
    %v1283 = vunpack.c.h.b16 %v1216
    %v1284 = vunpack.c.l.b16 %v1217
    %v1285 = vunpack.c.h.b16 %v1217
    %v1286 = vunpack.c.l.b16 %v1218
    %v1287 = vunpack.c.h.b16 %v1218
    %v1288 = vunpack.c.l.b16 %v1219
    %v1289 = vunpack.c.h.b16 %v1219
    %v1290 = vunpack.c.l.b16 %v1220
    %v1291 = vunpack.c.h.b16 %v1220
    %v1292 = vunpack.c.l.b16 %v1221
    %v1293 = vunpack.c.h.b16 %v1221
    %v1294 = vunpack.c.l.b16 %v1222
    %v1295 = vunpack.c.h.b16 %v1222
    %v1296 = vunpack.c.l.b16 %v1223
    %v1297 = vunpack.c.h.b16 %v1223
    %v1298 = vunpack.c.l.b16 %v1224
    %v1299 = vunpack.c.h.b16 %v1224
    %v1300 = vunpack.c.l.b16 %v1225
    %v1301 = vunpack.c.h.b16 %v1225
    %v1302 = vunpack.c.l.b16 %v1226
    %v1303 = vunpack.c.h.b16 %v1226
    %v1304 = vunpack.c.l.b16 %v1227
    %v1305 = vunpack.c.h.b16 %v1227
    %v1306 = vunpack.c.l.b16 %v1228
    %v1307 = vunpack.c.h.b16 %v1228
    %v1308 = vunpack.c.l.b16 %v1229
    %v1309 = vunpack.c.h.b16 %v1229
    %v1310 = vunpack.c.l.b16 %v1230
    %v1311 = vunpack.c.h.b16 %v1230
    %v1312 = vunpack.c.l.b16 %v1231
    %v1313 = vunpack.c.h.b16 %v1231
    %v1314 = vunpack.c.l.b16 %v1232
    %v1315 = vunpack.c.h.b16 %v1232
    %v1316 = vunpack.c.l.b16 %v1233
    %v1317 = vunpack.c.h.b16 %v1233
    %v1318 = vunpack.c.l.b16 %v1234
    %v1319 = vunpack.c.h.b16 %v1234
    %v1320 = vunpack.c.l.b16 %v1235
    %v1321 = vunpack.c.h.b16 %v1235
    %v1322 = vunpack.c.l.b16 %v1236
    %v1323 = vunpack.c.h.b16 %v1236
    %v1324 = vunpack.c.l.b16 %v1237
    %v1325 = vunpack.c.h.b16 %v1237
    %v1326 = vunpack.c.l.b16 %v1238
    %v1327 = vunpack.c.h.b16 %v1238
    %v1328 = vunpack.c.l.b16 %v1239
    %v1329 = vunpack.c.h.b16 %v1239
    %v1330 = vunpack.c.l.b16 %v1240
    %v1331 = vunpack.c.h.b16 %v1240
    %v1332 = vunpack.c.l.b16 %v1241
    %v1333 = vunpack.c.h.b16 %v1241
    %v1334 = vunpack.c.l.b16 %v1242
    %v1335 = vunpack.c.h.b16 %v1242
    %v1336 = vunpack.c.l.b16 %v1243
    %v1337 = vunpack.c.h.b16 %v1243
    %v1338 = vunpack.c.l.b16 %v1244
    %v1339 = vunpack.c.h.b16 %v1244
    %v1340 = vunpack.c.l.b16 %v1245
    %v1341 = vunpack.c.h.b16 %v1245
    %v1342 = vpack.c.b16 %v1278, %v1278
    %v1343 = vpack.c.b16 %v1279, %v1279
    %v1344 = vpack.c.b16 %v1280, %v1280
    %v1345 = vpack.c.b16 %v1281, %v1281
    %v1346 = vpack.c.b16 %v1282, %v1282
    %v1347 = vpack.c.b16 %v1283, %v1283
    %v1348 = vpack.c.b16 %v1284, %v1284
    %v1349 = vpack.c.b16 %v1285, %v1285
    %v1350 = vpack.c.b16 %v1286, %v1286
    %v1351 = vpack.c.b16 %v1287, %v1287
    %v1352 = vpack.c.b16 %v1288, %v1288
    %v1353 = vpack.c.b16 %v1289, %v1289
    %v1354 = vpack.c.b16 %v1290, %v1290
    %v1355 = vpack.c.b16 %v1291, %v1291
    %v1356 = vpack.c.b16 %v1292, %v1292
    %v1357 = vpack.c.b16 %v1293, %v1293
    %v1358 = vpack.c.b16 %v1294, %v1294
    %v1359 = vpack.c.b16 %v1295, %v1295
    %v1360 = vpack.c.b16 %v1296, %v1296
    %v1361 = vpack.c.b16 %v1297, %v1297
    %v1362 = vpack.c.b16 %v1298, %v1298
    %v1363 = vpack.c.b16 %v1299, %v1299
    %v1364 = vpack.c.b16 %v1300, %v1300
    %v1365 = vpack.c.b16 %v1301, %v1301
    %v1366 = vpack.c.b16 %v1302, %v1302
    %v1367 = vpack.c.b16 %v1303, %v1303
    %v1368 = vpack.c.b16 %v1304, %v1304
    %v1369 = vpack.c.b16 %v1305, %v1305
    %v1370 = vpack.c.b16 %v1306, %v1306
    %v1371 = vpack.c.b16 %v1307, %v1307
    %v1372 = vpack.c.b16 %v1308, %v1308
    %v1373 = vpack.c.b16 %v1309, %v1309
    %v1374 = vpack.c.b16 %v1310, %v1310
    %v1375 = vpack.c.b16 %v1311, %v1311
    %v1376 = vpack.c.b16 %v1312, %v1312
    %v1377 = vpack.c.b16 %v1313, %v1313
    %v1378 = vpack.c.b16 %v1314, %v1314
    %v1379 = vpack.c.b16 %v1315, %v1315
    %v1380 = vpack.c.b16 %v1316, %v1316
    %v1381 = vpack.c.b16 %v1317, %v1317
    %v1382 = vpack.c.b16 %v1318, %v1318
    %v1383 = vpack.c.b16 %v1319, %v1319
    %v1384 = vpack.c.b16 %v1320, %v1320
    %v1385 = vpack.c.b16 %v1321, %v1321
    %v1386 = vpack.c.b16 %v1322, %v1322
    %v1387 = vpack.c.b16 %v1323, %v1323
    %v1388 = vpack.c.b16 %v1324, %v1324
    %v1389 = vpack.c.b16 %v1325, %v1325
    %v1390 = vpack.c.b16 %v1326, %v1326
    %v1391 = vpack.c.b16 %v1327, %v1327
    %v1392 = vpack.c.b16 %v1328, %v1328
    %v1393 = vpack.c.b16 %v1329, %v1329
    %v1394 = vpack.c.b16 %v1330, %v1330
    %v1395 = vpack.c.b16 %v1331, %v1331
    %v1396 = vpack.c.b16 %v1332, %v1332
    %v1397 = vpack.c.b16 %v1333, %v1333
    %v1398 = vpack.c.b16 %v1334, %v1334
    %v1399 = vpack.c.b16 %v1335, %v1335
    %v1400 = vpack.c.b16 %v1336, %v1336
    %v1401 = vpack.c.b16 %v1337, %v1337
    %v1402 = vpack.c.b16 %v1338, %v1338
    %v1403 = vpack.c.b16 %v1339, %v1339
    %v1404 = vpack.c.b16 %v1340, %v1340
    %v1405 = vpack.c.b16 %v1341, %v1341
    %1470 = vst [vmem:[%s3] sm:$0xf] %v1342
    %1471 = vst [vmem:[%s3 + $0x4] sm:$0xf] %v1343
    %1472 = vst [vmem:[%s3 + $0x8] sm:$0xf] %v1344
    %1473 = vst [vmem:[%s3 + $0xc] sm:$0xf] %v1345
    %1474 = vst [vmem:[%s3 + $0x10] sm:$0xf] %v1346
    %1475 = vst [vmem:[%s3 + $0x14] sm:$0xf] %v1347
    %1476 = vst [vmem:[%s3 + $0x18] sm:$0xf] %v1348
    %1477 = vst [vmem:[%s3 + $0x1c] sm:$0xf] %v1349
    %1478 = vst [vmem:[%s3 + $0x20] sm:$0xf] %v1350
    %1479 = vst [vmem:[%s3 + $0x24] sm:$0xf] %v1351
    %1480 = vst [vmem:[%s3 + $0x28] sm:$0xf] %v1352
    %1481 = vst [vmem:[%s3 + $0x2c] sm:$0xf] %v1353
    %1482 = vst [vmem:[%s3 + $0x30] sm:$0xf] %v1354
    %1483 = vst [vmem:[%s3 + $0x34] sm:$0xf] %v1355
    %1484 = vst [vmem:[%s3 + $0x38] sm:$0xf] %v1356
    %1485 = vst [vmem:[%s3 + $0x3c] sm:$0xf] %v1357
    %1486 = vst [vmem:[%s3 + $0x40] sm:$0xf] %v1358
    %1487 = vst [vmem:[%s3 + $0x44] sm:$0xf] %v1359
    %1488 = vst [vmem:[%s3 + $0x48] sm:$0xf] %v1360
    %1489 = vst [vmem:[%s3 + $0x4c] sm:$0xf] %v1361
    %1490 = vst [vmem:[%s3 + $0x50] sm:$0xf] %v1362
    %1491 = vst [vmem:[%s3 + $0x54] sm:$0xf] %v1363
    %1492 = vst [vmem:[%s3 + $0x58] sm:$0xf] %v1364
    %1493 = vst [vmem:[%s3 + $0x5c] sm:$0xf] %v1365
    %1494 = vst [vmem:[%s3 + $0x60] sm:$0xf] %v1366
    %1495 = vst [vmem:[%s3 + $0x64] sm:$0xf] %v1367
    %1496 = vst [vmem:[%s3 + $0x68] sm:$0xf] %v1368
    %1497 = vst [vmem:[%s3 + $0x6c] sm:$0xf] %v1369
    %1498 = vst [vmem:[%s3 + $0x70] sm:$0xf] %v1370
    %1499 = vst [vmem:[%s3 + $0x74] sm:$0xf] %v1371
    %1500 = vst [vmem:[%s3 + $0x78] sm:$0xf] %v1372
    %1501 = vst [vmem:[%s3 + $0x7c] sm:$0xf] %v1373
    %1502 = vst [vmem:[%s3 + $0x80] sm:$0xf] %v1374
    %1503 = vst [vmem:[%s3 + $0x84] sm:$0xf] %v1375
    %1504 = vst [vmem:[%s3 + $0x88] sm:$0xf] %v1376
    %1505 = vst [vmem:[%s3 + $0x8c] sm:$0xf] %v1377
    %1506 = vst [vmem:[%s3 + $0x90] sm:$0xf] %v1378
    %1507 = vst [vmem:[%s3 + $0x94] sm:$0xf] %v1379
    %1508 = vst [vmem:[%s3 + $0x98] sm:$0xf] %v1380
    %1509 = vst [vmem:[%s3 + $0x9c] sm:$0xf] %v1381
    %1510 = vst [vmem:[%s3 + $0xa0] sm:$0xf] %v1382
    %1511 = vst [vmem:[%s3 + $0xa4] sm:$0xf] %v1383
    %1512 = vst [vmem:[%s3 + $0xa8] sm:$0xf] %v1384
    %1513 = vst [vmem:[%s3 + $0xac] sm:$0xf] %v1385
    %1514 = vst [vmem:[%s3 + $0xb0] sm:$0xf] %v1386
    %1515 = vst [vmem:[%s3 + $0xb4] sm:$0xf] %v1387
    %1516 = vst [vmem:[%s3 + $0xb8] sm:$0xf] %v1388
    %1517 = vst [vmem:[%s3 + $0xbc] sm:$0xf] %v1389
    %1518 = vst [vmem:[%s3 + $0xc0] sm:$0xf] %v1390
    %1519 = vst [vmem:[%s3 + $0xc4] sm:$0xf] %v1391
    %1520 = vst [vmem:[%s3 + $0xc8] sm:$0xf] %v1392
    %1521 = vst [vmem:[%s3 + $0xcc] sm:$0xf] %v1393
    %1522 = vst [vmem:[%s3 + $0xd0] sm:$0xf] %v1394
    %1523 = vst [vmem:[%s3 + $0xd4] sm:$0xf] %v1395
    %1524 = vst [vmem:[%s3 + $0xd8] sm:$0xf] %v1396
    %1525 = vst [vmem:[%s3 + $0xdc] sm:$0xf] %v1397
    %1526 = vst [vmem:[%s3 + $0xe0] sm:$0xf] %v1398
    %1527 = vst [vmem:[%s3 + $0xe4] sm:$0xf] %v1399
    %1528 = vst [vmem:[%s3 + $0xe8] sm:$0xf] %v1400
    %1529 = vst [vmem:[%s3 + $0xec] sm:$0xf] %v1401
    %1530 = vst [vmem:[%s3 + $0xf0] sm:$0xf] %v1402
    %1531 = vst [vmem:[%s3 + $0xf4] sm:$0xf] %v1403
    %1532 = vst [vmem:[%s3 + $0xf8] sm:$0xf] %v1404
    %1533 = vst [vmem:[%s3 + $0xfc] sm:$0xf] %v1405
  $region21: #{_lambda_.5} parent=0 // pred_fallthru
    _
  // Predicated region
  $region22: #{_lambda_.5} parent=0 // pred_check
    _
  $region23: #{_lambda_.5} parent=0 // pred_check_branch
    %1535 = sbr.rel (0) target = $region25
  $region24: #{_lambda_.5} parent=0 // pred_region
    _
  $region25: #{_lambda_.5} parent=0 // pred_fallthru
    _
  // Predicated region
  $region26: #{_lambda_.5} parent=0 // pred_check
    _
  $region27: #{_lambda_.5} parent=0 // pred_check_branch
    %1537 = sbr.rel (0) target = $region29
  $region28: #{_lambda_.5} parent=0 // pred_region
    _
  $region29: #{_lambda_.5} parent=0 // pred_fallthru
    _

// kernel: _lambda_.6
$region0: #{_lambda_.6}
  #allocation0 [shape = 'u32[]', space=smem, size = 0x4, offset = 0x4, fixed_abs, tag = 'smem constant byte address 0x4 - core index']
  #allocation1 [shape = 'u32[144,128]{1,0:T(1,128)}', space=vmem, size = 0x12000, scoped, tag = 'internal scratch']
  #allocation2 [shape = 'f32[128,128]{1,0:T(8,128)}', space=vmem, size = 0x10000, scoped, tag = 'scratch operand']
  %s0 = inlined_call_operand.vmem [shape: bf16[128,256], index: 0, kind: input, shape index: {}]
  %s1 = inlined_call_operand.vmem [shape: bf16[256,128], index: 1, kind: input, shape index: {}]
  %s2 = inlined_call_operand.vmem [shape: bf16[128,128], index: 2, kind: output, shape index: {0}]
  %s3 = inlined_call_operand.vmem [shape: f32[1,1,128], index: 3, kind: output, shape index: {1}]
  %s4 = inlined_call_operand.vmem [shape: f32[1,1,128], index: 4, kind: output, shape index: {2}]
  %5 = xla_tuple %s2, %s3, %s4
  %s6 = sld [smem:[#allocation0]]
  $region42: #{_lambda_.6} parent=0
    _
  %s8 = ssub.s32 1, %s6
  %s9 = scalar_select 0, %s8, %s6
  // Predicated region
  $region2: #{_lambda_.6} parent=0 // pred_check
    _
  $region3: #{_lambda_.6} parent=0 // pred_check_branch
    %11 = sbr.rel (0) target = $region5
  $region4: #{_lambda_.6} parent=0 // pred_region
    _
  $region5: #{_lambda_.6} parent=0 // pred_fallthru
    _
  // Predicated region
  $region6: #{_lambda_.6} parent=0 // pred_check
    _
  $region7: #{_lambda_.6} parent=0 // pred_check_branch
    %13 = sbr.rel (0) target = $region9
  $region8: #{_lambda_.6} parent=0 // pred_region
    _
  $region9: #{_lambda_.6} parent=0 // pred_fallthru
    _
  %p15 = scmp.eq.s32.totalorder 0, 0
  // Predicated region
  $region10: #{_lambda_.6} parent=0 // pred_check
    %p16 = pneg %p15
  $region11: #{_lambda_.6} parent=0 // pred_check_branch
    %18 = sbr.rel (%p16) target = $region13
  $region12: #{_lambda_.6} parent=0 // pred_region
    %19 = vst [vmem:[#allocation2] sm:$0xff] 0.0
    %20 = vst [vmem:[#allocation2 + $0x8] sm:$0xff] 0.0
    %21 = vst [vmem:[#allocation2 + $0x10] sm:$0xff] 0.0
    %22 = vst [vmem:[#allocation2 + $0x18] sm:$0xff] 0.0
    %23 = vst [vmem:[#allocation2 + $0x20] sm:$0xff] 0.0
    %24 = vst [vmem:[#allocation2 + $0x28] sm:$0xff] 0.0
    %25 = vst [vmem:[#allocation2 + $0x30] sm:$0xff] 0.0
    %26 = vst [vmem:[#allocation2 + $0x38] sm:$0xff] 0.0
    %27 = vst [vmem:[#allocation2 + $0x40] sm:$0xff] 0.0
    %28 = vst [vmem:[#allocation2 + $0x48] sm:$0xff] 0.0
    %29 = vst [vmem:[#allocation2 + $0x50] sm:$0xff] 0.0
    %30 = vst [vmem:[#allocation2 + $0x58] sm:$0xff] 0.0
    %31 = vst [vmem:[#allocation2 + $0x60] sm:$0xff] 0.0
    %32 = vst [vmem:[#allocation2 + $0x68] sm:$0xff] 0.0
    %33 = vst [vmem:[#allocation2 + $0x70] sm:$0xff] 0.0
    %34 = vst [vmem:[#allocation2 + $0x78] sm:$0xff] 0.0
  $region13: #{_lambda_.6} parent=0 // pred_fallthru
    _
  %v35 = vld [vmem:[#allocation2] sm:$0xff]
  %v36 = vld [vmem:[#allocation2 + $0x8] sm:$0xff]
  %v37 = vld [vmem:[#allocation2 + $0x10] sm:$0xff]
  %v38 = vld [vmem:[#allocation2 + $0x18] sm:$0xff]
  %v39 = vld [vmem:[#allocation2 + $0x20] sm:$0xff]
  %v40 = vld [vmem:[#allocation2 + $0x28] sm:$0xff]
  %v41 = vld [vmem:[#allocation2 + $0x30] sm:$0xff]
  %v42 = vld [vmem:[#allocation2 + $0x38] sm:$0xff]
  %v43 = vld [vmem:[#allocation2 + $0x40] sm:$0xff]
  %v44 = vld [vmem:[#allocation2 + $0x48] sm:$0xff]
  %v45 = vld [vmem:[#allocation2 + $0x50] sm:$0xff]
  %v46 = vld [vmem:[#allocation2 + $0x58] sm:$0xff]
  %v47 = vld [vmem:[#allocation2 + $0x60] sm:$0xff]
  %v48 = vld [vmem:[#allocation2 + $0x68] sm:$0xff]
  %v49 = vld [vmem:[#allocation2 + $0x70] sm:$0xff]
  %v50 = vld [vmem:[#allocation2 + $0x78] sm:$0xff]
  %v51 = vld [vmem:[%s0] sm:$0xff]
  %v52 = vld [vmem:[%s0 + $0x8] sm:$0xff]
  %v53 = vld [vmem:[%s0 + $0x10] sm:$0xff]
  %v54 = vld [vmem:[%s0 + $0x18] sm:$0xff]
  %v55 = vld [vmem:[%s0 + $0x20] sm:$0xff]
  %v56 = vld [vmem:[%s0 + $0x28] sm:$0xff]
  %v57 = vld [vmem:[%s0 + $0x30] sm:$0xff]
  %v58 = vld [vmem:[%s0 + $0x38] sm:$0xff]
  %v59 = vld [vmem:[%s0 + $0x40] sm:$0xff]
  %v60 = vld [vmem:[%s0 + $0x48] sm:$0xff]
  %v61 = vld [vmem:[%s0 + $0x50] sm:$0xff]
  %v62 = vld [vmem:[%s0 + $0x58] sm:$0xff]
  %v63 = vld [vmem:[%s0 + $0x60] sm:$0xff]
  %v64 = vld [vmem:[%s0 + $0x68] sm:$0xff]
  %v65 = vld [vmem:[%s0 + $0x70] sm:$0xff]
  %v66 = vld [vmem:[%s0 + $0x78] sm:$0xff]
  %v67 = vld [vmem:[%s1] sm:$0xf]
  %v68 = vld [vmem:[%s1 + $0x4] sm:$0xf]
  %v69 = vld [vmem:[%s1 + $0x8] sm:$0xf]
  %v70 = vld [vmem:[%s1 + $0xc] sm:$0xf]
  %v71 = vld [vmem:[%s1 + $0x10] sm:$0xf]
  %v72 = vld [vmem:[%s1 + $0x14] sm:$0xf]
  %v73 = vld [vmem:[%s1 + $0x18] sm:$0xf]
  %v74 = vld [vmem:[%s1 + $0x1c] sm:$0xf]
  %v75 = vld [vmem:[%s1 + $0x20] sm:$0xf]
  %v76 = vld [vmem:[%s1 + $0x24] sm:$0xf]
  %v77 = vld [vmem:[%s1 + $0x28] sm:$0xf]
  %v78 = vld [vmem:[%s1 + $0x2c] sm:$0xf]
  %v79 = vld [vmem:[%s1 + $0x30] sm:$0xf]
  %v80 = vld [vmem:[%s1 + $0x34] sm:$0xf]
  %v81 = vld [vmem:[%s1 + $0x38] sm:$0xf]
  %v82 = vld [vmem:[%s1 + $0x3c] sm:$0xf]
  %v83 = vld [vmem:[%s1 + $0x40] sm:$0xf]
  %v84 = vld [vmem:[%s1 + $0x44] sm:$0xf]
  %v85 = vld [vmem:[%s1 + $0x48] sm:$0xf]
  %v86 = vld [vmem:[%s1 + $0x4c] sm:$0xf]
  %v87 = vld [vmem:[%s1 + $0x50] sm:$0xf]
  %v88 = vld [vmem:[%s1 + $0x54] sm:$0xf]
  %v89 = vld [vmem:[%s1 + $0x58] sm:$0xf]
  %v90 = vld [vmem:[%s1 + $0x5c] sm:$0xf]
  %v91 = vld [vmem:[%s1 + $0x60] sm:$0xf]
  %v92 = vld [vmem:[%s1 + $0x64] sm:$0xf]
  %v93 = vld [vmem:[%s1 + $0x68] sm:$0xf]
  %v94 = vld [vmem:[%s1 + $0x6c] sm:$0xf]
  %v95 = vld [vmem:[%s1 + $0x70] sm:$0xf]
  %v96 = vld [vmem:[%s1 + $0x74] sm:$0xf]
  %v97 = vld [vmem:[%s1 + $0x78] sm:$0xf]
  %v98 = vld [vmem:[%s1 + $0x7c] sm:$0xf]
  %v115 = vunpack.c.l.b16 %v51
  %v116 = vunpack.c.h.b16 %v51
  %v117 = vunpack.c.l.b16 %v52
  %v118 = vunpack.c.h.b16 %v52
  %v119 = vunpack.c.l.b16 %v53
  %v120 = vunpack.c.h.b16 %v53
  %v121 = vunpack.c.l.b16 %v54
  %v122 = vunpack.c.h.b16 %v54
  %v123 = vunpack.c.l.b16 %v55
  %v124 = vunpack.c.h.b16 %v55
  %v125 = vunpack.c.l.b16 %v56
  %v126 = vunpack.c.h.b16 %v56
  %v127 = vunpack.c.l.b16 %v57
  %v128 = vunpack.c.h.b16 %v57
  %v129 = vunpack.c.l.b16 %v58
  %v130 = vunpack.c.h.b16 %v58
  %v131 = vunpack.c.l.b16 %v59
  %v132 = vunpack.c.h.b16 %v59
  %v133 = vunpack.c.l.b16 %v60
  %v134 = vunpack.c.h.b16 %v60
  %v135 = vunpack.c.l.b16 %v61
  %v136 = vunpack.c.h.b16 %v61
  %v137 = vunpack.c.l.b16 %v62
  %v138 = vunpack.c.h.b16 %v62
  %v139 = vunpack.c.l.b16 %v63
  %v140 = vunpack.c.h.b16 %v63
  %v141 = vunpack.c.l.b16 %v64
  %v142 = vunpack.c.h.b16 %v64
  %v143 = vunpack.c.l.b16 %v65
  %v144 = vunpack.c.h.b16 %v65
  %v145 = vunpack.c.l.b16 %v66
  %v146 = vunpack.c.h.b16 %v66
  %v147 = vpack.c.b16 %v117, %v115
  %v148 = vpack.c.b16 %v118, %v116
  %v149 = vpack.c.b16 %v121, %v119
  %v150 = vpack.c.b16 %v122, %v120
  %v151 = vpack.c.b16 %v125, %v123
  %v152 = vpack.c.b16 %v126, %v124
  %v153 = vpack.c.b16 %v129, %v127
  %v154 = vpack.c.b16 %v130, %v128
  %v155 = vpack.c.b16 %v133, %v131
  %v156 = vpack.c.b16 %v134, %v132
  %v157 = vpack.c.b16 %v137, %v135
  %v158 = vpack.c.b16 %v138, %v136
  %v159 = vpack.c.b16 %v141, %v139
  %v160 = vpack.c.b16 %v142, %v140
  %v161 = vpack.c.b16 %v145, %v143
  %v162 = vpack.c.b16 %v146, %v144
  %v211 = vunpack.c.l.b16 %v67
  %v212 = vunpack.c.l.b16 %v68
  %v213 = vunpack.c.l.b16 %v69
  %v214 = vunpack.c.l.b16 %v70
  %v215 = vunpack.c.l.b16 %v71
  %v216 = vunpack.c.l.b16 %v72
  %v217 = vunpack.c.l.b16 %v73
  %v218 = vunpack.c.l.b16 %v74
  %v219 = vunpack.c.l.b16 %v75
  %v220 = vunpack.c.l.b16 %v76
  %v221 = vunpack.c.l.b16 %v77
  %v222 = vunpack.c.l.b16 %v78
  %v223 = vunpack.c.l.b16 %v79
  %v224 = vunpack.c.l.b16 %v80
  %v225 = vunpack.c.l.b16 %v81
  %v226 = vunpack.c.l.b16 %v82
  %v227 = vunpack.c.l.b16 %v83
  %v228 = vunpack.c.l.b16 %v84
  %v229 = vunpack.c.l.b16 %v85
  %v230 = vunpack.c.l.b16 %v86
  %v231 = vunpack.c.l.b16 %v87
  %v232 = vunpack.c.l.b16 %v88
  %v233 = vunpack.c.l.b16 %v89
  %v234 = vunpack.c.l.b16 %v90
  %v235 = vunpack.c.l.b16 %v91
  %v236 = vunpack.c.l.b16 %v92
  %v237 = vunpack.c.l.b16 %v93
  %v238 = vunpack.c.l.b16 %v94
  %v239 = vunpack.c.l.b16 %v95
  %v240 = vunpack.c.l.b16 %v96
  %v241 = vunpack.c.l.b16 %v97
  %v242 = vunpack.c.l.b16 %v98
  %v243 = vpack.c.b16 %v212, %v211
  %v244 = vpack.c.b16 %v214, %v213
  %v245 = vpack.c.b16 %v216, %v215
  %v246 = vpack.c.b16 %v218, %v217
  %v247 = vpack.c.b16 %v220, %v219
  %v248 = vpack.c.b16 %v222, %v221
  %v249 = vpack.c.b16 %v224, %v223
  %v250 = vpack.c.b16 %v226, %v225
  %v251 = vpack.c.b16 %v228, %v227
  %v252 = vpack.c.b16 %v230, %v229
  %v253 = vpack.c.b16 %v232, %v231
  %v254 = vpack.c.b16 %v234, %v233
  %v255 = vpack.c.b16 %v236, %v235
  %v256 = vpack.c.b16 %v238, %v237
  %v257 = vpack.c.b16 %v240, %v239
  %v258 = vpack.c.b16 %v242, %v241
  %275 = vmatprep.subr.bf16.mxu0 0
  %276 = vmatpush1.bf16.msra.mxu0 %v243
  %277 = vmatprep.subr.bf16.mxu0 0
  %278 = vmatpush1.bf16.msra.mxu0 %v244
  %279 = vmatprep.subr.bf16.mxu0 0
  %280 = vmatpush1.bf16.msra.mxu0 %v245
  %281 = vmatprep.subr.bf16.mxu0 0
  %282 = vmatpush1.bf16.msra.mxu0 %v246
  %283 = vmatprep.subr.bf16.mxu0 0
  %284 = vmatpush1.bf16.msra.mxu0 %v247
  %285 = vmatprep.subr.bf16.mxu0 0
  %286 = vmatpush1.bf16.msra.mxu0 %v248
  %287 = vmatprep.subr.bf16.mxu0 0
  %288 = vmatpush1.bf16.msra.mxu0 %v249
  %289 = vmatprep.subr.bf16.mxu0 0
  %290 = vmatpush1.bf16.msra.mxu0 %v250
  %291 = vmatprep.subr.bf16.mxu0 0
  %292 = vmatpush1.bf16.msra.mxu0 %v251
  %293 = vmatprep.subr.bf16.mxu0 0
  %294 = vmatpush1.bf16.msra.mxu0 %v252
  %295 = vmatprep.subr.bf16.mxu0 0
  %296 = vmatpush1.bf16.msra.mxu0 %v253
  %297 = vmatprep.subr.bf16.mxu0 0
  %298 = vmatpush1.bf16.msra.mxu0 %v254
  %299 = vmatprep.subr.bf16.mxu0 0
  %300 = vmatpush1.bf16.msra.mxu0 %v255
  %301 = vmatprep.subr.bf16.mxu0 0
  %302 = vmatpush1.bf16.msra.mxu0 %v256
  %303 = vmatprep.subr.bf16.mxu0 0
  %304 = vmatpush1.bf16.msra.mxu0 %v257
  %305 = vmatprep.subr.bf16.mxu0 0
  %306 = vmatpush1.bf16.msra.mxu0 %v258
  %307 = vmatprep.mubr.bf16.mxu0 %v148
  %308 = vmatmul.mubr.bf16.gmra.mrb[0].mxu0 %v147
  %v309 = vpop.f32.mrb[0].mxu0
  %v310 = vadd.f32 0.0, %v309
  %v311 = vpop.f32.mrb[0].mxu0
  %v312 = vpop.f32.mrb[0].mxu0
  %v313 = vadd.f32 0.0, %v312
  %v314 = vpop.f32.mrb[0].mxu0
  %315 = vmatprep.mubr.bf16.mxu0 %v150
  %316 = vmatmul.mubr.bf16.gmra.mrb[0].mxu0 %v149
  %v317 = vpop.f32.mrb[0].mxu0
  %v318 = vadd.f32 0.0, %v317
  %v319 = vpop.f32.mrb[0].mxu0
  %v320 = vpop.f32.mrb[0].mxu0
  %v321 = vadd.f32 0.0, %v320
  %v322 = vpop.f32.mrb[0].mxu0
  %323 = vmatprep.mubr.bf16.mxu0 %v152
  %324 = vmatmul.mubr.bf16.gmra.mrb[0].mxu0 %v151
  %v325 = vpop.f32.mrb[0].mxu0
  %v326 = vadd.f32 0.0, %v325
  %v327 = vpop.f32.mrb[0].mxu0
  %v328 = vpop.f32.mrb[0].mxu0
  %v329 = vadd.f32 0.0, %v328
  %v330 = vpop.f32.mrb[0].mxu0
  %331 = vmatprep.mubr.bf16.mxu0 %v154
  %332 = vmatmul.mubr.bf16.gmra.mrb[0].mxu0 %v153
  %v333 = vpop.f32.mrb[0].mxu0
  %v334 = vadd.f32 0.0, %v333
  %v335 = vpop.f32.mrb[0].mxu0
  %v336 = vpop.f32.mrb[0].mxu0
  %v337 = vadd.f32 0.0, %v336
  %v338 = vpop.f32.mrb[0].mxu0
  %339 = vmatprep.mubr.bf16.mxu0 %v156
  %340 = vmatmul.mubr.bf16.gmra.mrb[0].mxu0 %v155
  %v341 = vpop.f32.mrb[0].mxu0
  %v342 = vadd.f32 0.0, %v341
  %v343 = vpop.f32.mrb[0].mxu0
  %v344 = vpop.f32.mrb[0].mxu0
  %v345 = vadd.f32 0.0, %v344
  %v346 = vpop.f32.mrb[0].mxu0
  %347 = vmatprep.mubr.bf16.mxu0 %v158
  %348 = vmatmul.mubr.bf16.gmra.mrb[0].mxu0 %v157
  %v349 = vpop.f32.mrb[0].mxu0
  %v350 = vadd.f32 0.0, %v349
  %v351 = vpop.f32.mrb[0].mxu0
  %v352 = vpop.f32.mrb[0].mxu0
  %v353 = vadd.f32 0.0, %v352
  %v354 = vpop.f32.mrb[0].mxu0
  %355 = vmatprep.mubr.bf16.mxu0 %v160
  %356 = vmatmul.mubr.bf16.gmra.mrb[0].mxu0 %v159
  %v357 = vpop.f32.mrb[0].mxu0
  %v358 = vadd.f32 0.0, %v357
  %v359 = vpop.f32.mrb[0].mxu0
  %v360 = vpop.f32.mrb[0].mxu0
  %v361 = vadd.f32 0.0, %v360
  %v362 = vpop.f32.mrb[0].mxu0
  %363 = vmatprep.mubr.bf16.mxu0 %v162
  %364 = vmatmul.mubr.bf16.gmra.mrb[0].mxu0 %v161
  %v365 = vpop.f32.mrb[0].mxu0
  %v366 = vadd.f32 0.0, %v365
  %v367 = vpop.f32.mrb[0].mxu0
  %v368 = vpop.f32.mrb[0].mxu0
  %v369 = vadd.f32 0.0, %v368
  %v370 = vpop.f32.mrb[0].mxu0
  %371 = vdwg.mxu0
  %v372 = vadd.f32 %v35, %v310
  %v373 = vadd.f32 %v36, %v313
  %v374 = vadd.f32 %v37, %v318
  %v375 = vadd.f32 %v38, %v321
  %v376 = vadd.f32 %v39, %v326
  %v377 = vadd.f32 %v40, %v329
  %v378 = vadd.f32 %v41, %v334
  %v379 = vadd.f32 %v42, %v337
  %v380 = vadd.f32 %v43, %v342
  %v381 = vadd.f32 %v44, %v345
  %v382 = vadd.f32 %v45, %v350
  %v383 = vadd.f32 %v46, %v353
  %v384 = vadd.f32 %v47, %v358
  %v385 = vadd.f32 %v48, %v361
  %v386 = vadd.f32 %v49, %v366
  %v387 = vadd.f32 %v50, %v369
  %388 = vst [vmem:[#allocation2] sm:$0xff] %v372
  %389 = vst [vmem:[#allocation2 + $0x8] sm:$0xff] %v373
  %390 = vst [vmem:[#allocation2 + $0x10] sm:$0xff] %v374
  %391 = vst [vmem:[#allocation2 + $0x18] sm:$0xff] %v375
  %392 = vst [vmem:[#allocation2 + $0x20] sm:$0xff] %v376
  %393 = vst [vmem:[#allocation2 + $0x28] sm:$0xff] %v377
  %394 = vst [vmem:[#allocation2 + $0x30] sm:$0xff] %v378
  %395 = vst [vmem:[#allocation2 + $0x38] sm:$0xff] %v379
  %396 = vst [vmem:[#allocation2 + $0x40] sm:$0xff] %v380
  %397 = vst [vmem:[#allocation2 + $0x48] sm:$0xff] %v381
  %398 = vst [vmem:[#allocation2 + $0x50] sm:$0xff] %v382
  %399 = vst [vmem:[#allocation2 + $0x58] sm:$0xff] %v383
  %400 = vst [vmem:[#allocation2 + $0x60] sm:$0xff] %v384
  %401 = vst [vmem:[#allocation2 + $0x68] sm:$0xff] %v385
  %402 = vst [vmem:[#allocation2 + $0x70] sm:$0xff] %v386
  %403 = vst [vmem:[#allocation2 + $0x78] sm:$0xff] %v387
  // Predicated region
  $region14: #{_lambda_.6} parent=0 // pred_check
    %p404 = pneg %p15
  $region15: #{_lambda_.6} parent=0 // pred_check_branch
    %406 = sbr.rel (%p404) target = $region17
  $region16: #{_lambda_.6} parent=0 // pred_region
    %v407 = vld [vmem:[#allocation2] sm:$0xff]
    %v408 = vld [vmem:[#allocation2 + $0x8] sm:$0xff]
    %v409 = vld [vmem:[#allocation2 + $0x10] sm:$0xff]
    %v410 = vld [vmem:[#allocation2 + $0x18] sm:$0xff]
    %v411 = vld [vmem:[#allocation2 + $0x20] sm:$0xff]
    %v412 = vld [vmem:[#allocation2 + $0x28] sm:$0xff]
    %v413 = vld [vmem:[#allocation2 + $0x30] sm:$0xff]
    %v414 = vld [vmem:[#allocation2 + $0x38] sm:$0xff]
    %v415 = vld [vmem:[#allocation2 + $0x40] sm:$0xff]
    %v416 = vld [vmem:[#allocation2 + $0x48] sm:$0xff]
    %v417 = vld [vmem:[#allocation2 + $0x50] sm:$0xff]
    %v418 = vld [vmem:[#allocation2 + $0x58] sm:$0xff]
    %v419 = vld [vmem:[#allocation2 + $0x60] sm:$0xff]
    %v420 = vld [vmem:[#allocation2 + $0x68] sm:$0xff]
    %v421 = vld [vmem:[#allocation2 + $0x70] sm:$0xff]
    %v422 = vld [vmem:[#allocation2 + $0x78] sm:$0xff]
    %v423 = vpack.c.bf16 %v408, %v407
    %v424 = vpack.c.bf16 %v410, %v409
    %v425 = vpack.c.bf16 %v412, %v411
    %v426 = vpack.c.bf16 %v414, %v413
    %v427 = vpack.c.bf16 %v416, %v415
    %v428 = vpack.c.bf16 %v418, %v417
    %v429 = vpack.c.bf16 %v420, %v419
    %v430 = vpack.c.bf16 %v422, %v421
    %v439 = vunpack.c.l.b16 %v423
    %v440 = vunpack.c.h.b16 %v423
    %v441 = vunpack.c.l.b16 %v424
    %v442 = vunpack.c.h.b16 %v424
    %v443 = vunpack.c.l.b16 %v425
    %v444 = vunpack.c.h.b16 %v425
    %v445 = vunpack.c.l.b16 %v426
    %v446 = vunpack.c.h.b16 %v426
    %v447 = vunpack.c.l.b16 %v427
    %v448 = vunpack.c.h.b16 %v427
    %v449 = vunpack.c.l.b16 %v428
    %v450 = vunpack.c.h.b16 %v428
    %v451 = vunpack.c.l.b16 %v429
    %v452 = vunpack.c.h.b16 %v429
    %v453 = vunpack.c.l.b16 %v430
    %v454 = vunpack.c.h.b16 %v430
    %v455 = vpack.c.b16 %v439, %v439
    %v456 = vpack.c.b16 %v440, %v440
    %v457 = vpack.c.b16 %v441, %v441
    %v458 = vpack.c.b16 %v442, %v442
    %v459 = vpack.c.b16 %v443, %v443
    %v460 = vpack.c.b16 %v444, %v444
    %v461 = vpack.c.b16 %v445, %v445
    %v462 = vpack.c.b16 %v446, %v446
    %v463 = vpack.c.b16 %v447, %v447
    %v464 = vpack.c.b16 %v448, %v448
    %v465 = vpack.c.b16 %v449, %v449
    %v466 = vpack.c.b16 %v450, %v450
    %v467 = vpack.c.b16 %v451, %v451
    %v468 = vpack.c.b16 %v452, %v452
    %v469 = vpack.c.b16 %v453, %v453
    %v470 = vpack.c.b16 %v454, %v454
    %487 = vst [vmem:[%s2] sm:$0xf] %v455
    %488 = vst [vmem:[%s2 + $0x4] sm:$0xf] %v456
    %489 = vst [vmem:[%s2 + $0x8] sm:$0xf] %v457
    %490 = vst [vmem:[%s2 + $0xc] sm:$0xf] %v458
    %491 = vst [vmem:[%s2 + $0x10] sm:$0xf] %v459
    %492 = vst [vmem:[%s2 + $0x14] sm:$0xf] %v460
    %493 = vst [vmem:[%s2 + $0x18] sm:$0xf] %v461
    %494 = vst [vmem:[%s2 + $0x1c] sm:$0xf] %v462
    %495 = vst [vmem:[%s2 + $0x20] sm:$0xf] %v463
    %496 = vst [vmem:[%s2 + $0x24] sm:$0xf] %v464
    %497 = vst [vmem:[%s2 + $0x28] sm:$0xf] %v465
    %498 = vst [vmem:[%s2 + $0x2c] sm:$0xf] %v466
    %499 = vst [vmem:[%s2 + $0x30] sm:$0xf] %v467
    %500 = vst [vmem:[%s2 + $0x34] sm:$0xf] %v468
    %501 = vst [vmem:[%s2 + $0x38] sm:$0xf] %v469
    %502 = vst [vmem:[%s2 + $0x3c] sm:$0xf] %v470
    %v503 = vadd.f32 %v407, %v408
    %v504 = vadd.f32 %v503, %v409
    %v505 = vadd.f32 %v504, %v410
    %v506 = vadd.f32 %v505, %v411
    %v507 = vadd.f32 %v506, %v412
    %v508 = vadd.f32 %v507, %v413
    %v509 = vadd.f32 %v508, %v414
    %v510 = vadd.f32 %v509, %v415
    %v511 = vadd.f32 %v510, %v416
    %v512 = vadd.f32 %v511, %v417
    %v513 = vadd.f32 %v512, %v418
    %v514 = vadd.f32 %v513, %v419
    %v515 = vadd.f32 %v514, %v420
    %v516 = vadd.f32 %v515, %v421
    %v517 = vadd.f32 %v516, %v422
    %v518 = vrot.slane %v517, 4
    %v519 = vadd.f32 %v517, %v518
    %v520 = vrot.slane %v519, 2
    %v521 = vadd.f32 %v519, %v520
    %v522 = vrot.slane %v521, 1
    %v523 = vadd.f32 %v521, %v522
    %524 = vst [vmem:[%s3] sm:$0x1] %v523
    %v525 = vmul.f32 %v407, %v407
    %v526 = vmul.f32 %v408, %v408
    %v527 = vmul.f32 %v409, %v409
    %v528 = vmul.f32 %v410, %v410
    %v529 = vmul.f32 %v411, %v411
    %v530 = vmul.f32 %v412, %v412
    %v531 = vmul.f32 %v413, %v413
    %v532 = vmul.f32 %v414, %v414
    %v533 = vmul.f32 %v415, %v415
    %v534 = vmul.f32 %v416, %v416
    %v535 = vmul.f32 %v417, %v417
    %v536 = vmul.f32 %v418, %v418
    %v537 = vmul.f32 %v419, %v419
    %v538 = vmul.f32 %v420, %v420
    %v539 = vmul.f32 %v421, %v421
    %v540 = vmul.f32 %v422, %v422
    %v541 = vadd.f32 %v525, %v526
    %v542 = vadd.f32 %v541, %v527
    %v543 = vadd.f32 %v542, %v528
    %v544 = vadd.f32 %v543, %v529
    %v545 = vadd.f32 %v544, %v530
    %v546 = vadd.f32 %v545, %v531
    %v547 = vadd.f32 %v546, %v532
    %v548 = vadd.f32 %v547, %v533
    %v549 = vadd.f32 %v548, %v534
    %v550 = vadd.f32 %v549, %v535
    %v551 = vadd.f32 %v550, %v536
    %v552 = vadd.f32 %v551, %v537
    %v553 = vadd.f32 %v552, %v538
    %v554 = vadd.f32 %v553, %v539
    %v555 = vadd.f32 %v554, %v540
    %v556 = vrot.slane %v555, 4
    %v557 = vadd.f32 %v555, %v556
    %v558 = vrot.slane %v557, 2
    %v559 = vadd.f32 %v557, %v558
    %v560 = vrot.slane %v559, 1
    %v561 = vadd.f32 %v559, %v560
    %562 = vst [vmem:[%s4] sm:$0x1] %v561
  $region17: #{_lambda_.6} parent=0 // pred_fallthru
    _
  // Predicated region
  $region18: #{_lambda_.6} parent=0 // pred_check
    _
  $region19: #{_lambda_.6} parent=0 // pred_check_branch
    %564 = sbr.rel (0) target = $region21
  $region20: #{_lambda_.6} parent=0 // pred_region
    _
  $region21: #{_lambda_.6} parent=0 // pred_fallthru
    _
  // Predicated region
  $region22: #{_lambda_.6} parent=0 // pred_check
    _
  $region23: #{_lambda_.6} parent=0 // pred_check_branch
    %566 = sbr.rel (0) target = $region25
  $region24: #{_lambda_.6} parent=0 // pred_region
    _
  $region25: #{_lambda_.6} parent=0 // pred_fallthru
    _
  // Predicated region
  $region26: #{_lambda_.6} parent=0 // pred_check
    _
  $region27: #{_lambda_.6} parent=0 // pred_check_branch
    %568 = sbr.rel (0) target = $region29
  $region28: #{_lambda_.6} parent=0 // pred_region
    _
  $region29: #{_lambda_.6} parent=0 // pred_fallthru
    _
  // Predicated region
  $region30: #{_lambda_.6} parent=0 // pred_check
    _
  $region31: #{_lambda_.6} parent=0 // pred_check_branch
    %570 = sbr.rel (0) target = $region33
  $region32: #{_lambda_.6} parent=0 // pred_region
    _
  $region33: #{_lambda_.6} parent=0 // pred_fallthru
    _
  // Predicated region
  $region34: #{_lambda_.6} parent=0 // pred_check
    _
  $region35: #{_lambda_.6} parent=0 // pred_check_branch
    %572 = sbr.rel (0) target = $region37
  $region36: #{_lambda_.6} parent=0 // pred_region
    _
  $region37: #{_lambda_.6} parent=0 // pred_fallthru
    _
  // Predicated region
  $region38: #{_lambda_.6} parent=0 // pred_check
    _
  $region39: #{_lambda_.6} parent=0 // pred_check_branch
    %574 = sbr.rel (0) target = $region41
  $region40: #{_lambda_.6} parent=0 // pred_region
    _
  $region41: #{_lambda_.6} parent=0 // pred_fallthru
    _

// kernel: _lambda_.7
$region0: #{_lambda_.7}
  #allocation0 [shape = 'u32[]', space=smem, size = 0x4, offset = 0x4, fixed_abs, tag = 'smem constant byte address 0x4 - core index']
  #allocation1 [shape = 'u32[144,128]{1,0:T(1,128)}', space=vmem, size = 0x12000, scoped, tag = 'internal scratch']
  #allocation2 [shape = 'f32[32,128]{1,0:T(8,128)}', space=vmem, size = 0x4000, scoped, tag = 'scratch operand']
  %s0 = inlined_call_operand.vmem [shape: bf16[32,512], index: 0, kind: input, shape index: {}]
  %s1 = inlined_call_operand.vmem [shape: bf16[512,128], index: 1, kind: input, shape index: {}]
  %s2 = inlined_call_operand.vmem [shape: bf16[32,128], index: 2, kind: output, shape index: {0}]
  %s3 = inlined_call_operand.vmem [shape: f32[1,1,128], index: 3, kind: output, shape index: {1}]
  %s4 = inlined_call_operand.vmem [shape: f32[1,1,128], index: 4, kind: output, shape index: {2}]
  %5 = xla_tuple %s2, %s3, %s4
  %s6 = sld [smem:[#allocation0]]
  $region42: #{_lambda_.7} parent=0
    _
  %s8 = ssub.s32 1, %s6
  %s9 = scalar_select 0, %s8, %s6
  // Predicated region
  $region2: #{_lambda_.7} parent=0 // pred_check
    _
  $region3: #{_lambda_.7} parent=0 // pred_check_branch
    %11 = sbr.rel (0) target = $region5
  $region4: #{_lambda_.7} parent=0 // pred_region
    _
  $region5: #{_lambda_.7} parent=0 // pred_fallthru
    _
  // Predicated region
  $region6: #{_lambda_.7} parent=0 // pred_check
    _
  $region7: #{_lambda_.7} parent=0 // pred_check_branch
    %13 = sbr.rel (0) target = $region9
  $region8: #{_lambda_.7} parent=0 // pred_region
    _
  $region9: #{_lambda_.7} parent=0 // pred_fallthru
    _
  %p15 = scmp.eq.s32.totalorder 0, 0
  // Predicated region
  $region10: #{_lambda_.7} parent=0 // pred_check
    %p16 = pneg %p15
  $region11: #{_lambda_.7} parent=0 // pred_check_branch
    %18 = sbr.rel (%p16) target = $region13
  $region12: #{_lambda_.7} parent=0 // pred_region
    %19 = vst [vmem:[#allocation2] sm:$0xff] 0.0
    %20 = vst [vmem:[#allocation2 + $0x8] sm:$0xff] 0.0
    %21 = vst [vmem:[#allocation2 + $0x10] sm:$0xff] 0.0
    %22 = vst [vmem:[#allocation2 + $0x18] sm:$0xff] 0.0
  $region13: #{_lambda_.7} parent=0 // pred_fallthru
    _
  %v23 = vld [vmem:[#allocation2] sm:$0xff]
  %v24 = vld [vmem:[#allocation2 + $0x8] sm:$0xff]
  %v25 = vld [vmem:[#allocation2 + $0x10] sm:$0xff]
  %v26 = vld [vmem:[#allocation2 + $0x18] sm:$0xff]
  %v27 = vld [vmem:[%s0] sm:$0xff]
  %v28 = vld [vmem:[%s0 + $0x8] sm:$0xff]
  %v29 = vld [vmem:[%s0 + $0x10] sm:$0xff]
  %v30 = vld [vmem:[%s0 + $0x18] sm:$0xff]
  %v31 = vld [vmem:[%s0 + $0x20] sm:$0xff]
  %v32 = vld [vmem:[%s0 + $0x28] sm:$0xff]
  %v33 = vld [vmem:[%s0 + $0x30] sm:$0xff]
  %v34 = vld [vmem:[%s0 + $0x38] sm:$0xff]
  %v35 = vld [vmem:[%s1] sm:$0xf]
  %v36 = vld [vmem:[%s1 + $0x4] sm:$0xf]
  %v37 = vld [vmem:[%s1 + $0x8] sm:$0xf]
  %v38 = vld [vmem:[%s1 + $0xc] sm:$0xf]
  %v39 = vld [vmem:[%s1 + $0x10] sm:$0xf]
  %v40 = vld [vmem:[%s1 + $0x14] sm:$0xf]
  %v41 = vld [vmem:[%s1 + $0x18] sm:$0xf]
  %v42 = vld [vmem:[%s1 + $0x1c] sm:$0xf]
  %v43 = vld [vmem:[%s1 + $0x20] sm:$0xf]
  %v44 = vld [vmem:[%s1 + $0x24] sm:$0xf]
  %v45 = vld [vmem:[%s1 + $0x28] sm:$0xf]
  %v46 = vld [vmem:[%s1 + $0x2c] sm:$0xf]
  %v47 = vld [vmem:[%s1 + $0x30] sm:$0xf]
  %v48 = vld [vmem:[%s1 + $0x34] sm:$0xf]
  %v49 = vld [vmem:[%s1 + $0x38] sm:$0xf]
  %v50 = vld [vmem:[%s1 + $0x3c] sm:$0xf]
  %v51 = vld [vmem:[%s1 + $0x40] sm:$0xf]
  %v52 = vld [vmem:[%s1 + $0x44] sm:$0xf]
  %v53 = vld [vmem:[%s1 + $0x48] sm:$0xf]
  %v54 = vld [vmem:[%s1 + $0x4c] sm:$0xf]
  %v55 = vld [vmem:[%s1 + $0x50] sm:$0xf]
  %v56 = vld [vmem:[%s1 + $0x54] sm:$0xf]
  %v57 = vld [vmem:[%s1 + $0x58] sm:$0xf]
  %v58 = vld [vmem:[%s1 + $0x5c] sm:$0xf]
  %v59 = vld [vmem:[%s1 + $0x60] sm:$0xf]
  %v60 = vld [vmem:[%s1 + $0x64] sm:$0xf]
  %v61 = vld [vmem:[%s1 + $0x68] sm:$0xf]
  %v62 = vld [vmem:[%s1 + $0x6c] sm:$0xf]
  %v63 = vld [vmem:[%s1 + $0x70] sm:$0xf]
  %v64 = vld [vmem:[%s1 + $0x74] sm:$0xf]
  %v65 = vld [vmem:[%s1 + $0x78] sm:$0xf]
  %v66 = vld [vmem:[%s1 + $0x7c] sm:$0xf]
  %v67 = vld [vmem:[%s1 + $0x80] sm:$0xf]
  %v68 = vld [vmem:[%s1 + $0x84] sm:$0xf]
  %v69 = vld [vmem:[%s1 + $0x88] sm:$0xf]
  %v70 = vld [vmem:[%s1 + $0x8c] sm:$0xf]
  %v71 = vld [vmem:[%s1 + $0x90] sm:$0xf]
  %v72 = vld [vmem:[%s1 + $0x94] sm:$0xf]
  %v73 = vld [vmem:[%s1 + $0x98] sm:$0xf]
  %v74 = vld [vmem:[%s1 + $0x9c] sm:$0xf]
  %v75 = vld [vmem:[%s1 + $0xa0] sm:$0xf]
  %v76 = vld [vmem:[%s1 + $0xa4] sm:$0xf]
  %v77 = vld [vmem:[%s1 + $0xa8] sm:$0xf]
  %v78 = vld [vmem:[%s1 + $0xac] sm:$0xf]
  %v79 = vld [vmem:[%s1 + $0xb0] sm:$0xf]
  %v80 = vld [vmem:[%s1 + $0xb4] sm:$0xf]
  %v81 = vld [vmem:[%s1 + $0xb8] sm:$0xf]
  %v82 = vld [vmem:[%s1 + $0xbc] sm:$0xf]
  %v83 = vld [vmem:[%s1 + $0xc0] sm:$0xf]
  %v84 = vld [vmem:[%s1 + $0xc4] sm:$0xf]
  %v85 = vld [vmem:[%s1 + $0xc8] sm:$0xf]
  %v86 = vld [vmem:[%s1 + $0xcc] sm:$0xf]
  %v87 = vld [vmem:[%s1 + $0xd0] sm:$0xf]
  %v88 = vld [vmem:[%s1 + $0xd4] sm:$0xf]
  %v89 = vld [vmem:[%s1 + $0xd8] sm:$0xf]
  %v90 = vld [vmem:[%s1 + $0xdc] sm:$0xf]
  %v91 = vld [vmem:[%s1 + $0xe0] sm:$0xf]
  %v92 = vld [vmem:[%s1 + $0xe4] sm:$0xf]
  %v93 = vld [vmem:[%s1 + $0xe8] sm:$0xf]
  %v94 = vld [vmem:[%s1 + $0xec] sm:$0xf]
  %v95 = vld [vmem:[%s1 + $0xf0] sm:$0xf]
  %v96 = vld [vmem:[%s1 + $0xf4] sm:$0xf]
  %v97 = vld [vmem:[%s1 + $0xf8] sm:$0xf]
  %v98 = vld [vmem:[%s1 + $0xfc] sm:$0xf]
  %v107 = vunpack.c.l.b16 %v27
  %v108 = vunpack.c.h.b16 %v27
  %v109 = vunpack.c.l.b16 %v28
  %v110 = vunpack.c.h.b16 %v28
  %v111 = vunpack.c.l.b16 %v29
  %v112 = vunpack.c.h.b16 %v29
  %v113 = vunpack.c.l.b16 %v30
  %v114 = vunpack.c.h.b16 %v30
  %v115 = vunpack.c.l.b16 %v31
  %v116 = vunpack.c.h.b16 %v31
  %v117 = vunpack.c.l.b16 %v32
  %v118 = vunpack.c.h.b16 %v32
  %v119 = vunpack.c.l.b16 %v33
  %v120 = vunpack.c.h.b16 %v33
  %v121 = vunpack.c.l.b16 %v34
  %v122 = vunpack.c.h.b16 %v34
  %v123 = vpack.c.b16 %v111, %v107
  %v124 = vpack.c.b16 %v112, %v108
  %v125 = vpack.c.b16 %v113, %v109
  %v126 = vpack.c.b16 %v114, %v110
  %v127 = vpack.c.b16 %v119, %v115
  %v128 = vpack.c.b16 %v120, %v116
  %v129 = vpack.c.b16 %v121, %v117
  %v130 = vpack.c.b16 %v122, %v118
  %v203 = vunpack.c.l.b16 %v35
  %v204 = vunpack.c.l.b16 %v36
  %v205 = vunpack.c.l.b16 %v37
  %v206 = vunpack.c.l.b16 %v38
  %v207 = vunpack.c.l.b16 %v39
  %v208 = vunpack.c.l.b16 %v40
  %v209 = vunpack.c.l.b16 %v41
  %v210 = vunpack.c.l.b16 %v42
  %v211 = vunpack.c.l.b16 %v43
  %v212 = vunpack.c.l.b16 %v44
  %v213 = vunpack.c.l.b16 %v45
  %v214 = vunpack.c.l.b16 %v46
  %v215 = vunpack.c.l.b16 %v47
  %v216 = vunpack.c.l.b16 %v48
  %v217 = vunpack.c.l.b16 %v49
  %v218 = vunpack.c.l.b16 %v50
  %v219 = vunpack.c.l.b16 %v51
  %v220 = vunpack.c.l.b16 %v52
  %v221 = vunpack.c.l.b16 %v53
  %v222 = vunpack.c.l.b16 %v54
  %v223 = vunpack.c.l.b16 %v55
  %v224 = vunpack.c.l.b16 %v56
  %v225 = vunpack.c.l.b16 %v57
  %v226 = vunpack.c.l.b16 %v58
  %v227 = vunpack.c.l.b16 %v59
  %v228 = vunpack.c.l.b16 %v60
  %v229 = vunpack.c.l.b16 %v61
  %v230 = vunpack.c.l.b16 %v62
  %v231 = vunpack.c.l.b16 %v63
  %v232 = vunpack.c.l.b16 %v64
  %v233 = vunpack.c.l.b16 %v65
  %v234 = vunpack.c.l.b16 %v66
  %v235 = vunpack.c.l.b16 %v67
  %v236 = vunpack.c.l.b16 %v68
  %v237 = vunpack.c.l.b16 %v69
  %v238 = vunpack.c.l.b16 %v70
  %v239 = vunpack.c.l.b16 %v71
  %v240 = vunpack.c.l.b16 %v72
  %v241 = vunpack.c.l.b16 %v73
  %v242 = vunpack.c.l.b16 %v74
  %v243 = vunpack.c.l.b16 %v75
  %v244 = vunpack.c.l.b16 %v76
  %v245 = vunpack.c.l.b16 %v77
  %v246 = vunpack.c.l.b16 %v78
  %v247 = vunpack.c.l.b16 %v79
  %v248 = vunpack.c.l.b16 %v80
  %v249 = vunpack.c.l.b16 %v81
  %v250 = vunpack.c.l.b16 %v82
  %v251 = vunpack.c.l.b16 %v83
  %v252 = vunpack.c.l.b16 %v84
  %v253 = vunpack.c.l.b16 %v85
  %v254 = vunpack.c.l.b16 %v86
  %v255 = vunpack.c.l.b16 %v87
  %v256 = vunpack.c.l.b16 %v88
  %v257 = vunpack.c.l.b16 %v89
  %v258 = vunpack.c.l.b16 %v90
  %v259 = vunpack.c.l.b16 %v91
  %v260 = vunpack.c.l.b16 %v92
  %v261 = vunpack.c.l.b16 %v93
  %v262 = vunpack.c.l.b16 %v94
  %v263 = vunpack.c.l.b16 %v95
  %v264 = vunpack.c.l.b16 %v96
  %v265 = vunpack.c.l.b16 %v97
  %v266 = vunpack.c.l.b16 %v98
  %v267 = vpack.c.b16 %v204, %v203
  %v268 = vpack.c.b16 %v206, %v205
  %v269 = vpack.c.b16 %v208, %v207
  %v270 = vpack.c.b16 %v210, %v209
  %v271 = vpack.c.b16 %v212, %v211
  %v272 = vpack.c.b16 %v214, %v213
  %v273 = vpack.c.b16 %v216, %v215
  %v274 = vpack.c.b16 %v218, %v217
  %v275 = vpack.c.b16 %v220, %v219
  %v276 = vpack.c.b16 %v222, %v221
  %v277 = vpack.c.b16 %v224, %v223
  %v278 = vpack.c.b16 %v226, %v225
  %v279 = vpack.c.b16 %v228, %v227
  %v280 = vpack.c.b16 %v230, %v229
  %v281 = vpack.c.b16 %v232, %v231
  %v282 = vpack.c.b16 %v234, %v233
  %v283 = vpack.c.b16 %v236, %v235
  %v284 = vpack.c.b16 %v238, %v237
  %v285 = vpack.c.b16 %v240, %v239
  %v286 = vpack.c.b16 %v242, %v241
  %v287 = vpack.c.b16 %v244, %v243
  %v288 = vpack.c.b16 %v246, %v245
  %v289 = vpack.c.b16 %v248, %v247
  %v290 = vpack.c.b16 %v250, %v249
  %v291 = vpack.c.b16 %v252, %v251
  %v292 = vpack.c.b16 %v254, %v253
  %v293 = vpack.c.b16 %v256, %v255
  %v294 = vpack.c.b16 %v258, %v257
  %v295 = vpack.c.b16 %v260, %v259
  %v296 = vpack.c.b16 %v262, %v261
  %v297 = vpack.c.b16 %v264, %v263
  %v298 = vpack.c.b16 %v266, %v265
  %331 = vmatprep.subr.bf16.mxu0 0
  %332 = vmatpush1.bf16.msra.mxu0 %v267
  %333 = vmatprep.subr.bf16.mxu0 0
  %334 = vmatpush1.bf16.msra.mxu0 %v268
  %335 = vmatprep.subr.bf16.mxu0 0
  %336 = vmatpush1.bf16.msra.mxu0 %v269
  %337 = vmatprep.subr.bf16.mxu0 0
  %338 = vmatpush1.bf16.msra.mxu0 %v270
  %339 = vmatprep.subr.bf16.mxu0 0
  %340 = vmatpush1.bf16.msra.mxu0 %v271
  %341 = vmatprep.subr.bf16.mxu0 0
  %342 = vmatpush1.bf16.msra.mxu0 %v272
  %343 = vmatprep.subr.bf16.mxu0 0
  %344 = vmatpush1.bf16.msra.mxu0 %v273
  %345 = vmatprep.subr.bf16.mxu0 0
  %346 = vmatpush1.bf16.msra.mxu0 %v274
  %347 = vmatprep.subr.bf16.mxu0 0
  %348 = vmatpush1.bf16.msra.mxu0 %v275
  %349 = vmatprep.subr.bf16.mxu0 0
  %350 = vmatpush1.bf16.msra.mxu0 %v276
  %351 = vmatprep.subr.bf16.mxu0 0
  %352 = vmatpush1.bf16.msra.mxu0 %v277
  %353 = vmatprep.subr.bf16.mxu0 0
  %354 = vmatpush1.bf16.msra.mxu0 %v278
  %355 = vmatprep.subr.bf16.mxu0 0
  %356 = vmatpush1.bf16.msra.mxu0 %v279
  %357 = vmatprep.subr.bf16.mxu0 0
  %358 = vmatpush1.bf16.msra.mxu0 %v280
  %359 = vmatprep.subr.bf16.mxu0 0
  %360 = vmatpush1.bf16.msra.mxu0 %v281
  %361 = vmatprep.subr.bf16.mxu0 0
  %362 = vmatpush1.bf16.msra.mxu0 %v282
  %363 = vmatprep.mubr.bf16.mxu0 %v124
  %364 = vmatmul.mubr.bf16.gmra.mrb[0].mxu0 %v123
  %v365 = vpop.f32.mrb[0].mxu0
  %v366 = vadd.f32 0.0, %v365
  %v367 = vpop.f32.mrb[0].mxu0
  %v368 = vpop.f32.mrb[0].mxu0
  %v369 = vadd.f32 0.0, %v368
  %v370 = vpop.f32.mrb[0].mxu0
  %371 = vmatprep.mubr.bf16.mxu0 %v128
  %372 = vmatmul.mubr.bf16.gmra.mrb[0].mxu0 %v127
  %v373 = vpop.f32.mrb[0].mxu0
  %v374 = vadd.f32 0.0, %v373
  %v375 = vpop.f32.mrb[0].mxu0
  %v376 = vpop.f32.mrb[0].mxu0
  %v377 = vadd.f32 0.0, %v376
  %v378 = vpop.f32.mrb[0].mxu0
  %379 = vdwg.mxu0
  %380 = vmatprep.subr.bf16.mxu0 0
  %381 = vmatpush1.bf16.msra.mxu0 %v283
  %382 = vmatprep.subr.bf16.mxu0 0
  %383 = vmatpush1.bf16.msra.mxu0 %v284
  %384 = vmatprep.subr.bf16.mxu0 0
  %385 = vmatpush1.bf16.msra.mxu0 %v285
  %386 = vmatprep.subr.bf16.mxu0 0
  %387 = vmatpush1.bf16.msra.mxu0 %v286
  %388 = vmatprep.subr.bf16.mxu0 0
  %389 = vmatpush1.bf16.msra.mxu0 %v287
  %390 = vmatprep.subr.bf16.mxu0 0
  %391 = vmatpush1.bf16.msra.mxu0 %v288
  %392 = vmatprep.subr.bf16.mxu0 0
  %393 = vmatpush1.bf16.msra.mxu0 %v289
  %394 = vmatprep.subr.bf16.mxu0 0
  %395 = vmatpush1.bf16.msra.mxu0 %v290
  %396 = vmatprep.subr.bf16.mxu0 0
  %397 = vmatpush1.bf16.msra.mxu0 %v291
  %398 = vmatprep.subr.bf16.mxu0 0
  %399 = vmatpush1.bf16.msra.mxu0 %v292
  %400 = vmatprep.subr.bf16.mxu0 0
  %401 = vmatpush1.bf16.msra.mxu0 %v293
  %402 = vmatprep.subr.bf16.mxu0 0
  %403 = vmatpush1.bf16.msra.mxu0 %v294
  %404 = vmatprep.subr.bf16.mxu0 0
  %405 = vmatpush1.bf16.msra.mxu0 %v295
  %406 = vmatprep.subr.bf16.mxu0 0
  %407 = vmatpush1.bf16.msra.mxu0 %v296
  %408 = vmatprep.subr.bf16.mxu0 0
  %409 = vmatpush1.bf16.msra.mxu0 %v297
  %410 = vmatprep.subr.bf16.mxu0 0
  %411 = vmatpush1.bf16.msra.mxu0 %v298
  %412 = vmatprep.mubr.bf16.mxu0 %v126
  %413 = vmatmul.mubr.bf16.gmra.mrb[0].mxu0 %v125
  %v414 = vpop.f32.mrb[0].mxu0
  %v415 = vadd.f32 %v366, %v414
  %v416 = vpop.f32.mrb[0].mxu0
  %v417 = vpop.f32.mrb[0].mxu0
  %v418 = vadd.f32 %v369, %v417
  %v419 = vpop.f32.mrb[0].mxu0
  %420 = vmatprep.mubr.bf16.mxu0 %v130
  %421 = vmatmul.mubr.bf16.gmra.mrb[0].mxu0 %v129
  %v422 = vpop.f32.mrb[0].mxu0
  %v423 = vadd.f32 %v374, %v422
  %v424 = vpop.f32.mrb[0].mxu0
  %v425 = vpop.f32.mrb[0].mxu0
  %v426 = vadd.f32 %v377, %v425
  %v427 = vpop.f32.mrb[0].mxu0
  %428 = vdwg.mxu0
  %v429 = vadd.f32 %v23, %v415
  %v430 = vadd.f32 %v24, %v418
  %v431 = vadd.f32 %v25, %v423
  %v432 = vadd.f32 %v26, %v426
  %433 = vst [vmem:[#allocation2] sm:$0xff] %v429
  %434 = vst [vmem:[#allocation2 + $0x8] sm:$0xff] %v430
  %435 = vst [vmem:[#allocation2 + $0x10] sm:$0xff] %v431
  %436 = vst [vmem:[#allocation2 + $0x18] sm:$0xff] %v432
  // Predicated region
  $region14: #{_lambda_.7} parent=0 // pred_check
    %p437 = pneg %p15
  $region15: #{_lambda_.7} parent=0 // pred_check_branch
    %439 = sbr.rel (%p437) target = $region17
  $region16: #{_lambda_.7} parent=0 // pred_region
    %v440 = vld [vmem:[#allocation2] sm:$0xff]
    %v441 = vld [vmem:[#allocation2 + $0x8] sm:$0xff]
    %v442 = vld [vmem:[#allocation2 + $0x10] sm:$0xff]
    %v443 = vld [vmem:[#allocation2 + $0x18] sm:$0xff]
    %v444 = vpack.c.bf16 %v441, %v440
    %v445 = vpack.c.bf16 %v443, %v442
    %v448 = vunpack.c.l.b16 %v444
    %v449 = vunpack.c.h.b16 %v444
    %v450 = vunpack.c.l.b16 %v445
    %v451 = vunpack.c.h.b16 %v445
    %v452 = vpack.c.b16 %v448, %v448
    %v453 = vpack.c.b16 %v449, %v449
    %v454 = vpack.c.b16 %v450, %v450
    %v455 = vpack.c.b16 %v451, %v451
    %460 = vst [vmem:[%s2] sm:$0xf] %v452
    %461 = vst [vmem:[%s2 + $0x4] sm:$0xf] %v453
    %462 = vst [vmem:[%s2 + $0x8] sm:$0xf] %v454
    %463 = vst [vmem:[%s2 + $0xc] sm:$0xf] %v455
    %v464 = vadd.f32 %v440, %v441
    %v465 = vadd.f32 %v464, %v442
    %v466 = vadd.f32 %v465, %v443
    %v467 = vrot.slane %v466, 4
    %v468 = vadd.f32 %v466, %v467
    %v469 = vrot.slane %v468, 2
    %v470 = vadd.f32 %v468, %v469
    %v471 = vrot.slane %v470, 1
    %v472 = vadd.f32 %v470, %v471
    %473 = vst [vmem:[%s3] sm:$0x1] %v472
    %v474 = vmul.f32 %v440, %v440
    %v475 = vmul.f32 %v441, %v441
    %v476 = vmul.f32 %v442, %v442
    %v477 = vmul.f32 %v443, %v443
    %v478 = vadd.f32 %v474, %v475
    %v479 = vadd.f32 %v478, %v476
    %v480 = vadd.f32 %v479, %v477
    %v481 = vrot.slane %v480, 4
    %v482 = vadd.f32 %v480, %v481
    %v483 = vrot.slane %v482, 2
    %v484 = vadd.f32 %v482, %v483
    %v485 = vrot.slane %v484, 1
    %v486 = vadd.f32 %v484, %v485
    %487 = vst [vmem:[%s4] sm:$0x1] %v486
  $region17: #{_lambda_.7} parent=0 // pred_fallthru
    _
  // Predicated region
  $region18: #{_lambda_.7} parent=0 // pred_check
    _
  $region19: #{_lambda_.7} parent=0 // pred_check_branch
    %489 = sbr.rel (0) target = $region21
  $region20: #{_lambda_.7} parent=0 // pred_region
    _
  $region21: #{_lambda_.7} parent=0 // pred_fallthru
    _
  // Predicated region
  $region22: #{_lambda_.7} parent=0 // pred_check
    _
  $region23: #{_lambda_.7} parent=0 // pred_check_branch
    %491 = sbr.rel (0) target = $region25
  $region24: #{_lambda_.7} parent=0 // pred_region
    _
  $region25: #{_lambda_.7} parent=0 // pred_fallthru
    _
  // Predicated region
  $region26: #{_lambda_.7} parent=0 // pred_check
    _
  $region27: #{_lambda_.7} parent=0 // pred_check_branch
    %493 = sbr.rel (0) target = $region29
  $region28: #{_lambda_.7} parent=0 // pred_region
    _
  $region29: #{_lambda_.7} parent=0 // pred_fallthru
    _
  // Predicated region
  $region30: #{_lambda_.7} parent=0 // pred_check
    _
  $region31: #{_lambda_.7} parent=0 // pred_check_branch
    %495 = sbr.rel (0) target = $region33
  $region32: #{_lambda_.7} parent=0 // pred_region
    _
  $region33: #{_lambda_.7} parent=0 // pred_fallthru
    _
  // Predicated region
  $region34: #{_lambda_.7} parent=0 // pred_check
    _
  $region35: #{_lambda_.7} parent=0 // pred_check_branch
    %497 = sbr.rel (0) target = $region37
  $region36: #{_lambda_.7} parent=0 // pred_region
    _
  $region37: #{_lambda_.7} parent=0 // pred_fallthru
    _
  // Predicated region
  $region38: #{_lambda_.7} parent=0 // pred_check
    _
  $region39: #{_lambda_.7} parent=0 // pred_check_branch
    %499 = sbr.rel (0) target = $region41
  $region40: #{_lambda_.7} parent=0 // pred_region
    _
  $region41: #{_lambda_.7} parent=0 // pred_fallthru
    _

// kernel: _lambda_.8
$region0: #{_lambda_.8}
  #allocation0 [shape = 'u32[]', space=smem, size = 0x4, offset = 0x4, fixed_abs, tag = 'smem constant byte address 0x4 - core index']
  #allocation1 [shape = 'u32[144,128]{1,0:T(1,128)}', space=vmem, size = 0x12000, scoped, tag = 'internal scratch']
  #allocation2 [shape = 'f32[32,128]{1,0:T(8,128)}', space=vmem, size = 0x4000, scoped, tag = 'scratch operand']
  %s0 = inlined_call_operand.vmem [shape: bf16[32,1024], index: 0, kind: input, shape index: {}]
  %s1 = inlined_call_operand.vmem [shape: bf16[1024,128], index: 1, kind: input, shape index: {}]
  %s2 = inlined_call_operand.vmem [shape: bf16[32,128], index: 2, kind: output, shape index: {0}]
  %s3 = inlined_call_operand.vmem [shape: f32[1,1,128], index: 3, kind: output, shape index: {1}]
  %s4 = inlined_call_operand.vmem [shape: f32[1,1,128], index: 4, kind: output, shape index: {2}]
  %5 = xla_tuple %s2, %s3, %s4
  %s6 = sld [smem:[#allocation0]]
  $region42: #{_lambda_.8} parent=0
    _
  %s8 = ssub.s32 1, %s6
  %s9 = scalar_select 0, %s8, %s6
  // Predicated region
  $region2: #{_lambda_.8} parent=0 // pred_check
    _
  $region3: #{_lambda_.8} parent=0 // pred_check_branch
    %11 = sbr.rel (0) target = $region5
  $region4: #{_lambda_.8} parent=0 // pred_region
    _
  $region5: #{_lambda_.8} parent=0 // pred_fallthru
    _
  // Predicated region
  $region6: #{_lambda_.8} parent=0 // pred_check
    _
  $region7: #{_lambda_.8} parent=0 // pred_check_branch
    %13 = sbr.rel (0) target = $region9
  $region8: #{_lambda_.8} parent=0 // pred_region
    _
  $region9: #{_lambda_.8} parent=0 // pred_fallthru
    _
  %p15 = scmp.eq.s32.totalorder 0, 0
  // Predicated region
  $region10: #{_lambda_.8} parent=0 // pred_check
    %p16 = pneg %p15
  $region11: #{_lambda_.8} parent=0 // pred_check_branch
    %18 = sbr.rel (%p16) target = $region13
  $region12: #{_lambda_.8} parent=0 // pred_region
    %19 = vst [vmem:[#allocation2] sm:$0xff] 0.0
    %20 = vst [vmem:[#allocation2 + $0x8] sm:$0xff] 0.0
    %21 = vst [vmem:[#allocation2 + $0x10] sm:$0xff] 0.0
    %22 = vst [vmem:[#allocation2 + $0x18] sm:$0xff] 0.0
  $region13: #{_lambda_.8} parent=0 // pred_fallthru
    _
  %v23 = vld [vmem:[#allocation2] sm:$0xff]
  %v24 = vld [vmem:[#allocation2 + $0x8] sm:$0xff]
  %v25 = vld [vmem:[#allocation2 + $0x10] sm:$0xff]
  %v26 = vld [vmem:[#allocation2 + $0x18] sm:$0xff]
  %v27 = vld [vmem:[%s0] sm:$0xff]
  %v28 = vld [vmem:[%s0 + $0x8] sm:$0xff]
  %v29 = vld [vmem:[%s0 + $0x10] sm:$0xff]
  %v30 = vld [vmem:[%s0 + $0x18] sm:$0xff]
  %v31 = vld [vmem:[%s0 + $0x20] sm:$0xff]
  %v32 = vld [vmem:[%s0 + $0x28] sm:$0xff]
  %v33 = vld [vmem:[%s0 + $0x30] sm:$0xff]
  %v34 = vld [vmem:[%s0 + $0x38] sm:$0xff]
  %v35 = vld [vmem:[%s0 + $0x40] sm:$0xff]
  %v36 = vld [vmem:[%s0 + $0x48] sm:$0xff]
  %v37 = vld [vmem:[%s0 + $0x50] sm:$0xff]
  %v38 = vld [vmem:[%s0 + $0x58] sm:$0xff]
  %v39 = vld [vmem:[%s0 + $0x60] sm:$0xff]
  %v40 = vld [vmem:[%s0 + $0x68] sm:$0xff]
  %v41 = vld [vmem:[%s0 + $0x70] sm:$0xff]
  %v42 = vld [vmem:[%s0 + $0x78] sm:$0xff]
  %v43 = vld [vmem:[%s1] sm:$0xf]
  %v44 = vld [vmem:[%s1 + $0x4] sm:$0xf]
  %v45 = vld [vmem:[%s1 + $0x8] sm:$0xf]
  %v46 = vld [vmem:[%s1 + $0xc] sm:$0xf]
  %v47 = vld [vmem:[%s1 + $0x10] sm:$0xf]
  %v48 = vld [vmem:[%s1 + $0x14] sm:$0xf]
  %v49 = vld [vmem:[%s1 + $0x18] sm:$0xf]
  %v50 = vld [vmem:[%s1 + $0x1c] sm:$0xf]
  %v51 = vld [vmem:[%s1 + $0x20] sm:$0xf]
  %v52 = vld [vmem:[%s1 + $0x24] sm:$0xf]
  %v53 = vld [vmem:[%s1 + $0x28] sm:$0xf]
  %v54 = vld [vmem:[%s1 + $0x2c] sm:$0xf]
  %v55 = vld [vmem:[%s1 + $0x30] sm:$0xf]
  %v56 = vld [vmem:[%s1 + $0x34] sm:$0xf]
  %v57 = vld [vmem:[%s1 + $0x38] sm:$0xf]
  %v58 = vld [vmem:[%s1 + $0x3c] sm:$0xf]
  %v59 = vld [vmem:[%s1 + $0x40] sm:$0xf]
  %v60 = vld [vmem:[%s1 + $0x44] sm:$0xf]
  %v61 = vld [vmem:[%s1 + $0x48] sm:$0xf]
  %v62 = vld [vmem:[%s1 + $0x4c] sm:$0xf]
  %v63 = vld [vmem:[%s1 + $0x50] sm:$0xf]
  %v64 = vld [vmem:[%s1 + $0x54] sm:$0xf]
  %v65 = vld [vmem:[%s1 + $0x58] sm:$0xf]
  %v66 = vld [vmem:[%s1 + $0x5c] sm:$0xf]
  %v67 = vld [vmem:[%s1 + $0x60] sm:$0xf]
  %v68 = vld [vmem:[%s1 + $0x64] sm:$0xf]
  %v69 = vld [vmem:[%s1 + $0x68] sm:$0xf]
  %v70 = vld [vmem:[%s1 + $0x6c] sm:$0xf]
  %v71 = vld [vmem:[%s1 + $0x70] sm:$0xf]
  %v72 = vld [vmem:[%s1 + $0x74] sm:$0xf]
  %v73 = vld [vmem:[%s1 + $0x78] sm:$0xf]
  %v74 = vld [vmem:[%s1 + $0x7c] sm:$0xf]
  %v75 = vld [vmem:[%s1 + $0x80] sm:$0xf]
  %v76 = vld [vmem:[%s1 + $0x84] sm:$0xf]
  %v77 = vld [vmem:[%s1 + $0x88] sm:$0xf]
  %v78 = vld [vmem:[%s1 + $0x8c] sm:$0xf]
  %v79 = vld [vmem:[%s1 + $0x90] sm:$0xf]
  %v80 = vld [vmem:[%s1 + $0x94] sm:$0xf]
  %v81 = vld [vmem:[%s1 + $0x98] sm:$0xf]
  %v82 = vld [vmem:[%s1 + $0x9c] sm:$0xf]
  %v83 = vld [vmem:[%s1 + $0xa0] sm:$0xf]
  %v84 = vld [vmem:[%s1 + $0xa4] sm:$0xf]
  %v85 = vld [vmem:[%s1 + $0xa8] sm:$0xf]
  %v86 = vld [vmem:[%s1 + $0xac] sm:$0xf]
  %v87 = vld [vmem:[%s1 + $0xb0] sm:$0xf]
  %v88 = vld [vmem:[%s1 + $0xb4] sm:$0xf]
  %v89 = vld [vmem:[%s1 + $0xb8] sm:$0xf]
  %v90 = vld [vmem:[%s1 + $0xbc] sm:$0xf]
  %v91 = vld [vmem:[%s1 + $0xc0] sm:$0xf]
  %v92 = vld [vmem:[%s1 + $0xc4] sm:$0xf]
  %v93 = vld [vmem:[%s1 + $0xc8] sm:$0xf]
  %v94 = vld [vmem:[%s1 + $0xcc] sm:$0xf]
  %v95 = vld [vmem:[%s1 + $0xd0] sm:$0xf]
  %v96 = vld [vmem:[%s1 + $0xd4] sm:$0xf]
  %v97 = vld [vmem:[%s1 + $0xd8] sm:$0xf]
  %v98 = vld [vmem:[%s1 + $0xdc] sm:$0xf]
  %v99 = vld [vmem:[%s1 + $0xe0] sm:$0xf]
  %v100 = vld [vmem:[%s1 + $0xe4] sm:$0xf]
  %v101 = vld [vmem:[%s1 + $0xe8] sm:$0xf]
  %v102 = vld [vmem:[%s1 + $0xec] sm:$0xf]
  %v103 = vld [vmem:[%s1 + $0xf0] sm:$0xf]
  %v104 = vld [vmem:[%s1 + $0xf4] sm:$0xf]
  %v105 = vld [vmem:[%s1 + $0xf8] sm:$0xf]
  %v106 = vld [vmem:[%s1 + $0xfc] sm:$0xf]
  %v107 = vld [vmem:[%s1 + $0x100] sm:$0xf]
  %v108 = vld [vmem:[%s1 + $0x104] sm:$0xf]
  %v109 = vld [vmem:[%s1 + $0x108] sm:$0xf]
  %v110 = vld [vmem:[%s1 + $0x10c] sm:$0xf]
  %v111 = vld [vmem:[%s1 + $0x110] sm:$0xf]
  %v112 = vld [vmem:[%s1 + $0x114] sm:$0xf]
  %v113 = vld [vmem:[%s1 + $0x118] sm:$0xf]
  %v114 = vld [vmem:[%s1 + $0x11c] sm:$0xf]
  %v115 = vld [vmem:[%s1 + $0x120] sm:$0xf]
  %v116 = vld [vmem:[%s1 + $0x124] sm:$0xf]
  %v117 = vld [vmem:[%s1 + $0x128] sm:$0xf]
  %v118 = vld [vmem:[%s1 + $0x12c] sm:$0xf]
  %v119 = vld [vmem:[%s1 + $0x130] sm:$0xf]
  %v120 = vld [vmem:[%s1 + $0x134] sm:$0xf]
  %v121 = vld [vmem:[%s1 + $0x138] sm:$0xf]
  %v122 = vld [vmem:[%s1 + $0x13c] sm:$0xf]
  %v123 = vld [vmem:[%s1 + $0x140] sm:$0xf]
  %v124 = vld [vmem:[%s1 + $0x144] sm:$0xf]
  %v125 = vld [vmem:[%s1 + $0x148] sm:$0xf]
  %v126 = vld [vmem:[%s1 + $0x14c] sm:$0xf]
  %v127 = vld [vmem:[%s1 + $0x150] sm:$0xf]
  %v128 = vld [vmem:[%s1 + $0x154] sm:$0xf]
  %v129 = vld [vmem:[%s1 + $0x158] sm:$0xf]
  %v130 = vld [vmem:[%s1 + $0x15c] sm:$0xf]
  %v131 = vld [vmem:[%s1 + $0x160] sm:$0xf]
  %v132 = vld [vmem:[%s1 + $0x164] sm:$0xf]
  %v133 = vld [vmem:[%s1 + $0x168] sm:$0xf]
  %v134 = vld [vmem:[%s1 + $0x16c] sm:$0xf]
  %v135 = vld [vmem:[%s1 + $0x170] sm:$0xf]
  %v136 = vld [vmem:[%s1 + $0x174] sm:$0xf]
  %v137 = vld [vmem:[%s1 + $0x178] sm:$0xf]
  %v138 = vld [vmem:[%s1 + $0x17c] sm:$0xf]
  %v139 = vld [vmem:[%s1 + $0x180] sm:$0xf]
  %v140 = vld [vmem:[%s1 + $0x184] sm:$0xf]
  %v141 = vld [vmem:[%s1 + $0x188] sm:$0xf]
  %v142 = vld [vmem:[%s1 + $0x18c] sm:$0xf]
  %v143 = vld [vmem:[%s1 + $0x190] sm:$0xf]
  %v144 = vld [vmem:[%s1 + $0x194] sm:$0xf]
  %v145 = vld [vmem:[%s1 + $0x198] sm:$0xf]
  %v146 = vld [vmem:[%s1 + $0x19c] sm:$0xf]
  %v147 = vld [vmem:[%s1 + $0x1a0] sm:$0xf]
  %v148 = vld [vmem:[%s1 + $0x1a4] sm:$0xf]
  %v149 = vld [vmem:[%s1 + $0x1a8] sm:$0xf]
  %v150 = vld [vmem:[%s1 + $0x1ac] sm:$0xf]
  %v151 = vld [vmem:[%s1 + $0x1b0] sm:$0xf]
  %v152 = vld [vmem:[%s1 + $0x1b4] sm:$0xf]
  %v153 = vld [vmem:[%s1 + $0x1b8] sm:$0xf]
  %v154 = vld [vmem:[%s1 + $0x1bc] sm:$0xf]
  %v155 = vld [vmem:[%s1 + $0x1c0] sm:$0xf]
  %v156 = vld [vmem:[%s1 + $0x1c4] sm:$0xf]
  %v157 = vld [vmem:[%s1 + $0x1c8] sm:$0xf]
  %v158 = vld [vmem:[%s1 + $0x1cc] sm:$0xf]
  %v159 = vld [vmem:[%s1 + $0x1d0] sm:$0xf]
  %v160 = vld [vmem:[%s1 + $0x1d4] sm:$0xf]
  %v161 = vld [vmem:[%s1 + $0x1d8] sm:$0xf]
  %v162 = vld [vmem:[%s1 + $0x1dc] sm:$0xf]
  %v163 = vld [vmem:[%s1 + $0x1e0] sm:$0xf]
  %v164 = vld [vmem:[%s1 + $0x1e4] sm:$0xf]
  %v165 = vld [vmem:[%s1 + $0x1e8] sm:$0xf]
  %v166 = vld [vmem:[%s1 + $0x1ec] sm:$0xf]
  %v167 = vld [vmem:[%s1 + $0x1f0] sm:$0xf]
  %v168 = vld [vmem:[%s1 + $0x1f4] sm:$0xf]
  %v169 = vld [vmem:[%s1 + $0x1f8] sm:$0xf]
  %v170 = vld [vmem:[%s1 + $0x1fc] sm:$0xf]
  %v187 = vunpack.c.l.b16 %v27
  %v188 = vunpack.c.h.b16 %v27
  %v189 = vunpack.c.l.b16 %v28
  %v190 = vunpack.c.h.b16 %v28
  %v191 = vunpack.c.l.b16 %v29
  %v192 = vunpack.c.h.b16 %v29
  %v193 = vunpack.c.l.b16 %v30
  %v194 = vunpack.c.h.b16 %v30
  %v195 = vunpack.c.l.b16 %v31
  %v196 = vunpack.c.h.b16 %v31
  %v197 = vunpack.c.l.b16 %v32
  %v198 = vunpack.c.h.b16 %v32
  %v199 = vunpack.c.l.b16 %v33
  %v200 = vunpack.c.h.b16 %v33
  %v201 = vunpack.c.l.b16 %v34
  %v202 = vunpack.c.h.b16 %v34
  %v203 = vunpack.c.l.b16 %v35
  %v204 = vunpack.c.h.b16 %v35
  %v205 = vunpack.c.l.b16 %v36
  %v206 = vunpack.c.h.b16 %v36
  %v207 = vunpack.c.l.b16 %v37
  %v208 = vunpack.c.h.b16 %v37
  %v209 = vunpack.c.l.b16 %v38
  %v210 = vunpack.c.h.b16 %v38
  %v211 = vunpack.c.l.b16 %v39
  %v212 = vunpack.c.h.b16 %v39
  %v213 = vunpack.c.l.b16 %v40
  %v214 = vunpack.c.h.b16 %v40
  %v215 = vunpack.c.l.b16 %v41
  %v216 = vunpack.c.h.b16 %v41
  %v217 = vunpack.c.l.b16 %v42
  %v218 = vunpack.c.h.b16 %v42
  %v219 = vpack.c.b16 %v195, %v187
  %v220 = vpack.c.b16 %v196, %v188
  %v221 = vpack.c.b16 %v197, %v189
  %v222 = vpack.c.b16 %v198, %v190
  %v223 = vpack.c.b16 %v199, %v191
  %v224 = vpack.c.b16 %v200, %v192
  %v225 = vpack.c.b16 %v201, %v193
  %v226 = vpack.c.b16 %v202, %v194
  %v227 = vpack.c.b16 %v211, %v203
  %v228 = vpack.c.b16 %v212, %v204
  %v229 = vpack.c.b16 %v213, %v205
  %v230 = vpack.c.b16 %v214, %v206
  %v231 = vpack.c.b16 %v215, %v207
  %v232 = vpack.c.b16 %v216, %v208
  %v233 = vpack.c.b16 %v217, %v209
  %v234 = vpack.c.b16 %v218, %v210
  %v379 = vunpack.c.l.b16 %v43
  %v380 = vunpack.c.l.b16 %v44
  %v381 = vunpack.c.l.b16 %v45
  %v382 = vunpack.c.l.b16 %v46
  %v383 = vunpack.c.l.b16 %v47
  %v384 = vunpack.c.l.b16 %v48
  %v385 = vunpack.c.l.b16 %v49
  %v386 = vunpack.c.l.b16 %v50
  %v387 = vunpack.c.l.b16 %v51
  %v388 = vunpack.c.l.b16 %v52
  %v389 = vunpack.c.l.b16 %v53
  %v390 = vunpack.c.l.b16 %v54
  %v391 = vunpack.c.l.b16 %v55
  %v392 = vunpack.c.l.b16 %v56
  %v393 = vunpack.c.l.b16 %v57
  %v394 = vunpack.c.l.b16 %v58
  %v395 = vunpack.c.l.b16 %v59
  %v396 = vunpack.c.l.b16 %v60
  %v397 = vunpack.c.l.b16 %v61
  %v398 = vunpack.c.l.b16 %v62
  %v399 = vunpack.c.l.b16 %v63
  %v400 = vunpack.c.l.b16 %v64
  %v401 = vunpack.c.l.b16 %v65
  %v402 = vunpack.c.l.b16 %v66
  %v403 = vunpack.c.l.b16 %v67
  %v404 = vunpack.c.l.b16 %v68
  %v405 = vunpack.c.l.b16 %v69
  %v406 = vunpack.c.l.b16 %v70
  %v407 = vunpack.c.l.b16 %v71
  %v408 = vunpack.c.l.b16 %v72
  %v409 = vunpack.c.l.b16 %v73
  %v410 = vunpack.c.l.b16 %v74
  %v411 = vunpack.c.l.b16 %v75
  %v412 = vunpack.c.l.b16 %v76
  %v413 = vunpack.c.l.b16 %v77
  %v414 = vunpack.c.l.b16 %v78
  %v415 = vunpack.c.l.b16 %v79
  %v416 = vunpack.c.l.b16 %v80
  %v417 = vunpack.c.l.b16 %v81
  %v418 = vunpack.c.l.b16 %v82
  %v419 = vunpack.c.l.b16 %v83
  %v420 = vunpack.c.l.b16 %v84
  %v421 = vunpack.c.l.b16 %v85
  %v422 = vunpack.c.l.b16 %v86
  %v423 = vunpack.c.l.b16 %v87
  %v424 = vunpack.c.l.b16 %v88
  %v425 = vunpack.c.l.b16 %v89
  %v426 = vunpack.c.l.b16 %v90
  %v427 = vunpack.c.l.b16 %v91
  %v428 = vunpack.c.l.b16 %v92
  %v429 = vunpack.c.l.b16 %v93
  %v430 = vunpack.c.l.b16 %v94
  %v431 = vunpack.c.l.b16 %v95
  %v432 = vunpack.c.l.b16 %v96
  %v433 = vunpack.c.l.b16 %v97
  %v434 = vunpack.c.l.b16 %v98
  %v435 = vunpack.c.l.b16 %v99
  %v436 = vunpack.c.l.b16 %v100
  %v437 = vunpack.c.l.b16 %v101
  %v438 = vunpack.c.l.b16 %v102
  %v439 = vunpack.c.l.b16 %v103
  %v440 = vunpack.c.l.b16 %v104
  %v441 = vunpack.c.l.b16 %v105
  %v442 = vunpack.c.l.b16 %v106
  %v443 = vunpack.c.l.b16 %v107
  %v444 = vunpack.c.l.b16 %v108
  %v445 = vunpack.c.l.b16 %v109
  %v446 = vunpack.c.l.b16 %v110
  %v447 = vunpack.c.l.b16 %v111
  %v448 = vunpack.c.l.b16 %v112
  %v449 = vunpack.c.l.b16 %v113
  %v450 = vunpack.c.l.b16 %v114
  %v451 = vunpack.c.l.b16 %v115
  %v452 = vunpack.c.l.b16 %v116
  %v453 = vunpack.c.l.b16 %v117
  %v454 = vunpack.c.l.b16 %v118
  %v455 = vunpack.c.l.b16 %v119
  %v456 = vunpack.c.l.b16 %v120
  %v457 = vunpack.c.l.b16 %v121
  %v458 = vunpack.c.l.b16 %v122
  %v459 = vunpack.c.l.b16 %v123
  %v460 = vunpack.c.l.b16 %v124
  %v461 = vunpack.c.l.b16 %v125
  %v462 = vunpack.c.l.b16 %v126
  %v463 = vunpack.c.l.b16 %v127
  %v464 = vunpack.c.l.b16 %v128
  %v465 = vunpack.c.l.b16 %v129
  %v466 = vunpack.c.l.b16 %v130
  %v467 = vunpack.c.l.b16 %v131
  %v468 = vunpack.c.l.b16 %v132
  %v469 = vunpack.c.l.b16 %v133
  %v470 = vunpack.c.l.b16 %v134
  %v471 = vunpack.c.l.b16 %v135
  %v472 = vunpack.c.l.b16 %v136
  %v473 = vunpack.c.l.b16 %v137
  %v474 = vunpack.c.l.b16 %v138
  %v475 = vunpack.c.l.b16 %v139
  %v476 = vunpack.c.l.b16 %v140
  %v477 = vunpack.c.l.b16 %v141
  %v478 = vunpack.c.l.b16 %v142
  %v479 = vunpack.c.l.b16 %v143
  %v480 = vunpack.c.l.b16 %v144
  %v481 = vunpack.c.l.b16 %v145
  %v482 = vunpack.c.l.b16 %v146
  %v483 = vunpack.c.l.b16 %v147
  %v484 = vunpack.c.l.b16 %v148
  %v485 = vunpack.c.l.b16 %v149
  %v486 = vunpack.c.l.b16 %v150
  %v487 = vunpack.c.l.b16 %v151
  %v488 = vunpack.c.l.b16 %v152
  %v489 = vunpack.c.l.b16 %v153
  %v490 = vunpack.c.l.b16 %v154
  %v491 = vunpack.c.l.b16 %v155
  %v492 = vunpack.c.l.b16 %v156
  %v493 = vunpack.c.l.b16 %v157
  %v494 = vunpack.c.l.b16 %v158
  %v495 = vunpack.c.l.b16 %v159
  %v496 = vunpack.c.l.b16 %v160
  %v497 = vunpack.c.l.b16 %v161
  %v498 = vunpack.c.l.b16 %v162
  %v499 = vunpack.c.l.b16 %v163
  %v500 = vunpack.c.l.b16 %v164
  %v501 = vunpack.c.l.b16 %v165
  %v502 = vunpack.c.l.b16 %v166
  %v503 = vunpack.c.l.b16 %v167
  %v504 = vunpack.c.l.b16 %v168
  %v505 = vunpack.c.l.b16 %v169
  %v506 = vunpack.c.l.b16 %v170
  %v507 = vpack.c.b16 %v380, %v379
  %v508 = vpack.c.b16 %v382, %v381
  %v509 = vpack.c.b16 %v384, %v383
  %v510 = vpack.c.b16 %v386, %v385
  %v511 = vpack.c.b16 %v388, %v387
  %v512 = vpack.c.b16 %v390, %v389
  %v513 = vpack.c.b16 %v392, %v391
  %v514 = vpack.c.b16 %v394, %v393
  %v515 = vpack.c.b16 %v396, %v395
  %v516 = vpack.c.b16 %v398, %v397
  %v517 = vpack.c.b16 %v400, %v399
  %v518 = vpack.c.b16 %v402, %v401
  %v519 = vpack.c.b16 %v404, %v403
  %v520 = vpack.c.b16 %v406, %v405
  %v521 = vpack.c.b16 %v408, %v407
  %v522 = vpack.c.b16 %v410, %v409
  %v523 = vpack.c.b16 %v412, %v411
  %v524 = vpack.c.b16 %v414, %v413
  %v525 = vpack.c.b16 %v416, %v415
  %v526 = vpack.c.b16 %v418, %v417
  %v527 = vpack.c.b16 %v420, %v419
  %v528 = vpack.c.b16 %v422, %v421
  %v529 = vpack.c.b16 %v424, %v423
  %v530 = vpack.c.b16 %v426, %v425
  %v531 = vpack.c.b16 %v428, %v427
  %v532 = vpack.c.b16 %v430, %v429
  %v533 = vpack.c.b16 %v432, %v431
  %v534 = vpack.c.b16 %v434, %v433
  %v535 = vpack.c.b16 %v436, %v435
  %v536 = vpack.c.b16 %v438, %v437
  %v537 = vpack.c.b16 %v440, %v439
  %v538 = vpack.c.b16 %v442, %v441
  %v539 = vpack.c.b16 %v444, %v443
  %v540 = vpack.c.b16 %v446, %v445
  %v541 = vpack.c.b16 %v448, %v447
  %v542 = vpack.c.b16 %v450, %v449
  %v543 = vpack.c.b16 %v452, %v451
  %v544 = vpack.c.b16 %v454, %v453
  %v545 = vpack.c.b16 %v456, %v455
  %v546 = vpack.c.b16 %v458, %v457
  %v547 = vpack.c.b16 %v460, %v459
  %v548 = vpack.c.b16 %v462, %v461
  %v549 = vpack.c.b16 %v464, %v463
  %v550 = vpack.c.b16 %v466, %v465
  %v551 = vpack.c.b16 %v468, %v467
  %v552 = vpack.c.b16 %v470, %v469
  %v553 = vpack.c.b16 %v472, %v471
  %v554 = vpack.c.b16 %v474, %v473
  %v555 = vpack.c.b16 %v476, %v475
  %v556 = vpack.c.b16 %v478, %v477
  %v557 = vpack.c.b16 %v480, %v479
  %v558 = vpack.c.b16 %v482, %v481
  %v559 = vpack.c.b16 %v484, %v483
  %v560 = vpack.c.b16 %v486, %v485
  %v561 = vpack.c.b16 %v488, %v487
  %v562 = vpack.c.b16 %v490, %v489
  %v563 = vpack.c.b16 %v492, %v491
  %v564 = vpack.c.b16 %v494, %v493
  %v565 = vpack.c.b16 %v496, %v495
  %v566 = vpack.c.b16 %v498, %v497
  %v567 = vpack.c.b16 %v500, %v499
  %v568 = vpack.c.b16 %v502, %v501
  %v569 = vpack.c.b16 %v504, %v503
  %v570 = vpack.c.b16 %v506, %v505
  %635 = vmatprep.subr.bf16.mxu0 0
  %636 = vmatpush1.bf16.msra.mxu0 %v507
  %637 = vmatprep.subr.bf16.mxu0 0
  %638 = vmatpush1.bf16.msra.mxu0 %v508
  %639 = vmatprep.subr.bf16.mxu0 0
  %640 = vmatpush1.bf16.msra.mxu0 %v509
  %641 = vmatprep.subr.bf16.mxu0 0
  %642 = vmatpush1.bf16.msra.mxu0 %v510
  %643 = vmatprep.subr.bf16.mxu0 0
  %644 = vmatpush1.bf16.msra.mxu0 %v511
  %645 = vmatprep.subr.bf16.mxu0 0
  %646 = vmatpush1.bf16.msra.mxu0 %v512
  %647 = vmatprep.subr.bf16.mxu0 0
  %648 = vmatpush1.bf16.msra.mxu0 %v513
  %649 = vmatprep.subr.bf16.mxu0 0
  %650 = vmatpush1.bf16.msra.mxu0 %v514
  %651 = vmatprep.subr.bf16.mxu0 0
  %652 = vmatpush1.bf16.msra.mxu0 %v515
  %653 = vmatprep.subr.bf16.mxu0 0
  %654 = vmatpush1.bf16.msra.mxu0 %v516
  %655 = vmatprep.subr.bf16.mxu0 0
  %656 = vmatpush1.bf16.msra.mxu0 %v517
  %657 = vmatprep.subr.bf16.mxu0 0
  %658 = vmatpush1.bf16.msra.mxu0 %v518
  %659 = vmatprep.subr.bf16.mxu0 0
  %660 = vmatpush1.bf16.msra.mxu0 %v519
  %661 = vmatprep.subr.bf16.mxu0 0
  %662 = vmatpush1.bf16.msra.mxu0 %v520
  %663 = vmatprep.subr.bf16.mxu0 0
  %664 = vmatpush1.bf16.msra.mxu0 %v521
  %665 = vmatprep.subr.bf16.mxu0 0
  %666 = vmatpush1.bf16.msra.mxu0 %v522
  %667 = vmatprep.mubr.bf16.mxu0 %v220
  %668 = vmatmul.mubr.bf16.gmra.mrb[0].mxu0 %v219
  %v669 = vpop.f32.mrb[0].mxu0
  %v670 = vadd.f32 0.0, %v669
  %v671 = vpop.f32.mrb[0].mxu0
  %v672 = vpop.f32.mrb[0].mxu0
  %v673 = vadd.f32 0.0, %v672
  %v674 = vpop.f32.mrb[0].mxu0
  %675 = vmatprep.mubr.bf16.mxu0 %v228
  %676 = vmatmul.mubr.bf16.gmra.mrb[0].mxu0 %v227
  %v677 = vpop.f32.mrb[0].mxu0
  %v678 = vadd.f32 0.0, %v677
  %v679 = vpop.f32.mrb[0].mxu0
  %v680 = vpop.f32.mrb[0].mxu0
  %v681 = vadd.f32 0.0, %v680
  %v682 = vpop.f32.mrb[0].mxu0
  %683 = vdwg.mxu0
  %684 = vmatprep.subr.bf16.mxu0 0
  %685 = vmatpush1.bf16.msra.mxu0 %v523
  %686 = vmatprep.subr.bf16.mxu0 0
  %687 = vmatpush1.bf16.msra.mxu0 %v524
  %688 = vmatprep.subr.bf16.mxu0 0
  %689 = vmatpush1.bf16.msra.mxu0 %v525
  %690 = vmatprep.subr.bf16.mxu0 0
  %691 = vmatpush1.bf16.msra.mxu0 %v526
  %692 = vmatprep.subr.bf16.mxu0 0
  %693 = vmatpush1.bf16.msra.mxu0 %v527
  %694 = vmatprep.subr.bf16.mxu0 0
  %695 = vmatpush1.bf16.msra.mxu0 %v528
  %696 = vmatprep.subr.bf16.mxu0 0
  %697 = vmatpush1.bf16.msra.mxu0 %v529
  %698 = vmatprep.subr.bf16.mxu0 0
  %699 = vmatpush1.bf16.msra.mxu0 %v530
  %700 = vmatprep.subr.bf16.mxu0 0
  %701 = vmatpush1.bf16.msra.mxu0 %v531
  %702 = vmatprep.subr.bf16.mxu0 0
  %703 = vmatpush1.bf16.msra.mxu0 %v532
  %704 = vmatprep.subr.bf16.mxu0 0
  %705 = vmatpush1.bf16.msra.mxu0 %v533
  %706 = vmatprep.subr.bf16.mxu0 0
  %707 = vmatpush1.bf16.msra.mxu0 %v534
  %708 = vmatprep.subr.bf16.mxu0 0
  %709 = vmatpush1.bf16.msra.mxu0 %v535
  %710 = vmatprep.subr.bf16.mxu0 0
  %711 = vmatpush1.bf16.msra.mxu0 %v536
  %712 = vmatprep.subr.bf16.mxu0 0
  %713 = vmatpush1.bf16.msra.mxu0 %v537
  %714 = vmatprep.subr.bf16.mxu0 0
  %715 = vmatpush1.bf16.msra.mxu0 %v538
  %716 = vmatprep.mubr.bf16.mxu0 %v222
  %717 = vmatmul.mubr.bf16.gmra.mrb[0].mxu0 %v221
  %v718 = vpop.f32.mrb[0].mxu0
  %v719 = vadd.f32 %v670, %v718
  %v720 = vpop.f32.mrb[0].mxu0
  %v721 = vpop.f32.mrb[0].mxu0
  %v722 = vadd.f32 %v673, %v721
  %v723 = vpop.f32.mrb[0].mxu0
  %724 = vmatprep.mubr.bf16.mxu0 %v230
  %725 = vmatmul.mubr.bf16.gmra.mrb[0].mxu0 %v229
  %v726 = vpop.f32.mrb[0].mxu0
  %v727 = vadd.f32 %v678, %v726
  %v728 = vpop.f32.mrb[0].mxu0
  %v729 = vpop.f32.mrb[0].mxu0
  %v730 = vadd.f32 %v681, %v729
  %v731 = vpop.f32.mrb[0].mxu0
  %732 = vdwg.mxu0
  %733 = vmatprep.subr.bf16.mxu0 0
  %734 = vmatpush1.bf16.msra.mxu0 %v539
  %735 = vmatprep.subr.bf16.mxu0 0
  %736 = vmatpush1.bf16.msra.mxu0 %v540
  %737 = vmatprep.subr.bf16.mxu0 0
  %738 = vmatpush1.bf16.msra.mxu0 %v541
  %739 = vmatprep.subr.bf16.mxu0 0
  %740 = vmatpush1.bf16.msra.mxu0 %v542
  %741 = vmatprep.subr.bf16.mxu0 0
  %742 = vmatpush1.bf16.msra.mxu0 %v543
  %743 = vmatprep.subr.bf16.mxu0 0
  %744 = vmatpush1.bf16.msra.mxu0 %v544
  %745 = vmatprep.subr.bf16.mxu0 0
  %746 = vmatpush1.bf16.msra.mxu0 %v545
  %747 = vmatprep.subr.bf16.mxu0 0
  %748 = vmatpush1.bf16.msra.mxu0 %v546
  %749 = vmatprep.subr.bf16.mxu0 0
  %750 = vmatpush1.bf16.msra.mxu0 %v547
  %751 = vmatprep.subr.bf16.mxu0 0
  %752 = vmatpush1.bf16.msra.mxu0 %v548
  %753 = vmatprep.subr.bf16.mxu0 0
  %754 = vmatpush1.bf16.msra.mxu0 %v549
  %755 = vmatprep.subr.bf16.mxu0 0
  %756 = vmatpush1.bf16.msra.mxu0 %v550
  %757 = vmatprep.subr.bf16.mxu0 0
  %758 = vmatpush1.bf16.msra.mxu0 %v551
  %759 = vmatprep.subr.bf16.mxu0 0
  %760 = vmatpush1.bf16.msra.mxu0 %v552
  %761 = vmatprep.subr.bf16.mxu0 0
  %762 = vmatpush1.bf16.msra.mxu0 %v553
  %763 = vmatprep.subr.bf16.mxu0 0
  %764 = vmatpush1.bf16.msra.mxu0 %v554
  %765 = vmatprep.mubr.bf16.mxu0 %v224
  %766 = vmatmul.mubr.bf16.gmra.mrb[0].mxu0 %v223
  %v767 = vpop.f32.mrb[0].mxu0
  %v768 = vadd.f32 %v719, %v767
  %v769 = vpop.f32.mrb[0].mxu0
  %v770 = vpop.f32.mrb[0].mxu0
  %v771 = vadd.f32 %v722, %v770
  %v772 = vpop.f32.mrb[0].mxu0
  %773 = vmatprep.mubr.bf16.mxu0 %v232
  %774 = vmatmul.mubr.bf16.gmra.mrb[0].mxu0 %v231
  %v775 = vpop.f32.mrb[0].mxu0
  %v776 = vadd.f32 %v727, %v775
  %v777 = vpop.f32.mrb[0].mxu0
  %v778 = vpop.f32.mrb[0].mxu0
  %v779 = vadd.f32 %v730, %v778
  %v780 = vpop.f32.mrb[0].mxu0
  %781 = vdwg.mxu0
  %782 = vmatprep.subr.bf16.mxu0 0
  %783 = vmatpush1.bf16.msra.mxu0 %v555
  %784 = vmatprep.subr.bf16.mxu0 0
  %785 = vmatpush1.bf16.msra.mxu0 %v556
  %786 = vmatprep.subr.bf16.mxu0 0
  %787 = vmatpush1.bf16.msra.mxu0 %v557
  %788 = vmatprep.subr.bf16.mxu0 0
  %789 = vmatpush1.bf16.msra.mxu0 %v558
  %790 = vmatprep.subr.bf16.mxu0 0
  %791 = vmatpush1.bf16.msra.mxu0 %v559
  %792 = vmatprep.subr.bf16.mxu0 0
  %793 = vmatpush1.bf16.msra.mxu0 %v560
  %794 = vmatprep.subr.bf16.mxu0 0
  %795 = vmatpush1.bf16.msra.mxu0 %v561
  %796 = vmatprep.subr.bf16.mxu0 0
  %797 = vmatpush1.bf16.msra.mxu0 %v562
  %798 = vmatprep.subr.bf16.mxu0 0
  %799 = vmatpush1.bf16.msra.mxu0 %v563
  %800 = vmatprep.subr.bf16.mxu0 0
  %801 = vmatpush1.bf16.msra.mxu0 %v564
  %802 = vmatprep.subr.bf16.mxu0 0
  %803 = vmatpush1.bf16.msra.mxu0 %v565
  %804 = vmatprep.subr.bf16.mxu0 0
  %805 = vmatpush1.bf16.msra.mxu0 %v566
  %806 = vmatprep.subr.bf16.mxu0 0
  %807 = vmatpush1.bf16.msra.mxu0 %v567
  %808 = vmatprep.subr.bf16.mxu0 0
  %809 = vmatpush1.bf16.msra.mxu0 %v568
  %810 = vmatprep.subr.bf16.mxu0 0
  %811 = vmatpush1.bf16.msra.mxu0 %v569
  %812 = vmatprep.subr.bf16.mxu0 0
  %813 = vmatpush1.bf16.msra.mxu0 %v570
  %814 = vmatprep.mubr.bf16.mxu0 %v226
  %815 = vmatmul.mubr.bf16.gmra.mrb[0].mxu0 %v225
  %v816 = vpop.f32.mrb[0].mxu0
  %v817 = vadd.f32 %v768, %v816
  %v818 = vpop.f32.mrb[0].mxu0
  %v819 = vpop.f32.mrb[0].mxu0
  %v820 = vadd.f32 %v771, %v819
  %v821 = vpop.f32.mrb[0].mxu0
  %822 = vmatprep.mubr.bf16.mxu0 %v234
  %823 = vmatmul.mubr.bf16.gmra.mrb[0].mxu0 %v233
  %v824 = vpop.f32.mrb[0].mxu0
  %v825 = vadd.f32 %v776, %v824
  %v826 = vpop.f32.mrb[0].mxu0
  %v827 = vpop.f32.mrb[0].mxu0
  %v828 = vadd.f32 %v779, %v827
  %v829 = vpop.f32.mrb[0].mxu0
  %830 = vdwg.mxu0
  %v831 = vadd.f32 %v23, %v817
  %v832 = vadd.f32 %v24, %v820
  %v833 = vadd.f32 %v25, %v825
  %v834 = vadd.f32 %v26, %v828
  %835 = vst [vmem:[#allocation2] sm:$0xff] %v831
  %836 = vst [vmem:[#allocation2 + $0x8] sm:$0xff] %v832
  %837 = vst [vmem:[#allocation2 + $0x10] sm:$0xff] %v833
  %838 = vst [vmem:[#allocation2 + $0x18] sm:$0xff] %v834
  // Predicated region
  $region14: #{_lambda_.8} parent=0 // pred_check
    %p839 = pneg %p15
  $region15: #{_lambda_.8} parent=0 // pred_check_branch
    %841 = sbr.rel (%p839) target = $region17
  $region16: #{_lambda_.8} parent=0 // pred_region
    %v842 = vld [vmem:[#allocation2] sm:$0xff]
    %v843 = vld [vmem:[#allocation2 + $0x8] sm:$0xff]
    %v844 = vld [vmem:[#allocation2 + $0x10] sm:$0xff]
    %v845 = vld [vmem:[#allocation2 + $0x18] sm:$0xff]
    %v846 = vpack.c.bf16 %v843, %v842
    %v847 = vpack.c.bf16 %v845, %v844
    %v850 = vunpack.c.l.b16 %v846
    %v851 = vunpack.c.h.b16 %v846
    %v852 = vunpack.c.l.b16 %v847
    %v853 = vunpack.c.h.b16 %v847
    %v854 = vpack.c.b16 %v850, %v850
    %v855 = vpack.c.b16 %v851, %v851
    %v856 = vpack.c.b16 %v852, %v852
    %v857 = vpack.c.b16 %v853, %v853
    %862 = vst [vmem:[%s2] sm:$0xf] %v854
    %863 = vst [vmem:[%s2 + $0x4] sm:$0xf] %v855
    %864 = vst [vmem:[%s2 + $0x8] sm:$0xf] %v856
    %865 = vst [vmem:[%s2 + $0xc] sm:$0xf] %v857
    %v866 = vadd.f32 %v842, %v843
    %v867 = vadd.f32 %v866, %v844
    %v868 = vadd.f32 %v867, %v845
    %v869 = vrot.slane %v868, 4
    %v870 = vadd.f32 %v868, %v869
    %v871 = vrot.slane %v870, 2
    %v872 = vadd.f32 %v870, %v871
    %v873 = vrot.slane %v872, 1
    %v874 = vadd.f32 %v872, %v873
    %875 = vst [vmem:[%s3] sm:$0x1] %v874
    %v876 = vmul.f32 %v842, %v842
    %v877 = vmul.f32 %v843, %v843
    %v878 = vmul.f32 %v844, %v844
    %v879 = vmul.f32 %v845, %v845
    %v880 = vadd.f32 %v876, %v877
    %v881 = vadd.f32 %v880, %v878
    %v882 = vadd.f32 %v881, %v879
    %v883 = vrot.slane %v882, 4
    %v884 = vadd.f32 %v882, %v883
    %v885 = vrot.slane %v884, 2
    %v886 = vadd.f32 %v884, %v885
    %v887 = vrot.slane %v886, 1
    %v888 = vadd.f32 %v886, %v887
    %889 = vst [vmem:[%s4] sm:$0x1] %v888
  $region17: #{_lambda_.8} parent=0 // pred_fallthru
    _
  // Predicated region
  $region18: #{_lambda_.8} parent=0 // pred_check
    _
  $region19: #{_lambda_.8} parent=0 // pred_check_branch
    %891 = sbr.rel (0) target = $region21
  $region20: #{_lambda_.8} parent=0 // pred_region
    _
  $region21: #{_lambda_.8} parent=0 // pred_fallthru
    _
  // Predicated region
  $region22: #{_lambda_.8} parent=0 // pred_check
    _
  $region23: #{_lambda_.8} parent=0 // pred_check_branch
    %893 = sbr.rel (0) target = $region25
  $region24: #{_lambda_.8} parent=0 // pred_region
    _
  $region25: #{_lambda_.8} parent=0 // pred_fallthru
    _
  // Predicated region
  $region26: #{_lambda_.8} parent=0 // pred_check
    _
  $region27: #{_lambda_.8} parent=0 // pred_check_branch
    %895 = sbr.rel (0) target = $region29
  $region28: #{_lambda_.8} parent=0 // pred_region
    _
  $region29: #{_lambda_.8} parent=0 // pred_fallthru
    _
  // Predicated region
  $region30: #{_lambda_.8} parent=0 // pred_check
    _
  $region31: #{_lambda_.8} parent=0 // pred_check_branch
    %897 = sbr.rel (0) target = $region33
  $region32: #{_lambda_.8} parent=0 // pred_region
    _
  $region33: #{_lambda_.8} parent=0 // pred_fallthru
    _
  // Predicated region
  $region34: #{_lambda_.8} parent=0 // pred_check
    _
  $region35: #{_lambda_.8} parent=0 // pred_check_branch
    %899 = sbr.rel (0) target = $region37
  $region36: #{_lambda_.8} parent=0 // pred_region
    _
  $region37: #{_lambda_.8} parent=0 // pred_fallthru
    _
  // Predicated region
  $region38: #{_lambda_.8} parent=0 // pred_check
    _
  $region39: #{_lambda_.8} parent=0 // pred_check_branch
    %901 = sbr.rel (0) target = $region41
  $region40: #{_lambda_.8} parent=0 // pred_region
    _
  $region41: #{_lambda_.8} parent=0 // pred_fallthru
    _

// kernel: _lambda_.9
$region0: #{_lambda_.9}
  #allocation0 [shape = 'u32[]', space=smem, size = 0x4, offset = 0x4, fixed_abs, tag = 'smem constant byte address 0x4 - core index']
  #allocation1 [shape = 'u32[144,128]{1,0:T(1,128)}', space=vmem, size = 0x12000, scoped, tag = 'internal scratch']
  #allocation2 [shape = 'f32[16,128]{1,0:T(8,128)}', space=vmem, size = 0x2000, scoped, tag = 'scratch operand']
  %s0 = inlined_call_operand.vmem [shape: bf16[16,2048], index: 0, kind: input, shape index: {}]
  %s1 = inlined_call_operand.vmem [shape: bf16[2048,128], index: 1, kind: input, shape index: {}]
  %s2 = inlined_call_operand.vmem [shape: f32[1,128], index: 2, kind: input, shape index: {}]
  %s3 = inlined_call_operand.vmem [shape: f32[16,128], index: 3, kind: output, shape index: {}]
  %s4 = sld [smem:[#allocation0]]
  $region76: #{_lambda_.9} parent=0
    _
  %s6 = ssub.s32 1, %s4
  %s7 = scalar_select 0, %s6, %s4
  $region1: #{_lambda_.9} parent=0
    #allocation3 [shape = 'u8[65536]{0}', space=vmem, size = 0x10000, scoped, tag = 'input window, operand 0']
    loop: start=0, step=1, limit=4
    $region2: #{_lambda_.9} parent=1 // loop_pre_header
      _
    $region3: #{_lambda_.9} parent=1 // loop_header
      %s9 = sphi 0, %s13
      %p10 = scmp.ge.s32.totalorder %s9, 4
      %s16 = sphi 0, %s35
      %s17 = sphi 0, %s31
      %s18 = sphi 0, %s27
      %s19 = sphi 0, %s16
      %s20 = sphi 0, %s17
      %s21 = sphi 0, %s18
      %s22 = sphi 0, %s19
      %s23 = sphi 0, %s20
      %s24 = sphi 0, %s21
      %s40 = sphi 0, %s42
      %s43 = sphi 0, %s40
      %s44 = sphi 0, %s43
      %s60 = sphi 0, %s44
      %s68 = sphi 0, %s70
      %s71 = sphi 0, %s68
      %s72 = sphi 0, %s71
      %s88 = sphi 0, %s72
      %s94 = sphi 0, %s96
      %s97 = sphi 0, %s94
      %s98 = sphi 0, %s97
      %s114 = sphi 0, %s98
      %s122 = sphi 0, %s124
      %s125 = sphi 0, %s122
      %s126 = sphi 0, %s125
      %s142 = sphi 0, %s126
    $region4: #{_lambda_.9} parent=1 // loop_header_branch
      %12 = sbr.rel (%p10) target = $region8
    $region5: #{_lambda_.9} parent=1 // loop_body
      %s14 = ssub.s32 %s9, 1
      %s15 = ssub.s32 %s9, 2
      %s25 = sadd.s32 1, %s18
      %p26 = scmp.ge.s32.totalorder %s25, 2
      %s27 = scalar_select %p26, 0, %s25
      %s28 = sadd.s32 1, %s17
      %s29 = scalar_select %p26, %s28, %s17
      %p30 = scmp.ge.s32.totalorder %s29, 1
      %s31 = scalar_select %p30, 0, %s29
      %s32 = sadd.s32 1, %s16
      %s33 = scalar_select %p30, %s32, %s16
      %p34 = scmp.ge.s32.totalorder %s33, 1
      %s35 = scalar_select %p34, 0, %s33
      %s36 = ssub.s32 %s17, %s31
      %s37 = ssub.s32 %s18, %s27
      %s38 = sor.u32 %s36, %s37
      %p39 = scmp.eq.s32.totalorder %s38, 0
      %s41 = sadd.s32 %s40, 1
      %s42 = scalar_select %p39, %s40, %s41
      %p45 = pneg %p39
      %p46 = scmp.eq.s32.totalorder %s9, 1
      %p47 = por %p45, %p46
      %p48 = scmp.ne.s32.totalorder %s40, %s43
      %p49 = scmp.eq.s32.totalorder %s9, 0
      %p50 = por %p48, %p49
      %p51 = scmp.ne.s32.totalorder %s40, %s43
      %p52 = scmp.eq.s32.totalorder %s14, 1
      %p53 = por %p51, %p52
      %p54 = scmp.ne.s32.totalorder %s43, %s44
      %p55 = scmp.eq.s32.totalorder %s14, 0
      %p56 = por %p54, %p55
      %p57 = scmp.ne.s32.totalorder %s43, %s44
      %p58 = scmp.eq.s32.totalorder %s15, 1
      %p59 = por %p57, %p58
      %p61 = scmp.ne.s32.totalorder %s44, %s60
      %p62 = scmp.eq.s32.totalorder %s15, 0
      %p63 = por %p61, %p62
      %s64 = ssub.s32 %s18, %s27
      %s65 = ssub.s32 %s16, %s35
      %s66 = sor.u32 %s64, %s65
      %p67 = scmp.eq.s32.totalorder %s66, 0
      %s69 = sadd.s32 %s68, 1
      %s70 = scalar_select %p67, %s68, %s69
      %p73 = pneg %p67
      %p74 = scmp.eq.s32.totalorder %s9, 1
      %p75 = por %p73, %p74
      %p76 = scmp.ne.s32.totalorder %s68, %s71
      %p77 = scmp.eq.s32.totalorder %s9, 0
      %p78 = por %p76, %p77
      %p79 = scmp.ne.s32.totalorder %s68, %s71
      %p80 = scmp.eq.s32.totalorder %s14, 1
      %p81 = por %p79, %p80
      %p82 = scmp.ne.s32.totalorder %s71, %s72
      %p83 = scmp.eq.s32.totalorder %s14, 0
      %p84 = por %p82, %p83
      %p85 = scmp.ne.s32.totalorder %s71, %s72
      %p86 = scmp.eq.s32.totalorder %s15, 1
      %p87 = por %p85, %p86
      %p89 = scmp.ne.s32.totalorder %s72, %s88
      %p90 = scmp.eq.s32.totalorder %s15, 0
      %p91 = por %p89, %p90
      %s92 = ssub.s32 %s16, %s35
      %p93 = scmp.eq.s32.totalorder %s92, 0
      %s95 = sadd.s32 %s94, 1
      %s96 = scalar_select %p93, %s94, %s95
      %p99 = pneg %p93
      %p100 = scmp.eq.s32.totalorder %s9, 1
      %p101 = por %p99, %p100
      %p102 = scmp.ne.s32.totalorder %s94, %s97
      %p103 = scmp.eq.s32.totalorder %s9, 0
      %p104 = por %p102, %p103
      %p105 = scmp.ne.s32.totalorder %s94, %s97
      %p106 = scmp.eq.s32.totalorder %s14, 1
      %p107 = por %p105, %p106
      %p108 = scmp.ne.s32.totalorder %s97, %s98
      %p109 = scmp.eq.s32.totalorder %s14, 0
      %p110 = por %p108, %p109
      %p111 = scmp.ne.s32.totalorder %s97, %s98
      %p112 = scmp.eq.s32.totalorder %s15, 1
      %p113 = por %p111, %p112
      %p115 = scmp.ne.s32.totalorder %s98, %s114
      %p116 = scmp.eq.s32.totalorder %s15, 0
      %p117 = por %p115, %p116
      %s118 = ssub.s32 %s17, %s31
      %s119 = ssub.s32 %s16, %s35
      %s120 = sor.u32 %s118, %s119
      %p121 = scmp.eq.s32.totalorder %s120, 0
      %s123 = sadd.s32 %s122, 1
      %s124 = scalar_select %p121, %s122, %s123
      %p127 = pneg %p121
      %p128 = scmp.eq.s32.totalorder %s9, 1
      %p129 = por %p127, %p128
      %p130 = scmp.ne.s32.totalorder %s122, %s125
      %p131 = scmp.eq.s32.totalorder %s9, 0
      %p132 = por %p130, %p131
      %p133 = scmp.ne.s32.totalorder %s122, %s125
      %p134 = scmp.eq.s32.totalorder %s14, 1
      %p135 = por %p133, %p134
      %p136 = scmp.ne.s32.totalorder %s125, %s126
      %p137 = scmp.eq.s32.totalorder %s14, 0
      %p138 = por %p136, %p137
      %p139 = scmp.ne.s32.totalorder %s125, %s126
      %p140 = scmp.eq.s32.totalorder %s15, 1
      %p141 = por %p139, %p140
      %p143 = scmp.ne.s32.totalorder %s126, %s142
      %p144 = scmp.eq.s32.totalorder %s15, 0
      %p145 = por %p143, %p144
      %p146 = scmp.le.s32.totalorder 1, %s9
      %p147 = scmp.lt.s32.totalorder %s9, 3
      %p148 = pnand %p146, %p147
      %p149 = pneg %p148
      // Predicated region
      $region9: #{_lambda_.9} parent=5 // pred_check
        _
      $region10: #{_lambda_.9} parent=5 // pred_check_branch
        %151 = sbr.rel (%p148) target = $region12
      $region11: #{_lambda_.9} parent=5 // pred_region
        %s152 = ssub.s32 %s9, 1
        // Predicated region
        $region13: #{_lambda_.9} parent=11 // pred_check
          %p153 = pneg %p110
        $region14: #{_lambda_.9} parent=11 // pred_check_branch
          %155 = sbr.rel (%p153) target = $region16
        $region15: #{_lambda_.9} parent=11 // pred_region
          %p156 = scmp.lt.s32.totalorder %s19, 0
          %s157 = scalar_select %p156, %s19, 0
          %s158 = scalar_lea.vmem %s2, %s157
        $region16: #{_lambda_.9} parent=11 // pred_fallthru
          _
      $region12: #{_lambda_.9} parent=5 // pred_fallthru
        _
      %p159 = scmp.lt.s32.totalorder %s9, 2
      // Predicated region
      $region17: #{_lambda_.9} parent=5 // pred_check
        %p160 = pneg %p159
      $region18: #{_lambda_.9} parent=5 // pred_check_branch
        %162 = sbr.rel (%p160) target = $region20
      $region19: #{_lambda_.9} parent=5 // pred_region
        // Predicated region
        $region21: #{_lambda_.9} parent=19 // pred_check
          %p163 = pneg %p50
        $region22: #{_lambda_.9} parent=19 // pred_check_branch
          %165 = sbr.rel (%p163) target = $region24
        $region23: #{_lambda_.9} parent=19 // pred_region
          %s166 = sand.u32 %s40, 1
          %s167 = sand.u32 %s40, 1
          %s168 = smul.addr %s167, 64
          %s169 = scalar_lea.vmem [#allocation3], %s168
          %s170 = smul.u32 2, %s17
          %s171 = smul.u32 8, %s18
          %s172 = smul.addr %s170, 16
          %s173 = sadd.s32 %s171, %s172
          %s174 = smul.addr %s173, 4
          %s175 = scalar_lea.vmem %s0, %s174
          // Predicated region
          $region25: #{_lambda_.9} parent=23 // pred_check
            _
          $region26: #{_lambda_.9} parent=23 // pred_check_branch
            %177 = sbr.rel (0) target = $region28
          $region27: #{_lambda_.9} parent=23 // pred_region
            // Predicated region
            $region29: #{_lambda_.9} parent=27 // pred_check
              _
            $region30: #{_lambda_.9} parent=27 // pred_check_branch
              %179 = sbr.rel (0) target = $region32
            $region31: #{_lambda_.9} parent=27 // pred_region
              loop: start=0, step=1, limit=1
              $region33: #{_lambda_.9} parent=31 // loop_pre_header
                _
              $region34: #{_lambda_.9} parent=31 // loop_header
                %s181 = sphi 0, %s185
                %p182 = scmp.ge.s32.totalorder %s181, 1
                %s186 = sphi %s175, %s175
                %s187 = sphi %s169, %s169
              $region35: #{_lambda_.9} parent=31 // loop_header_branch
                %184 = sbr.rel (%p182) target = $region39
              $region36: #{_lambda_.9} parent=31 // loop_body
                %v188 = vld [vmem:[%s186] sm:$0xff]
                %189 = vst [vmem:[%s187] sm:$0xff] %v188
                %v190 = vld [vmem:[%s186 + $0x8] sm:$0xff]
                %191 = vst [vmem:[%s187 + $0x8] sm:$0xff] %v190
                %v192 = vld [vmem:[%s186 + $0x10] sm:$0xff]
                %193 = vst [vmem:[%s187 + $0x10] sm:$0xff] %v192
                %v194 = vld [vmem:[%s186 + $0x18] sm:$0xff]
                %195 = vst [vmem:[%s187 + $0x18] sm:$0xff] %v194
                %v196 = vld [vmem:[%s186 + $0x40] sm:$0xff]
                %197 = vst [vmem:[%s187 + $0x20] sm:$0xff] %v196
                %v198 = vld [vmem:[%s186 + $0x48] sm:$0xff]
                %199 = vst [vmem:[%s187 + $0x28] sm:$0xff] %v198
                %v200 = vld [vmem:[%s186 + $0x50] sm:$0xff]
                %201 = vst [vmem:[%s187 + $0x30] sm:$0xff] %v200
                %v202 = vld [vmem:[%s186 + $0x58] sm:$0xff]
                %203 = vst [vmem:[%s187 + $0x38] sm:$0xff] %v202
              $region37: #{_lambda_.9} parent=31 // loop_footer
                %s185 = sadd.s32 1, %s181
              $region38: #{_lambda_.9} parent=31 // loop_footer_branch
                %180 = sbr.rel target = $region34
              $region39: #{_lambda_.9} parent=31 // loop_exit
                _
            $region32: #{_lambda_.9} parent=27 // pred_fallthru
              _
            // Predicated region
            $region40: #{_lambda_.9} parent=27 // pred_check
              _
            $region41: #{_lambda_.9} parent=27 // pred_check_branch
              %205 = sbr.rel target = $region43
            $region42: #{_lambda_.9} parent=27 // pred_region
              _
            $region43: #{_lambda_.9} parent=27 // pred_fallthru
              _
          $region28: #{_lambda_.9} parent=23 // pred_fallthru
            _
          %206 = vnop
        $region24: #{_lambda_.9} parent=19 // pred_fallthru
          _
        // Predicated region
        $region44: #{_lambda_.9} parent=19 // pred_check
          %p207 = pneg %p78
        $region45: #{_lambda_.9} parent=19 // pred_check_branch
          %209 = sbr.rel (%p207) target = $region47
        $region46: #{_lambda_.9} parent=19 // pred_region
          %s210 = smul.u32 128, %s18
          %p211 = scmp.lt.s32.totalorder %s210, 255
          %s212 = scalar_select %p211, %s210, 255
          %p213 = scmp.lt.s32.totalorder %s16, 0
          %s214 = scalar_select %p213, %s16, 0
          %s215 = sadd.s32 %s214, %s212
          %s216 = smul.addr %s215, 4
          %s217 = scalar_lea.vmem %s1, %s216
          %s218 = smul.u32 128, %s18
        $region47: #{_lambda_.9} parent=19 // pred_fallthru
          _
      $region20: #{_lambda_.9} parent=5 // pred_fallthru
        _
      %p219 = scmp.le.s32.totalorder 1, %s9
      %p220 = scmp.lt.s32.totalorder %s9, 3
      %p221 = pnand %p219, %p220
      %p222 = pneg %p221
      // Predicated region
      $region48: #{_lambda_.9} parent=5 // pred_check
        _
      $region49: #{_lambda_.9} parent=5 // pred_check_branch
        %224 = sbr.rel (%p221) target = $region51
      $region50: #{_lambda_.9} parent=5 // pred_region
        %s225 = ssub.s32 %s9, 1
        %s226 = sand.u32 %s43, 1
        %s227 = sand.u32 %s43, 1
        %s228 = smul.addr %s227, 64
        %s229 = scalar_lea.vmem [#allocation3], %s228
        // Predicated region
        $region52: #{_lambda_.9} parent=50 // pred_check
          %p230 = pneg %p56
        $region53: #{_lambda_.9} parent=50 // pred_check_branch
          %232 = sbr.rel (%p230) target = $region55
        $region54: #{_lambda_.9} parent=50 // pred_region
          _
        $region55: #{_lambda_.9} parent=50 // pred_fallthru
          _
        %s233 = sand.u32 %s43, 1
        %s234 = sand.u32 %s43, 1
        %s235 = smul.addr %s234, 64
        %s236 = scalar_lea.vmem [#allocation3], %s235
        %p237 = pneg %p56
        %p238 = pneg %p53
        %s239 = smul.u32 128, %s21
        %p240 = scmp.lt.s32.totalorder %s239, 255
        %s241 = scalar_select %p240, %s239, 255
        %p242 = scmp.lt.s32.totalorder %s19, 0
        %s243 = scalar_select %p242, %s19, 0
        %s244 = sadd.s32 %s243, %s241
        %s245 = smul.addr %s244, 4
        %s246 = scalar_lea.vmem %s1, %s245
        %p247 = pneg %p84
        %p248 = pneg %p81
        %p249 = scmp.lt.s32.totalorder %s19, 0
        %s250 = scalar_select %p249, %s19, 0
        %s251 = scalar_lea.vmem %s2, %s250
        %p252 = pneg %p110
        %p253 = pneg %p107
        %p254 = pneg %p138
        %p255 = pneg %p135
        %s256 = smul.u32 2, %s20
        %p257 = scmp.lt.s32.totalorder %s256, 1
        %s258 = scalar_select %p257, %s256, 1
        %p259 = scmp.lt.s32.totalorder %s19, 0
        %s260 = scalar_select %p259, %s19, 0
        %s261 = sadd.s32 %s260, %s258
        %s262 = smul.addr %s261, 8
        %s263 = scalar_lea.vmem %s3, %s262
        %s264 = smul.u32 2, %s20
        %s265 = smul.u32 8, %s21
        %s266 = smul.u32 128, %s21
        %p267 = scmp.lt.s32.totalorder %s266, 255
        %s268 = scalar_select %p267, %s266, 255
        %p269 = scmp.lt.s32.totalorder %s19, 0
        %s270 = scalar_select %p269, %s19, 0
        %s271 = sadd.s32 %s270, %s268
        %s272 = smul.addr %s271, 4
        %s273 = scalar_lea.vmem %s1, %s272
        %s274 = smul.u32 128, %s21
        %p275 = scmp.lt.s32.totalorder %s19, 0
        %s276 = scalar_select %p275, %s19, 0
        %s277 = scalar_lea.vmem %s2, %s276
        %s278 = smul.u32 2, %s20
        %p279 = scmp.lt.s32.totalorder %s278, 1
        %s280 = scalar_select %p279, %s278, 1
        %p281 = scmp.lt.s32.totalorder %s19, 0
        %s282 = scalar_select %p281, %s19, 0
        %s283 = sadd.s32 %s282, %s280
        %s284 = smul.addr %s283, 8
        %s285 = scalar_lea.vmem %s3, %s284
        %s286 = smul.u32 2, %s20
        %p288 = scmp.eq.s32.totalorder %s21, 0
        // Predicated region
        $region56: #{_lambda_.9} parent=50 // pred_check
          %p289 = pneg %p288
        $region57: #{_lambda_.9} parent=50 // pred_check_branch
          %291 = sbr.rel (%p289) target = $region59
        $region58: #{_lambda_.9} parent=50 // pred_region
          %292 = vst [vmem:[#allocation2] sm:$0xff] 0.0
          %293 = vst [vmem:[#allocation2 + $0x8] sm:$0xff] 0.0
        $region59: #{_lambda_.9} parent=50 // pred_fallthru
          _
        %v294 = vld [vmem:[#allocation2] sm:$0xff]
        %v295 = vld [vmem:[#allocation2 + $0x8] sm:$0xff]
        %v296 = vld [vmem:[%s229] sm:$0xff]
        %v297 = vld [vmem:[%s229 + $0x8] sm:$0xff]
        %v298 = vld [vmem:[%s229 + $0x10] sm:$0xff]
        %v299 = vld [vmem:[%s229 + $0x18] sm:$0xff]
        %v300 = vld [vmem:[%s229 + $0x20] sm:$0xff]
        %v301 = vld [vmem:[%s229 + $0x28] sm:$0xff]
        %v302 = vld [vmem:[%s229 + $0x30] sm:$0xff]
        %v303 = vld [vmem:[%s229 + $0x38] sm:$0xff]
        %v304 = vld [vmem:[%s273] sm:$0xf]
        %v305 = vld [vmem:[%s273 + $0x4] sm:$0xf]
        %v306 = vld [vmem:[%s273 + $0x8] sm:$0xf]
        %v307 = vld [vmem:[%s273 + $0xc] sm:$0xf]
        %v308 = vld [vmem:[%s273 + $0x10] sm:$0xf]
        %v309 = vld [vmem:[%s273 + $0x14] sm:$0xf]
        %v310 = vld [vmem:[%s273 + $0x18] sm:$0xf]
        %v311 = vld [vmem:[%s273 + $0x1c] sm:$0xf]
        %v312 = vld [vmem:[%s273 + $0x20] sm:$0xf]
        %v313 = vld [vmem:[%s273 + $0x24] sm:$0xf]
        %v314 = vld [vmem:[%s273 + $0x28] sm:$0xf]
        %v315 = vld [vmem:[%s273 + $0x2c] sm:$0xf]
        %v316 = vld [vmem:[%s273 + $0x30] sm:$0xf]
        %v317 = vld [vmem:[%s273 + $0x34] sm:$0xf]
        %v318 = vld [vmem:[%s273 + $0x38] sm:$0xf]
        %v319 = vld [vmem:[%s273 + $0x3c] sm:$0xf]
        %v320 = vld [vmem:[%s273 + $0x40] sm:$0xf]
        %v321 = vld [vmem:[%s273 + $0x44] sm:$0xf]
        %v322 = vld [vmem:[%s273 + $0x48] sm:$0xf]
        %v323 = vld [vmem:[%s273 + $0x4c] sm:$0xf]
        %v324 = vld [vmem:[%s273 + $0x50] sm:$0xf]
        %v325 = vld [vmem:[%s273 + $0x54] sm:$0xf]
        %v326 = vld [vmem:[%s273 + $0x58] sm:$0xf]
        %v327 = vld [vmem:[%s273 + $0x5c] sm:$0xf]
        %v328 = vld [vmem:[%s273 + $0x60] sm:$0xf]
        %v329 = vld [vmem:[%s273 + $0x64] sm:$0xf]
        %v330 = vld [vmem:[%s273 + $0x68] sm:$0xf]
        %v331 = vld [vmem:[%s273 + $0x6c] sm:$0xf]
        %v332 = vld [vmem:[%s273 + $0x70] sm:$0xf]
        %v333 = vld [vmem:[%s273 + $0x74] sm:$0xf]
        %v334 = vld [vmem:[%s273 + $0x78] sm:$0xf]
        %v335 = vld [vmem:[%s273 + $0x7c] sm:$0xf]
        %v336 = vld [vmem:[%s273 + $0x80] sm:$0xf]
        %v337 = vld [vmem:[%s273 + $0x84] sm:$0xf]
        %v338 = vld [vmem:[%s273 + $0x88] sm:$0xf]
        %v339 = vld [vmem:[%s273 + $0x8c] sm:$0xf]
        %v340 = vld [vmem:[%s273 + $0x90] sm:$0xf]
        %v341 = vld [vmem:[%s273 + $0x94] sm:$0xf]
        %v342 = vld [vmem:[%s273 + $0x98] sm:$0xf]
        %v343 = vld [vmem:[%s273 + $0x9c] sm:$0xf]
        %v344 = vld [vmem:[%s273 + $0xa0] sm:$0xf]
        %v345 = vld [vmem:[%s273 + $0xa4] sm:$0xf]
        %v346 = vld [vmem:[%s273 + $0xa8] sm:$0xf]
        %v347 = vld [vmem:[%s273 + $0xac] sm:$0xf]
        %v348 = vld [vmem:[%s273 + $0xb0] sm:$0xf]
        %v349 = vld [vmem:[%s273 + $0xb4] sm:$0xf]
        %v350 = vld [vmem:[%s273 + $0xb8] sm:$0xf]
        %v351 = vld [vmem:[%s273 + $0xbc] sm:$0xf]
        %v352 = vld [vmem:[%s273 + $0xc0] sm:$0xf]
        %v353 = vld [vmem:[%s273 + $0xc4] sm:$0xf]
        %v354 = vld [vmem:[%s273 + $0xc8] sm:$0xf]
        %v355 = vld [vmem:[%s273 + $0xcc] sm:$0xf]
        %v356 = vld [vmem:[%s273 + $0xd0] sm:$0xf]
        %v357 = vld [vmem:[%s273 + $0xd4] sm:$0xf]
        %v358 = vld [vmem:[%s273 + $0xd8] sm:$0xf]
        %v359 = vld [vmem:[%s273 + $0xdc] sm:$0xf]
        %v360 = vld [vmem:[%s273 + $0xe0] sm:$0xf]
        %v361 = vld [vmem:[%s273 + $0xe4] sm:$0xf]
        %v362 = vld [vmem:[%s273 + $0xe8] sm:$0xf]
        %v363 = vld [vmem:[%s273 + $0xec] sm:$0xf]
        %v364 = vld [vmem:[%s273 + $0xf0] sm:$0xf]
        %v365 = vld [vmem:[%s273 + $0xf4] sm:$0xf]
        %v366 = vld [vmem:[%s273 + $0xf8] sm:$0xf]
        %v367 = vld [vmem:[%s273 + $0xfc] sm:$0xf]
        %v368 = vld [vmem:[%s273 + $0x100] sm:$0xf]
        %v369 = vld [vmem:[%s273 + $0x104] sm:$0xf]
        %v370 = vld [vmem:[%s273 + $0x108] sm:$0xf]
        %v371 = vld [vmem:[%s273 + $0x10c] sm:$0xf]
        %v372 = vld [vmem:[%s273 + $0x110] sm:$0xf]
        %v373 = vld [vmem:[%s273 + $0x114] sm:$0xf]
        %v374 = vld [vmem:[%s273 + $0x118] sm:$0xf]
        %v375 = vld [vmem:[%s273 + $0x11c] sm:$0xf]
        %v376 = vld [vmem:[%s273 + $0x120] sm:$0xf]
        %v377 = vld [vmem:[%s273 + $0x124] sm:$0xf]
        %v378 = vld [vmem:[%s273 + $0x128] sm:$0xf]
        %v379 = vld [vmem:[%s273 + $0x12c] sm:$0xf]
        %v380 = vld [vmem:[%s273 + $0x130] sm:$0xf]
        %v381 = vld [vmem:[%s273 + $0x134] sm:$0xf]
        %v382 = vld [vmem:[%s273 + $0x138] sm:$0xf]
        %v383 = vld [vmem:[%s273 + $0x13c] sm:$0xf]
        %v384 = vld [vmem:[%s273 + $0x140] sm:$0xf]
        %v385 = vld [vmem:[%s273 + $0x144] sm:$0xf]
        %v386 = vld [vmem:[%s273 + $0x148] sm:$0xf]
        %v387 = vld [vmem:[%s273 + $0x14c] sm:$0xf]
        %v388 = vld [vmem:[%s273 + $0x150] sm:$0xf]
        %v389 = vld [vmem:[%s273 + $0x154] sm:$0xf]
        %v390 = vld [vmem:[%s273 + $0x158] sm:$0xf]
        %v391 = vld [vmem:[%s273 + $0x15c] sm:$0xf]
        %v392 = vld [vmem:[%s273 + $0x160] sm:$0xf]
        %v393 = vld [vmem:[%s273 + $0x164] sm:$0xf]
        %v394 = vld [vmem:[%s273 + $0x168] sm:$0xf]
        %v395 = vld [vmem:[%s273 + $0x16c] sm:$0xf]
        %v396 = vld [vmem:[%s273 + $0x170] sm:$0xf]
        %v397 = vld [vmem:[%s273 + $0x174] sm:$0xf]
        %v398 = vld [vmem:[%s273 + $0x178] sm:$0xf]
        %v399 = vld [vmem:[%s273 + $0x17c] sm:$0xf]
        %v400 = vld [vmem:[%s273 + $0x180] sm:$0xf]
        %v401 = vld [vmem:[%s273 + $0x184] sm:$0xf]
        %v402 = vld [vmem:[%s273 + $0x188] sm:$0xf]
        %v403 = vld [vmem:[%s273 + $0x18c] sm:$0xf]
        %v404 = vld [vmem:[%s273 + $0x190] sm:$0xf]
        %v405 = vld [vmem:[%s273 + $0x194] sm:$0xf]
        %v406 = vld [vmem:[%s273 + $0x198] sm:$0xf]
        %v407 = vld [vmem:[%s273 + $0x19c] sm:$0xf]
        %v408 = vld [vmem:[%s273 + $0x1a0] sm:$0xf]
        %v409 = vld [vmem:[%s273 + $0x1a4] sm:$0xf]
        %v410 = vld [vmem:[%s273 + $0x1a8] sm:$0xf]
        %v411 = vld [vmem:[%s273 + $0x1ac] sm:$0xf]
        %v412 = vld [vmem:[%s273 + $0x1b0] sm:$0xf]
        %v413 = vld [vmem:[%s273 + $0x1b4] sm:$0xf]
        %v414 = vld [vmem:[%s273 + $0x1b8] sm:$0xf]
        %v415 = vld [vmem:[%s273 + $0x1bc] sm:$0xf]
        %v416 = vld [vmem:[%s273 + $0x1c0] sm:$0xf]
        %v417 = vld [vmem:[%s273 + $0x1c4] sm:$0xf]
        %v418 = vld [vmem:[%s273 + $0x1c8] sm:$0xf]
        %v419 = vld [vmem:[%s273 + $0x1cc] sm:$0xf]
        %v420 = vld [vmem:[%s273 + $0x1d0] sm:$0xf]
        %v421 = vld [vmem:[%s273 + $0x1d4] sm:$0xf]
        %v422 = vld [vmem:[%s273 + $0x1d8] sm:$0xf]
        %v423 = vld [vmem:[%s273 + $0x1dc] sm:$0xf]
        %v424 = vld [vmem:[%s273 + $0x1e0] sm:$0xf]
        %v425 = vld [vmem:[%s273 + $0x1e4] sm:$0xf]
        %v426 = vld [vmem:[%s273 + $0x1e8] sm:$0xf]
        %v427 = vld [vmem:[%s273 + $0x1ec] sm:$0xf]
        %v428 = vld [vmem:[%s273 + $0x1f0] sm:$0xf]
        %v429 = vld [vmem:[%s273 + $0x1f4] sm:$0xf]
        %v430 = vld [vmem:[%s273 + $0x1f8] sm:$0xf]
        %v431 = vld [vmem:[%s273 + $0x1fc] sm:$0xf]
        %v440 = vunpack.c.l.b16 %v296
        %v441 = vunpack.c.h.b16 %v296
        %v442 = vunpack.c.l.b16 %v297
        %v443 = vunpack.c.h.b16 %v297
        %v444 = vunpack.c.l.b16 %v298
        %v445 = vunpack.c.h.b16 %v298
        %v446 = vunpack.c.l.b16 %v299
        %v447 = vunpack.c.h.b16 %v299
        %v448 = vunpack.c.l.b16 %v300
        %v449 = vunpack.c.h.b16 %v300
        %v450 = vunpack.c.l.b16 %v301
        %v451 = vunpack.c.h.b16 %v301
        %v452 = vunpack.c.l.b16 %v302
        %v453 = vunpack.c.h.b16 %v302
        %v454 = vunpack.c.l.b16 %v303
        %v455 = vunpack.c.h.b16 %v303
        %v456 = vpack.c.b16 %v448, %v440
        %v457 = vpack.c.b16 %v449, %v441
        %v458 = vpack.c.b16 %v450, %v442
        %v459 = vpack.c.b16 %v451, %v443
        %v460 = vpack.c.b16 %v452, %v444
        %v461 = vpack.c.b16 %v453, %v445
        %v462 = vpack.c.b16 %v454, %v446
        %v463 = vpack.c.b16 %v455, %v447
        %v600 = vunpack.c.l.b16 %v304
        %v601 = vunpack.c.l.b16 %v305
        %v602 = vunpack.c.l.b16 %v306
        %v603 = vunpack.c.l.b16 %v307
        %v604 = vunpack.c.l.b16 %v308
        %v605 = vunpack.c.l.b16 %v309
        %v606 = vunpack.c.l.b16 %v310
        %v607 = vunpack.c.l.b16 %v311
        %v608 = vunpack.c.l.b16 %v312
        %v609 = vunpack.c.l.b16 %v313
        %v610 = vunpack.c.l.b16 %v314
        %v611 = vunpack.c.l.b16 %v315
        %v612 = vunpack.c.l.b16 %v316
        %v613 = vunpack.c.l.b16 %v317
        %v614 = vunpack.c.l.b16 %v318
        %v615 = vunpack.c.l.b16 %v319
        %v616 = vunpack.c.l.b16 %v320
        %v617 = vunpack.c.l.b16 %v321
        %v618 = vunpack.c.l.b16 %v322
        %v619 = vunpack.c.l.b16 %v323
        %v620 = vunpack.c.l.b16 %v324
        %v621 = vunpack.c.l.b16 %v325
        %v622 = vunpack.c.l.b16 %v326
        %v623 = vunpack.c.l.b16 %v327
        %v624 = vunpack.c.l.b16 %v328
        %v625 = vunpack.c.l.b16 %v329
        %v626 = vunpack.c.l.b16 %v330
        %v627 = vunpack.c.l.b16 %v331
        %v628 = vunpack.c.l.b16 %v332
        %v629 = vunpack.c.l.b16 %v333
        %v630 = vunpack.c.l.b16 %v334
        %v631 = vunpack.c.l.b16 %v335
        %v632 = vunpack.c.l.b16 %v336
        %v633 = vunpack.c.l.b16 %v337
        %v634 = vunpack.c.l.b16 %v338
        %v635 = vunpack.c.l.b16 %v339
        %v636 = vunpack.c.l.b16 %v340
        %v637 = vunpack.c.l.b16 %v341
        %v638 = vunpack.c.l.b16 %v342
        %v639 = vunpack.c.l.b16 %v343
        %v640 = vunpack.c.l.b16 %v344
        %v641 = vunpack.c.l.b16 %v345
        %v642 = vunpack.c.l.b16 %v346
        %v643 = vunpack.c.l.b16 %v347
        %v644 = vunpack.c.l.b16 %v348
        %v645 = vunpack.c.l.b16 %v349
        %v646 = vunpack.c.l.b16 %v350
        %v647 = vunpack.c.l.b16 %v351
        %v648 = vunpack.c.l.b16 %v352
        %v649 = vunpack.c.l.b16 %v353
        %v650 = vunpack.c.l.b16 %v354
        %v651 = vunpack.c.l.b16 %v355
        %v652 = vunpack.c.l.b16 %v356
        %v653 = vunpack.c.l.b16 %v357
        %v654 = vunpack.c.l.b16 %v358
        %v655 = vunpack.c.l.b16 %v359
        %v656 = vunpack.c.l.b16 %v360
        %v657 = vunpack.c.l.b16 %v361
        %v658 = vunpack.c.l.b16 %v362
        %v659 = vunpack.c.l.b16 %v363
        %v660 = vunpack.c.l.b16 %v364
        %v661 = vunpack.c.l.b16 %v365
        %v662 = vunpack.c.l.b16 %v366
        %v663 = vunpack.c.l.b16 %v367
        %v664 = vunpack.c.l.b16 %v368
        %v665 = vunpack.c.l.b16 %v369
        %v666 = vunpack.c.l.b16 %v370
        %v667 = vunpack.c.l.b16 %v371
        %v668 = vunpack.c.l.b16 %v372
        %v669 = vunpack.c.l.b16 %v373
        %v670 = vunpack.c.l.b16 %v374
        %v671 = vunpack.c.l.b16 %v375
        %v672 = vunpack.c.l.b16 %v376
        %v673 = vunpack.c.l.b16 %v377
        %v674 = vunpack.c.l.b16 %v378
        %v675 = vunpack.c.l.b16 %v379
        %v676 = vunpack.c.l.b16 %v380
        %v677 = vunpack.c.l.b16 %v381
        %v678 = vunpack.c.l.b16 %v382
        %v679 = vunpack.c.l.b16 %v383
        %v680 = vunpack.c.l.b16 %v384
        %v681 = vunpack.c.l.b16 %v385
        %v682 = vunpack.c.l.b16 %v386
        %v683 = vunpack.c.l.b16 %v387
        %v684 = vunpack.c.l.b16 %v388
        %v685 = vunpack.c.l.b16 %v389
        %v686 = vunpack.c.l.b16 %v390
        %v687 = vunpack.c.l.b16 %v391
        %v688 = vunpack.c.l.b16 %v392
        %v689 = vunpack.c.l.b16 %v393
        %v690 = vunpack.c.l.b16 %v394
        %v691 = vunpack.c.l.b16 %v395
        %v692 = vunpack.c.l.b16 %v396
        %v693 = vunpack.c.l.b16 %v397
        %v694 = vunpack.c.l.b16 %v398
        %v695 = vunpack.c.l.b16 %v399
        %v696 = vunpack.c.l.b16 %v400
        %v697 = vunpack.c.l.b16 %v401
        %v698 = vunpack.c.l.b16 %v402
        %v699 = vunpack.c.l.b16 %v403
        %v700 = vunpack.c.l.b16 %v404
        %v701 = vunpack.c.l.b16 %v405
        %v702 = vunpack.c.l.b16 %v406
        %v703 = vunpack.c.l.b16 %v407
        %v704 = vunpack.c.l.b16 %v408
        %v705 = vunpack.c.l.b16 %v409
        %v706 = vunpack.c.l.b16 %v410
        %v707 = vunpack.c.l.b16 %v411
        %v708 = vunpack.c.l.b16 %v412
        %v709 = vunpack.c.l.b16 %v413
        %v710 = vunpack.c.l.b16 %v414
        %v711 = vunpack.c.l.b16 %v415
        %v712 = vunpack.c.l.b16 %v416
        %v713 = vunpack.c.l.b16 %v417
        %v714 = vunpack.c.l.b16 %v418
        %v715 = vunpack.c.l.b16 %v419
        %v716 = vunpack.c.l.b16 %v420
        %v717 = vunpack.c.l.b16 %v421
        %v718 = vunpack.c.l.b16 %v422
        %v719 = vunpack.c.l.b16 %v423
        %v720 = vunpack.c.l.b16 %v424
        %v721 = vunpack.c.l.b16 %v425
        %v722 = vunpack.c.l.b16 %v426
        %v723 = vunpack.c.l.b16 %v427
        %v724 = vunpack.c.l.b16 %v428
        %v725 = vunpack.c.l.b16 %v429
        %v726 = vunpack.c.l.b16 %v430
        %v727 = vunpack.c.l.b16 %v431
        %v728 = vpack.c.b16 %v601, %v600
        %v729 = vpack.c.b16 %v603, %v602
        %v730 = vpack.c.b16 %v605, %v604
        %v731 = vpack.c.b16 %v607, %v606
        %v732 = vpack.c.b16 %v609, %v608
        %v733 = vpack.c.b16 %v611, %v610
        %v734 = vpack.c.b16 %v613, %v612
        %v735 = vpack.c.b16 %v615, %v614
        %v736 = vpack.c.b16 %v617, %v616
        %v737 = vpack.c.b16 %v619, %v618
        %v738 = vpack.c.b16 %v621, %v620
        %v739 = vpack.c.b16 %v623, %v622
        %v740 = vpack.c.b16 %v625, %v624
        %v741 = vpack.c.b16 %v627, %v626
        %v742 = vpack.c.b16 %v629, %v628
        %v743 = vpack.c.b16 %v631, %v630
        %v744 = vpack.c.b16 %v633, %v632
        %v745 = vpack.c.b16 %v635, %v634
        %v746 = vpack.c.b16 %v637, %v636
        %v747 = vpack.c.b16 %v639, %v638
        %v748 = vpack.c.b16 %v641, %v640
        %v749 = vpack.c.b16 %v643, %v642
        %v750 = vpack.c.b16 %v645, %v644
        %v751 = vpack.c.b16 %v647, %v646
        %v752 = vpack.c.b16 %v649, %v648
        %v753 = vpack.c.b16 %v651, %v650
        %v754 = vpack.c.b16 %v653, %v652
        %v755 = vpack.c.b16 %v655, %v654
        %v756 = vpack.c.b16 %v657, %v656
        %v757 = vpack.c.b16 %v659, %v658
        %v758 = vpack.c.b16 %v661, %v660
        %v759 = vpack.c.b16 %v663, %v662
        %v760 = vpack.c.b16 %v665, %v664
        %v761 = vpack.c.b16 %v667, %v666
        %v762 = vpack.c.b16 %v669, %v668
        %v763 = vpack.c.b16 %v671, %v670
        %v764 = vpack.c.b16 %v673, %v672
        %v765 = vpack.c.b16 %v675, %v674
        %v766 = vpack.c.b16 %v677, %v676
        %v767 = vpack.c.b16 %v679, %v678
        %v768 = vpack.c.b16 %v681, %v680
        %v769 = vpack.c.b16 %v683, %v682
        %v770 = vpack.c.b16 %v685, %v684
        %v771 = vpack.c.b16 %v687, %v686
        %v772 = vpack.c.b16 %v689, %v688
        %v773 = vpack.c.b16 %v691, %v690
        %v774 = vpack.c.b16 %v693, %v692
        %v775 = vpack.c.b16 %v695, %v694
        %v776 = vpack.c.b16 %v697, %v696
        %v777 = vpack.c.b16 %v699, %v698
        %v778 = vpack.c.b16 %v701, %v700
        %v779 = vpack.c.b16 %v703, %v702
        %v780 = vpack.c.b16 %v705, %v704
        %v781 = vpack.c.b16 %v707, %v706
        %v782 = vpack.c.b16 %v709, %v708
        %v783 = vpack.c.b16 %v711, %v710
        %v784 = vpack.c.b16 %v713, %v712
        %v785 = vpack.c.b16 %v715, %v714
        %v786 = vpack.c.b16 %v717, %v716
        %v787 = vpack.c.b16 %v719, %v718
        %v788 = vpack.c.b16 %v721, %v720
        %v789 = vpack.c.b16 %v723, %v722
        %v790 = vpack.c.b16 %v725, %v724
        %v791 = vpack.c.b16 %v727, %v726
        %856 = vmatprep.subr.bf16.mxu0 0
        %857 = vmatpush1.bf16.msra.mxu0 %v728
        %858 = vmatprep.subr.bf16.mxu0 0
        %859 = vmatpush1.bf16.msra.mxu0 %v729
        %860 = vmatprep.subr.bf16.mxu0 0
        %861 = vmatpush1.bf16.msra.mxu0 %v730
        %862 = vmatprep.subr.bf16.mxu0 0
        %863 = vmatpush1.bf16.msra.mxu0 %v731
        %864 = vmatprep.subr.bf16.mxu0 0
        %865 = vmatpush1.bf16.msra.mxu0 %v732
        %866 = vmatprep.subr.bf16.mxu0 0
        %867 = vmatpush1.bf16.msra.mxu0 %v733
        %868 = vmatprep.subr.bf16.mxu0 0
        %869 = vmatpush1.bf16.msra.mxu0 %v734
        %870 = vmatprep.subr.bf16.mxu0 0
        %871 = vmatpush1.bf16.msra.mxu0 %v735
        %872 = vmatprep.subr.bf16.mxu0 0
        %873 = vmatpush1.bf16.msra.mxu0 %v736
        %874 = vmatprep.subr.bf16.mxu0 0
        %875 = vmatpush1.bf16.msra.mxu0 %v737
        %876 = vmatprep.subr.bf16.mxu0 0
        %877 = vmatpush1.bf16.msra.mxu0 %v738
        %878 = vmatprep.subr.bf16.mxu0 0
        %879 = vmatpush1.bf16.msra.mxu0 %v739
        %880 = vmatprep.subr.bf16.mxu0 0
        %881 = vmatpush1.bf16.msra.mxu0 %v740
        %882 = vmatprep.subr.bf16.mxu0 0
        %883 = vmatpush1.bf16.msra.mxu0 %v741
        %884 = vmatprep.subr.bf16.mxu0 0
        %885 = vmatpush1.bf16.msra.mxu0 %v742
        %886 = vmatprep.subr.bf16.mxu0 0
        %887 = vmatpush1.bf16.msra.mxu0 %v743
        %888 = vmatprep.mubr.bf16.mxu0 %v457
        %889 = vmatmul.mubr.bf16.gmra.mrb[0].mxu0 %v456
        %v890 = vpop.f32.mrb[0].mxu0
        %v891 = vadd.f32 0.0, %v890
        %v892 = vpop.f32.mrb[0].mxu0
        %v893 = vpop.f32.mrb[0].mxu0
        %v894 = vadd.f32 0.0, %v893
        %v895 = vpop.f32.mrb[0].mxu0
        %896 = vdwg.mxu0
        %897 = vmatprep.subr.bf16.mxu0 0
        %898 = vmatpush1.bf16.msra.mxu0 %v744
        %899 = vmatprep.subr.bf16.mxu0 0
        %900 = vmatpush1.bf16.msra.mxu0 %v745
        %901 = vmatprep.subr.bf16.mxu0 0
        %902 = vmatpush1.bf16.msra.mxu0 %v746
        %903 = vmatprep.subr.bf16.mxu0 0
        %904 = vmatpush1.bf16.msra.mxu0 %v747
        %905 = vmatprep.subr.bf16.mxu0 0
        %906 = vmatpush1.bf16.msra.mxu0 %v748
        %907 = vmatprep.subr.bf16.mxu0 0
        %908 = vmatpush1.bf16.msra.mxu0 %v749
        %909 = vmatprep.subr.bf16.mxu0 0
        %910 = vmatpush1.bf16.msra.mxu0 %v750
        %911 = vmatprep.subr.bf16.mxu0 0
        %912 = vmatpush1.bf16.msra.mxu0 %v751
        %913 = vmatprep.subr.bf16.mxu0 0
        %914 = vmatpush1.bf16.msra.mxu0 %v752
        %915 = vmatprep.subr.bf16.mxu0 0
        %916 = vmatpush1.bf16.msra.mxu0 %v753
        %917 = vmatprep.subr.bf16.mxu0 0
        %918 = vmatpush1.bf16.msra.mxu0 %v754
        %919 = vmatprep.subr.bf16.mxu0 0
        %920 = vmatpush1.bf16.msra.mxu0 %v755
        %921 = vmatprep.subr.bf16.mxu0 0
        %922 = vmatpush1.bf16.msra.mxu0 %v756
        %923 = vmatprep.subr.bf16.mxu0 0
        %924 = vmatpush1.bf16.msra.mxu0 %v757
        %925 = vmatprep.subr.bf16.mxu0 0
        %926 = vmatpush1.bf16.msra.mxu0 %v758
        %927 = vmatprep.subr.bf16.mxu0 0
        %928 = vmatpush1.bf16.msra.mxu0 %v759
        %929 = vmatprep.mubr.bf16.mxu0 %v459
        %930 = vmatmul.mubr.bf16.gmra.mrb[0].mxu0 %v458
        %v931 = vpop.f32.mrb[0].mxu0
        %v932 = vadd.f32 %v891, %v931
        %v933 = vpop.f32.mrb[0].mxu0
        %v934 = vpop.f32.mrb[0].mxu0
        %v935 = vadd.f32 %v894, %v934
        %v936 = vpop.f32.mrb[0].mxu0
        %937 = vdwg.mxu0
        %938 = vmatprep.subr.bf16.mxu0 0
        %939 = vmatpush1.bf16.msra.mxu0 %v760
        %940 = vmatprep.subr.bf16.mxu0 0
        %941 = vmatpush1.bf16.msra.mxu0 %v761
        %942 = vmatprep.subr.bf16.mxu0 0
        %943 = vmatpush1.bf16.msra.mxu0 %v762
        %944 = vmatprep.subr.bf16.mxu0 0
        %945 = vmatpush1.bf16.msra.mxu0 %v763
        %946 = vmatprep.subr.bf16.mxu0 0
        %947 = vmatpush1.bf16.msra.mxu0 %v764
        %948 = vmatprep.subr.bf16.mxu0 0
        %949 = vmatpush1.bf16.msra.mxu0 %v765
        %950 = vmatprep.subr.bf16.mxu0 0
        %951 = vmatpush1.bf16.msra.mxu0 %v766
        %952 = vmatprep.subr.bf16.mxu0 0
        %953 = vmatpush1.bf16.msra.mxu0 %v767
        %954 = vmatprep.subr.bf16.mxu0 0
        %955 = vmatpush1.bf16.msra.mxu0 %v768
        %956 = vmatprep.subr.bf16.mxu0 0
        %957 = vmatpush1.bf16.msra.mxu0 %v769
        %958 = vmatprep.subr.bf16.mxu0 0
        %959 = vmatpush1.bf16.msra.mxu0 %v770
        %960 = vmatprep.subr.bf16.mxu0 0
        %961 = vmatpush1.bf16.msra.mxu0 %v771
        %962 = vmatprep.subr.bf16.mxu0 0
        %963 = vmatpush1.bf16.msra.mxu0 %v772
        %964 = vmatprep.subr.bf16.mxu0 0
        %965 = vmatpush1.bf16.msra.mxu0 %v773
        %966 = vmatprep.subr.bf16.mxu0 0
        %967 = vmatpush1.bf16.msra.mxu0 %v774
        %968 = vmatprep.subr.bf16.mxu0 0
        %969 = vmatpush1.bf16.msra.mxu0 %v775
        %970 = vmatprep.mubr.bf16.mxu0 %v461
        %971 = vmatmul.mubr.bf16.gmra.mrb[0].mxu0 %v460
        %v972 = vpop.f32.mrb[0].mxu0
        %v973 = vadd.f32 %v932, %v972
        %v974 = vpop.f32.mrb[0].mxu0
        %v975 = vpop.f32.mrb[0].mxu0
        %v976 = vadd.f32 %v935, %v975
        %v977 = vpop.f32.mrb[0].mxu0
        %978 = vdwg.mxu0
        %979 = vmatprep.subr.bf16.mxu0 0
        %980 = vmatpush1.bf16.msra.mxu0 %v776
        %981 = vmatprep.subr.bf16.mxu0 0
        %982 = vmatpush1.bf16.msra.mxu0 %v777
        %983 = vmatprep.subr.bf16.mxu0 0
        %984 = vmatpush1.bf16.msra.mxu0 %v778
        %985 = vmatprep.subr.bf16.mxu0 0
        %986 = vmatpush1.bf16.msra.mxu0 %v779
        %987 = vmatprep.subr.bf16.mxu0 0
        %988 = vmatpush1.bf16.msra.mxu0 %v780
        %989 = vmatprep.subr.bf16.mxu0 0
        %990 = vmatpush1.bf16.msra.mxu0 %v781
        %991 = vmatprep.subr.bf16.mxu0 0
        %992 = vmatpush1.bf16.msra.mxu0 %v782
        %993 = vmatprep.subr.bf16.mxu0 0
        %994 = vmatpush1.bf16.msra.mxu0 %v783
        %995 = vmatprep.subr.bf16.mxu0 0
        %996 = vmatpush1.bf16.msra.mxu0 %v784
        %997 = vmatprep.subr.bf16.mxu0 0
        %998 = vmatpush1.bf16.msra.mxu0 %v785
        %999 = vmatprep.subr.bf16.mxu0 0
        %1000 = vmatpush1.bf16.msra.mxu0 %v786
        %1001 = vmatprep.subr.bf16.mxu0 0
        %1002 = vmatpush1.bf16.msra.mxu0 %v787
        %1003 = vmatprep.subr.bf16.mxu0 0
        %1004 = vmatpush1.bf16.msra.mxu0 %v788
        %1005 = vmatprep.subr.bf16.mxu0 0
        %1006 = vmatpush1.bf16.msra.mxu0 %v789
        %1007 = vmatprep.subr.bf16.mxu0 0
        %1008 = vmatpush1.bf16.msra.mxu0 %v790
        %1009 = vmatprep.subr.bf16.mxu0 0
        %1010 = vmatpush1.bf16.msra.mxu0 %v791
        %1011 = vmatprep.mubr.bf16.mxu0 %v463
        %1012 = vmatmul.mubr.bf16.gmra.mrb[0].mxu0 %v462
        %v1013 = vpop.f32.mrb[0].mxu0
        %v1014 = vadd.f32 %v973, %v1013
        %v1015 = vpop.f32.mrb[0].mxu0
        %v1016 = vpop.f32.mrb[0].mxu0
        %v1017 = vadd.f32 %v976, %v1016
        %v1018 = vpop.f32.mrb[0].mxu0
        %1019 = vdwg.mxu0
        %v1020 = vadd.f32 %v294, %v1014
        %v1021 = vadd.f32 %v295, %v1017
        %1022 = vst [vmem:[#allocation2] sm:$0xff] %v1020
        %1023 = vst [vmem:[#allocation2 + $0x8] sm:$0xff] %v1021
        %p1024 = scmp.eq.s32.totalorder %s21, 1
        // Predicated region
        $region60: #{_lambda_.9} parent=50 // pred_check
          %p1025 = pneg %p1024
        $region61: #{_lambda_.9} parent=50 // pred_check_branch
          %1027 = sbr.rel (%p1025) target = $region63
        $region62: #{_lambda_.9} parent=50 // pred_region
          %v1028 = vld [vmem:[#allocation2] sm:$0xff]
          %v1029 = vld [vmem:[#allocation2 + $0x8] sm:$0xff]
          %v1030 = vld [vmem:[%s277] sm:$0x1]
          %v1032 = vlaneseq
          %v1033 = vshrl.u32 %v1032, 7
          %v1034 = vsub.s32 0, %v1033
          %v1035 = vrot.slane %v1030, %v1034
          %v1037 = vadd.f32 %v1028, %v1035
          %v1038 = vadd.f32 %v1029, %v1035
          %1039 = vst [vmem:[%s285] sm:$0xff] %v1037
          %1040 = vst [vmem:[%s285 + $0x8] sm:$0xff] %v1038
        $region63: #{_lambda_.9} parent=50 // pred_fallthru
          _
        %s1041 = smul.u32 2, %s20
        %p1042 = scmp.lt.s32.totalorder %s1041, 1
        %s1043 = scalar_select %p1042, %s1041, 1
        %p1044 = scmp.lt.s32.totalorder %s19, 0
        %s1045 = scalar_select %p1044, %s19, 0
        %s1046 = sadd.s32 %s1045, %s1043
        %s1047 = smul.addr %s1046, 8
        %s1048 = scalar_lea.vmem %s3, %s1047
        // Predicated region
        $region64: #{_lambda_.9} parent=50 // pred_check
          %p1049 = pneg %p135
        $region65: #{_lambda_.9} parent=50 // pred_check_branch
          %1051 = sbr.rel (%p1049) target = $region67
        $region66: #{_lambda_.9} parent=50 // pred_region
          %s1052 = smul.u32 2, %s20
        $region67: #{_lambda_.9} parent=50 // pred_fallthru
          _
        // Predicated region
        $region68: #{_lambda_.9} parent=50 // pred_check
          %p1053 = pneg %p135
        $region69: #{_lambda_.9} parent=50 // pred_check_branch
          %1055 = sbr.rel (%p1053) target = $region71
        $region70: #{_lambda_.9} parent=50 // pred_region
          %s1056 = smul.u32 2, %s20
          %p1057 = scmp.lt.s32.totalorder %s1056, 1
          %s1058 = scalar_select %p1057, %s1056, 1
          %p1059 = scmp.lt.s32.totalorder %s19, 0
          %s1060 = scalar_select %p1059, %s19, 0
          %s1061 = sadd.s32 %s1060, %s1058
          %s1062 = smul.addr %s1061, 8
          %s1063 = scalar_lea.vmem %s3, %s1062
        $region71: #{_lambda_.9} parent=50 // pred_fallthru
          _
      $region51: #{_lambda_.9} parent=5 // pred_fallthru
        _
      %p1064 = scmp.le.s32.totalorder 2, %s9
      // Predicated region
      $region72: #{_lambda_.9} parent=5 // pred_check
        %p1065 = pneg %p1064
      $region73: #{_lambda_.9} parent=5 // pred_check_branch
        %1067 = sbr.rel (%p1065) target = $region75
      $region74: #{_lambda_.9} parent=5 // pred_region
        %s1068 = ssub.s32 %s9, 2
      $region75: #{_lambda_.9} parent=5 // pred_fallthru
        _
    $region6: #{_lambda_.9} parent=1 // loop_footer
      %s13 = sadd.s32 1, %s9
    $region7: #{_lambda_.9} parent=1 // loop_footer_branch
      %8 = sbr.rel target = $region3
    $region8: #{_lambda_.9} parent=1 // loop_exit
      _

</llo_original>
